<compile_context>
chip_gen: v6e
topology: v6e:2x2x1
jax: 0.10.0
libtpu: 0.0.40
codegen_flags: <defaults>
</compile_context>

<pallas_src>
import functools

import jax
import jax.numpy as jnp
from jax.experimental import pallas as pl
from jax.experimental.pallas import tpu as pltpu


def _round_up(x, m):
    return ((x + m - 1) // m) * m


_TILE_M = 256   # row tile: keeps the 256-wide MXU full, 2x-buffers cheaply
_LANE = 128     # lane width: output channel padding target


# ---------------------------------------------------------------------------
# Pallas kernel: fused matmul (im2col conv) + bias + per-channel PReLU
# ---------------------------------------------------------------------------
def _conv_prelu_kernel(x_ref, w_ref, ba_ref, o_ref):
    # x_ref : (tm, Kp)  bf16  im2col patch tile (streamed, double-buffered)
    # w_ref : (Kp, Cp)  bf16  flattened 3x3xCin -> Cout weights (VMEM-resident)
    # ba_ref: (2,  Cp)  f32   row 0 = bias, row 1 = PReLU slope (VMEM-resident)
    # o_ref : (tm, Cp)  f32
    y = jnp.dot(x_ref[...], w_ref[...], preferred_element_type=jnp.float32)
    y = y + ba_ref[0:1, :]
    alpha = ba_ref[1:2, :]
    o_ref[...] = jnp.where(y > 0.0, y, alpha * y)


def _conv_prelu_matmul(patches, w2d, bias, alpha):
    """patches: (M, K) f32, w2d: (K, Cout) f32, bias/alpha: (Cout,) -> (M, Cout) f32."""
    M, K = patches.shape
    Cout = w2d.shape[1]

    Kp = _round_up(K, 8)            # no 128-padding of K (layer-1 waste fix)
    Cp = _round_up(Cout, _LANE)     # lane-dense output stores

    if M > _TILE_M:
        tile_m = _TILE_M
        Mp = _round_up(M, _TILE_M)
    else:
        tile_m = _round_up(M, 16)   # bf16 sublane packing for tiny late layers
        Mp = tile_m
    n_tiles = Mp // tile_m

    # bf16 MXU inputs (f32 accumulation inside the kernel); pad with jnp.pad.
    xp = jnp.pad(patches.astype(jnp.bfloat16), ((0, Mp - M), (0, Kp - K)))
    wp = jnp.pad(w2d.astype(jnp.bfloat16), ((0, Kp - K), (0, Cp - Cout)))
    ba = jnp.pad(jnp.stack([bias, alpha]).astype(jnp.float32),
                 ((0, 0), (0, Cp - Cout)))

    out = pl.pallas_call(
        _conv_prelu_kernel,
        out_shape=jax.ShapeDtypeStruct((Mp, Cp), jnp.float32),
        grid_spec=pl.GridSpec(
            grid=(n_tiles,),
            in_specs=[
                pl.BlockSpec((tile_m, Kp), lambda i: (i, 0)),   # streamed tiles
                pl.BlockSpec((Kp, Cp), lambda i: (0, 0)),       # resident weights
                pl.BlockSpec((2, Cp), lambda i: (0, 0)),        # resident bias/alpha
            ],
            out_specs=pl.BlockSpec((tile_m, Cp), lambda i: (i, 0)),
        ),
        compiler_params=pltpu.CompilerParams(
            dimension_semantics=("parallel",),
            vmem_limit_bytes=32 * 1024 * 1024,
        ),
    )(xp, wp, ba)

    return out[:M, :Cout]


# ---------------------------------------------------------------------------
# One conv(3x3, pad=1) + PReLU layer (NHWC); im2col in JAX, matmul in Pallas
# ---------------------------------------------------------------------------
def conv_prelu(x_nhwc, w, b, alpha, stride):
    N, H, W, Cin = x_nhwc.shape
    Cout = w.shape[-1]
    Ho = (H + 2 - 3) // stride + 1
    Wo = (W + 2 - 3) // stride + 1

    x_pad = jnp.pad(x_nhwc, ((0, 0), (1, 1), (1, 1), (0, 0)))

    # im2col: taps ordered (ky, kx) major, channels minor — matches reshape of
    # (3, 3, Cin, Cout) weights to (9*Cin, Cout).
    cols = []
    for ky in range(3):
        for kx in range(3):
            sl = x_pad[:, ky::stride, kx::stride, :][:, :Ho, :Wo, :]
            cols.append(sl)
    patches = jnp.concatenate(cols, axis=-1).reshape(N * Ho * Wo, 9 * Cin)

    w2d = w.reshape(9 * Cin, Cout)
    out = _conv_prelu_matmul(patches, w2d, b, alpha)
    return out.reshape(N, Ho, Wo, Cout)


# ---------------------------------------------------------------------------
# Parameter init (deterministic, PyTorch-like: U(-1/sqrt(fan_in), .), PReLU=0.25)
# ---------------------------------------------------------------------------
def init_conv_params(key, cin, cout):
    k1, k2 = jax.random.split(key)
    fan_in = cin * 9
    bound = 1.0 / (fan_in ** 0.5)
    w = jax.random.uniform(k1, (3, 3, cin, cout), jnp.float32, -bound, bound)
    b = jax.random.uniform(k2, (cout,), jnp.float32, -bound, bound)
    a = jnp.full((cout,), 0.25, jnp.float32)
    return w, b, a


def init_encoder_params(key):
    # (cin, cout, stride) for each of the 8 conv+PReLU layers.
    cfg = [
        (3, 32, 2), (32, 32, 1),    # pyramid1
        (32, 48, 2), (48, 48, 1),   # pyramid2
        (48, 72, 2), (72, 72, 1),   # pyramid3
        (72, 96, 2), (96, 96, 1),   # pyramid4
    ]
    keys = jax.random.split(key, len(cfg))
    params = []
    for k, (cin, cout, stride) in zip(keys, cfg):
        w, b, a = init_conv_params(k, cin, cout)
        params.append({"w": w, "b": b, "a": a, "stride": stride})
    return params


# ---------------------------------------------------------------------------
# Encoder forward: input/output NCHW like the PyTorch module
# ---------------------------------------------------------------------------
def encoder_forward(params, img_nchw):
    x = jnp.transpose(img_nchw, (0, 2, 3, 1))  # NCHW -> NHWC

    feats_nhwc = []
    idx = 0
    for _stage in range(4):
        for _layer in range(2):
            p = params[idx]
            x = conv_prelu(x, p["w"], p["b"], p["a"], p["stride"])
            idx += 1
        feats_nhwc.append(x)

    f1, f2, f3, f4 = feats_nhwc
    to_nchw = lambda t: jnp.transpose(t, (0, 3, 1, 2))
    return (to_nchw(f4), to_nchw(f3), to_nchw(f2), to_nchw(f1))


if __name__ == "__main__":
    key = jax.random.PRNGKey(0)
    k_params, k_input = jax.random.split(key)

    params = init_encoder_params(k_params)
    img = jax.random.normal(k_input, (2, 3, 16, 16), jnp.float32)  # NCHW

    fwd = jax.jit(functools.partial(encoder_forward, params))
    f4, f3, f2, f1 = fwd(img)
    jax.block_until_ready((f4, f3, f2, f1))

    assert f1.shape == (2, 32, 8, 8), f1.shape
    assert f2.shape == (2, 48, 4, 4), f2.shape
    assert f3.shape == (2, 72, 2, 2), f3.shape
    assert f4.shape == (2, 96, 1, 1), f4.shape
    assert all(jnp.isfinite(t).all() for t in (f1, f2, f3, f4))

    print("KERNEL_OK")
</pallas_src>

<mosaic_0001>
module attributes {stable_mosaic.version = 11 : i64} {
  func.func @_conv_prelu_kernel(%arg0: i32, %arg1: memref<128x32xbf16, #tpu.memory_space<vmem>>, %arg2: memref<32x128xbf16, #tpu.memory_space<vmem>>, %arg3: memref<2x128xf32, #tpu.memory_space<vmem>>, %arg4: memref<128x128xf32, #tpu.memory_space<vmem>>) attributes {dimension_semantics = [#tpu.dimension_semantics<parallel>], iteration_bounds = array<i64: 1>, scalar_prefetch = 0 : i64, scratch_operands = 0 : i64, tpu.core_type = #tpu.core_type<tc>, window_params = [{transform_indices = @transform_0, window_bounds = array<i64: 128, 32>}, {pipeline_mode = #tpu.pipeline_mode<synchronous>, transform_indices = @transform_1, window_bounds = array<i64: 32, 128>}, {pipeline_mode = #tpu.pipeline_mode<synchronous>, transform_indices = @transform_2, window_bounds = array<i64: 2, 128>}, {transform_indices = @transform_3, window_bounds = array<i64: 128, 128>}]} {
    %c0 = arith.constant 0 : index
    %c0_0 = arith.constant 0 : index
    %0 = vector.load %arg1[%c0, %c0_0] : memref<128x32xbf16, #tpu.memory_space<vmem>>, vector<128x32xbf16>
    %c0_1 = arith.constant 0 : index
    %c0_2 = arith.constant 0 : index
    %1 = vector.load %arg2[%c0_1, %c0_2] : memref<32x128xbf16, #tpu.memory_space<vmem>>, vector<32x128xbf16>
    %cst = arith.constant dense<0.000000e+00> : vector<128x128xf32>
    %2 = tpu.matmul %0, %1, %cst {dimension_numbers = #tpu.dot_dimension_numbers<[1], [0], [0], [1], [0, 0, 1, 1], [], []>} : vector<128x32xbf16>, vector<32x128xbf16>, vector<128x128xf32> -> vector<128x128xf32>
    %c0_3 = arith.constant 0 : index
    %c0_4 = arith.constant 0 : index
    %3 = vector.load %arg3[%c0_3, %c0_4] : memref<2x128xf32, #tpu.memory_space<vmem>>, vector<1x128xf32>
    %4 = vector.broadcast %3 : vector<1x128xf32> to vector<128x128xf32>
    %5 = arith.addf %2, %4 : vector<128x128xf32>
    %c1 = arith.constant 1 : index
    %c0_5 = arith.constant 0 : index
    %6 = vector.load %arg3[%c1, %c0_5] : memref<2x128xf32, #tpu.memory_space<vmem>>, vector<1x128xf32>
    %cst_6 = arith.constant 0.000000e+00 : f32
    %7 = vector.broadcast %cst_6 : f32 to vector<128x128xf32>
    %8 = arith.cmpf ogt, %5, %7 : vector<128x128xf32>
    %9 = vector.broadcast %6 : vector<1x128xf32> to vector<128x128xf32>
    %10 = arith.mulf %9, %5 : vector<128x128xf32>
    %11 = arith.select %8, %5, %10 : vector<128x128xi1>, vector<128x128xf32>
    %c0_7 = arith.constant 0 : index
    %c0_8 = arith.constant 0 : index
    %12 = vector.load %arg4[%c0_7, %c0_8] : memref<128x128xf32, #tpu.memory_space<vmem>>, vector<128x128xf32>
    tpu.vector_store %arg4[%c0_7, %c0_8], %11 {strides = array<i32>} : memref<128x128xf32, #tpu.memory_space<vmem>>, vector<128x128xf32>,
    return
  }
  func.func @transform_0(%arg0: i32) -> (i32, i32) {
    %c0_i32 = arith.constant 0 : i32
    %c0_i32_0 = arith.constant 0 : i32
    return %arg0, %c0_i32 : i32, i32
  }
  func.func @transform_1(%arg0: i32) -> (i32, i32) {
    %c0_i32 = arith.constant 0 : i32
    %c0_i32_0 = arith.constant 0 : i32
    %c0_i32_1 = arith.constant 0 : i32
    return %c0_i32, %c0_i32_0 : i32, i32
  }
  func.func @transform_2(%arg0: i32) -> (i32, i32) {
    %c0_i32 = arith.constant 0 : i32
    %c0_i32_0 = arith.constant 0 : i32
    %c0_i32_1 = arith.constant 0 : i32
    return %c0_i32, %c0_i32_0 : i32, i32
  }
  func.func @transform_3(%arg0: i32) -> (i32, i32) {
    %c0_i32 = arith.constant 0 : i32
    %c0_i32_0 = arith.constant 0 : i32
    return %arg0, %c0_i32 : i32, i32
  }
}

module attributes {stable_mosaic.version = 11 : i64} {
  func.func @_conv_prelu_kernel(%arg0: i32, %arg1: memref<128x288xbf16, #tpu.memory_space<vmem>>, %arg2: memref<288x128xbf16, #tpu.memory_space<vmem>>, %arg3: memref<2x128xf32, #tpu.memory_space<vmem>>, %arg4: memref<128x128xf32, #tpu.memory_space<vmem>>) attributes {dimension_semantics = [#tpu.dimension_semantics<parallel>], iteration_bounds = array<i64: 1>, scalar_prefetch = 0 : i64, scratch_operands = 0 : i64, tpu.core_type = #tpu.core_type<tc>, window_params = [{transform_indices = @transform_0, window_bounds = array<i64: 128, 288>}, {pipeline_mode = #tpu.pipeline_mode<synchronous>, transform_indices = @transform_1, window_bounds = array<i64: 288, 128>}, {pipeline_mode = #tpu.pipeline_mode<synchronous>, transform_indices = @transform_2, window_bounds = array<i64: 2, 128>}, {transform_indices = @transform_3, window_bounds = array<i64: 128, 128>}]} {
    %c0 = arith.constant 0 : index
    %c0_0 = arith.constant 0 : index
    %0 = vector.load %arg1[%c0, %c0_0] : memref<128x288xbf16, #tpu.memory_space<vmem>>, vector<128x288xbf16>
    %c0_1 = arith.constant 0 : index
    %c0_2 = arith.constant 0 : index
    %1 = vector.load %arg2[%c0_1, %c0_2] : memref<288x128xbf16, #tpu.memory_space<vmem>>, vector<288x128xbf16>
    %cst = arith.constant dense<0.000000e+00> : vector<128x128xf32>
    %2 = tpu.matmul %0, %1, %cst {dimension_numbers = #tpu.dot_dimension_numbers<[1], [0], [0], [1], [0, 0, 1, 1], [], []>} : vector<128x288xbf16>, vector<288x128xbf16>, vector<128x128xf32> -> vector<128x128xf32>
    %c0_3 = arith.constant 0 : index
    %c0_4 = arith.constant 0 : index
    %3 = vector.load %arg3[%c0_3, %c0_4] : memref<2x128xf32, #tpu.memory_space<vmem>>, vector<1x128xf32>
    %4 = vector.broadcast %3 : vector<1x128xf32> to vector<128x128xf32>
    %5 = arith.addf %2, %4 : vector<128x128xf32>
    %c1 = arith.constant 1 : index
    %c0_5 = arith.constant 0 : index
    %6 = vector.load %arg3[%c1, %c0_5] : memref<2x128xf32, #tpu.memory_space<vmem>>, vector<1x128xf32>
    %cst_6 = arith.constant 0.000000e+00 : f32
    %7 = vector.broadcast %cst_6 : f32 to vector<128x128xf32>
    %8 = arith.cmpf ogt, %5, %7 : vector<128x128xf32>
    %9 = vector.broadcast %6 : vector<1x128xf32> to vector<128x128xf32>
    %10 = arith.mulf %9, %5 : vector<128x128xf32>
    %11 = arith.select %8, %5, %10 : vector<128x128xi1>, vector<128x128xf32>
    %c0_7 = arith.constant 0 : index
    %c0_8 = arith.constant 0 : index
    %12 = vector.load %arg4[%c0_7, %c0_8] : memref<128x128xf32, #tpu.memory_space<vmem>>, vector<128x128xf32>
    tpu.vector_store %arg4[%c0_7, %c0_8], %11 {strides = array<i32>} : memref<128x128xf32, #tpu.memory_space<vmem>>, vector<128x128xf32>,
    return
  }
  func.func @transform_0(%arg0: i32) -> (i32, i32) {
    %c0_i32 = arith.constant 0 : i32
    %c0_i32_0 = arith.constant 0 : i32
    return %arg0, %c0_i32 : i32, i32
  }
  func.func @transform_1(%arg0: i32) -> (i32, i32) {
    %c0_i32 = arith.constant 0 : i32
    %c0_i32_0 = arith.constant 0 : i32
    %c0_i32_1 = arith.constant 0 : i32
    return %c0_i32, %c0_i32_0 : i32, i32
  }
  func.func @transform_2(%arg0: i32) -> (i32, i32) {
    %c0_i32 = arith.constant 0 : i32
    %c0_i32_0 = arith.constant 0 : i32
    %c0_i32_1 = arith.constant 0 : i32
    return %c0_i32, %c0_i32_0 : i32, i32
  }
  func.func @transform_3(%arg0: i32) -> (i32, i32) {
    %c0_i32 = arith.constant 0 : i32
    %c0_i32_0 = arith.constant 0 : i32
    return %arg0, %c0_i32 : i32, i32
  }
}

module attributes {stable_mosaic.version = 11 : i64} {
  func.func @_conv_prelu_kernel(%arg0: i32, %arg1: memref<32x288xbf16, #tpu.memory_space<vmem>>, %arg2: memref<288x128xbf16, #tpu.memory_space<vmem>>, %arg3: memref<2x128xf32, #tpu.memory_space<vmem>>, %arg4: memref<32x128xf32, #tpu.memory_space<vmem>>) attributes {dimension_semantics = [#tpu.dimension_semantics<parallel>], iteration_bounds = array<i64: 1>, scalar_prefetch = 0 : i64, scratch_operands = 0 : i64, tpu.core_type = #tpu.core_type<tc>, window_params = [{transform_indices = @transform_0, window_bounds = array<i64: 32, 288>}, {pipeline_mode = #tpu.pipeline_mode<synchronous>, transform_indices = @transform_1, window_bounds = array<i64: 288, 128>}, {pipeline_mode = #tpu.pipeline_mode<synchronous>, transform_indices = @transform_2, window_bounds = array<i64: 2, 128>}, {transform_indices = @transform_3, window_bounds = array<i64: 32, 128>}]} {
    %c0 = arith.constant 0 : index
    %c0_0 = arith.constant 0 : index
    %0 = vector.load %arg1[%c0, %c0_0] : memref<32x288xbf16, #tpu.memory_space<vmem>>, vector<32x288xbf16>
    %c0_1 = arith.constant 0 : index
    %c0_2 = arith.constant 0 : index
    %1 = vector.load %arg2[%c0_1, %c0_2] : memref<288x128xbf16, #tpu.memory_space<vmem>>, vector<288x128xbf16>
    %cst = arith.constant dense<0.000000e+00> : vector<32x128xf32>
    %2 = tpu.matmul %0, %1, %cst {dimension_numbers = #tpu.dot_dimension_numbers<[1], [0], [0], [1], [0, 0, 1, 1], [], []>} : vector<32x288xbf16>, vector<288x128xbf16>, vector<32x128xf32> -> vector<32x128xf32>
    %c0_3 = arith.constant 0 : index
    %c0_4 = arith.constant 0 : index
    %3 = vector.load %arg3[%c0_3, %c0_4] : memref<2x128xf32, #tpu.memory_space<vmem>>, vector<1x128xf32>
    %4 = vector.broadcast %3 : vector<1x128xf32> to vector<32x128xf32>
    %5 = arith.addf %2, %4 : vector<32x128xf32>
    %c1 = arith.constant 1 : index
    %c0_5 = arith.constant 0 : index
    %6 = vector.load %arg3[%c1, %c0_5] : memref<2x128xf32, #tpu.memory_space<vmem>>, vector<1x128xf32>
    %cst_6 = arith.constant 0.000000e+00 : f32
    %7 = vector.broadcast %cst_6 : f32 to vector<32x128xf32>
    %8 = arith.cmpf ogt, %5, %7 : vector<32x128xf32>
    %9 = vector.broadcast %6 : vector<1x128xf32> to vector<32x128xf32>
    %10 = arith.mulf %9, %5 : vector<32x128xf32>
    %11 = arith.select %8, %5, %10 : vector<32x128xi1>, vector<32x128xf32>
    %c0_7 = arith.constant 0 : index
    %c0_8 = arith.constant 0 : index
    %12 = vector.load %arg4[%c0_7, %c0_8] : memref<32x128xf32, #tpu.memory_space<vmem>>, vector<32x128xf32>
    tpu.vector_store %arg4[%c0_7, %c0_8], %11 {strides = array<i32>} : memref<32x128xf32, #tpu.memory_space<vmem>>, vector<32x128xf32>,
    return
  }
  func.func @transform_0(%arg0: i32) -> (i32, i32) {
    %c0_i32 = arith.constant 0 : i32
    %c0_i32_0 = arith.constant 0 : i32
    return %arg0, %c0_i32 : i32, i32
  }
  func.func @transform_1(%arg0: i32) -> (i32, i32) {
    %c0_i32 = arith.constant 0 : i32
    %c0_i32_0 = arith.constant 0 : i32
    %c0_i32_1 = arith.constant 0 : i32
    return %c0_i32, %c0_i32_0 : i32, i32
  }
  func.func @transform_2(%arg0: i32) -> (i32, i32) {
    %c0_i32 = arith.constant 0 : i32
    %c0_i32_0 = arith.constant 0 : i32
    %c0_i32_1 = arith.constant 0 : i32
    return %c0_i32, %c0_i32_0 : i32, i32
  }
  func.func @transform_3(%arg0: i32) -> (i32, i32) {
    %c0_i32 = arith.constant 0 : i32
    %c0_i32_0 = arith.constant 0 : i32
    return %arg0, %c0_i32 : i32, i32
  }
}

module attributes {stable_mosaic.version = 11 : i64} {
  func.func @_conv_prelu_kernel(%arg0: i32, %arg1: memref<32x432xbf16, #tpu.memory_space<vmem>>, %arg2: memref<432x128xbf16, #tpu.memory_space<vmem>>, %arg3: memref<2x128xf32, #tpu.memory_space<vmem>>, %arg4: memref<32x128xf32, #tpu.memory_space<vmem>>) attributes {dimension_semantics = [#tpu.dimension_semantics<parallel>], iteration_bounds = array<i64: 1>, scalar_prefetch = 0 : i64, scratch_operands = 0 : i64, tpu.core_type = #tpu.core_type<tc>, window_params = [{transform_indices = @transform_0, window_bounds = array<i64: 32, 432>}, {pipeline_mode = #tpu.pipeline_mode<synchronous>, transform_indices = @transform_1, window_bounds = array<i64: 432, 128>}, {pipeline_mode = #tpu.pipeline_mode<synchronous>, transform_indices = @transform_2, window_bounds = array<i64: 2, 128>}, {transform_indices = @transform_3, window_bounds = array<i64: 32, 128>}]} {
    %c0 = arith.constant 0 : index
    %c0_0 = arith.constant 0 : index
    %0 = vector.load %arg1[%c0, %c0_0] : memref<32x432xbf16, #tpu.memory_space<vmem>>, vector<32x432xbf16>
    %c0_1 = arith.constant 0 : index
    %c0_2 = arith.constant 0 : index
    %1 = vector.load %arg2[%c0_1, %c0_2] : memref<432x128xbf16, #tpu.memory_space<vmem>>, vector<432x128xbf16>
    %cst = arith.constant dense<0.000000e+00> : vector<32x128xf32>
    %2 = tpu.matmul %0, %1, %cst {dimension_numbers = #tpu.dot_dimension_numbers<[1], [0], [0], [1], [0, 0, 1, 1], [], []>} : vector<32x432xbf16>, vector<432x128xbf16>, vector<32x128xf32> -> vector<32x128xf32>
    %c0_3 = arith.constant 0 : index
    %c0_4 = arith.constant 0 : index
    %3 = vector.load %arg3[%c0_3, %c0_4] : memref<2x128xf32, #tpu.memory_space<vmem>>, vector<1x128xf32>
    %4 = vector.broadcast %3 : vector<1x128xf32> to vector<32x128xf32>
    %5 = arith.addf %2, %4 : vector<32x128xf32>
    %c1 = arith.constant 1 : index
    %c0_5 = arith.constant 0 : index
    %6 = vector.load %arg3[%c1, %c0_5] : memref<2x128xf32, #tpu.memory_space<vmem>>, vector<1x128xf32>
    %cst_6 = arith.constant 0.000000e+00 : f32
    %7 = vector.broadcast %cst_6 : f32 to vector<32x128xf32>
    %8 = arith.cmpf ogt, %5, %7 : vector<32x128xf32>
    %9 = vector.broadcast %6 : vector<1x128xf32> to vector<32x128xf32>
    %10 = arith.mulf %9, %5 : vector<32x128xf32>
    %11 = arith.select %8, %5, %10 : vector<32x128xi1>, vector<32x128xf32>
    %c0_7 = arith.constant 0 : index
    %c0_8 = arith.constant 0 : index
    %12 = vector.load %arg4[%c0_7, %c0_8] : memref<32x128xf32, #tpu.memory_space<vmem>>, vector<32x128xf32>
    tpu.vector_store %arg4[%c0_7, %c0_8], %11 {strides = array<i32>} : memref<32x128xf32, #tpu.memory_space<vmem>>, vector<32x128xf32>,
    return
  }
  func.func @transform_0(%arg0: i32) -> (i32, i32) {
    %c0_i32 = arith.constant 0 : i32
    %c0_i32_0 = arith.constant 0 : i32
    return %arg0, %c0_i32 : i32, i32
  }
  func.func @transform_1(%arg0: i32) -> (i32, i32) {
    %c0_i32 = arith.constant 0 : i32
    %c0_i32_0 = arith.constant 0 : i32
    %c0_i32_1 = arith.constant 0 : i32
    return %c0_i32, %c0_i32_0 : i32, i32
  }
  func.func @transform_2(%arg0: i32) -> (i32, i32) {
    %c0_i32 = arith.constant 0 : i32
    %c0_i32_0 = arith.constant 0 : i32
    %c0_i32_1 = arith.constant 0 : i32
    return %c0_i32, %c0_i32_0 : i32, i32
  }
  func.func @transform_3(%arg0: i32) -> (i32, i32) {
    %c0_i32 = arith.constant 0 : i32
    %c0_i32_0 = arith.constant 0 : i32
    return %arg0, %c0_i32 : i32, i32
  }
}

module attributes {stable_mosaic.version = 11 : i64} {
  func.func @_conv_prelu_kernel(%arg0: i32, %arg1: memref<16x432xbf16, #tpu.memory_space<vmem>>, %arg2: memref<432x128xbf16, #tpu.memory_space<vmem>>, %arg3: memref<2x128xf32, #tpu.memory_space<vmem>>, %arg4: memref<16x128xf32, #tpu.memory_space<vmem>>) attributes {dimension_semantics = [#tpu.dimension_semantics<parallel>], iteration_bounds = array<i64: 1>, scalar_prefetch = 0 : i64, scratch_operands = 0 : i64, tpu.core_type = #tpu.core_type<tc>, window_params = [{transform_indices = @transform_0, window_bounds = array<i64: 16, 432>}, {pipeline_mode = #tpu.pipeline_mode<synchronous>, transform_indices = @transform_1, window_bounds = array<i64: 432, 128>}, {pipeline_mode = #tpu.pipeline_mode<synchronous>, transform_indices = @transform_2, window_bounds = array<i64: 2, 128>}, {transform_indices = @transform_3, window_bounds = array<i64: 16, 128>}]} {
    %c0 = arith.constant 0 : index
    %c0_0 = arith.constant 0 : index
    %0 = vector.load %arg1[%c0, %c0_0] : memref<16x432xbf16, #tpu.memory_space<vmem>>, vector<16x432xbf16>
    %c0_1 = arith.constant 0 : index
    %c0_2 = arith.constant 0 : index
    %1 = vector.load %arg2[%c0_1, %c0_2] : memref<432x128xbf16, #tpu.memory_space<vmem>>, vector<432x128xbf16>
    %cst = arith.constant dense<0.000000e+00> : vector<16x128xf32>
    %2 = tpu.matmul %0, %1, %cst {dimension_numbers = #tpu.dot_dimension_numbers<[1], [0], [0], [1], [0, 0, 1, 1], [], []>} : vector<16x432xbf16>, vector<432x128xbf16>, vector<16x128xf32> -> vector<16x128xf32>
    %c0_3 = arith.constant 0 : index
    %c0_4 = arith.constant 0 : index
    %3 = vector.load %arg3[%c0_3, %c0_4] : memref<2x128xf32, #tpu.memory_space<vmem>>, vector<1x128xf32>
    %4 = vector.broadcast %3 : vector<1x128xf32> to vector<16x128xf32>
    %5 = arith.addf %2, %4 : vector<16x128xf32>
    %c1 = arith.constant 1 : index
    %c0_5 = arith.constant 0 : index
    %6 = vector.load %arg3[%c1, %c0_5] : memref<2x128xf32, #tpu.memory_space<vmem>>, vector<1x128xf32>
    %cst_6 = arith.constant 0.000000e+00 : f32
    %7 = vector.broadcast %cst_6 : f32 to vector<16x128xf32>
    %8 = arith.cmpf ogt, %5, %7 : vector<16x128xf32>
    %9 = vector.broadcast %6 : vector<1x128xf32> to vector<16x128xf32>
    %10 = arith.mulf %9, %5 : vector<16x128xf32>
    %11 = arith.select %8, %5, %10 : vector<16x128xi1>, vector<16x128xf32>
    %c0_7 = arith.constant 0 : index
    %c0_8 = arith.constant 0 : index
    %12 = vector.load %arg4[%c0_7, %c0_8] : memref<16x128xf32, #tpu.memory_space<vmem>>, vector<16x128xf32>
    tpu.vector_store %arg4[%c0_7, %c0_8], %11 {strides = array<i32>} : memref<16x128xf32, #tpu.memory_space<vmem>>, vector<16x128xf32>,
    return
  }
  func.func @transform_0(%arg0: i32) -> (i32, i32) {
    %c0_i32 = arith.constant 0 : i32
    %c0_i32_0 = arith.constant 0 : i32
    return %arg0, %c0_i32 : i32, i32
  }
  func.func @transform_1(%arg0: i32) -> (i32, i32) {
    %c0_i32 = arith.constant 0 : i32
    %c0_i32_0 = arith.constant 0 : i32
    %c0_i32_1 = arith.constant 0 : i32
    return %c0_i32, %c0_i32_0 : i32, i32
  }
  func.func @transform_2(%arg0: i32) -> (i32, i32) {
    %c0_i32 = arith.constant 0 : i32
    %c0_i32_0 = arith.constant 0 : i32
    %c0_i32_1 = arith.constant 0 : i32
    return %c0_i32, %c0_i32_0 : i32, i32
  }
  func.func @transform_3(%arg0: i32) -> (i32, i32) {
    %c0_i32 = arith.constant 0 : i32
    %c0_i32_0 = arith.constant 0 : i32
    return %arg0, %c0_i32 : i32, i32
  }
}

module attributes {stable_mosaic.version = 11 : i64} {
  func.func @_conv_prelu_kernel(%arg0: i32, %arg1: memref<16x648xbf16, #tpu.memory_space<vmem>>, %arg2: memref<648x128xbf16, #tpu.memory_space<vmem>>, %arg3: memref<2x128xf32, #tpu.memory_space<vmem>>, %arg4: memref<16x128xf32, #tpu.memory_space<vmem>>) attributes {dimension_semantics = [#tpu.dimension_semantics<parallel>], iteration_bounds = array<i64: 1>, scalar_prefetch = 0 : i64, scratch_operands = 0 : i64, tpu.core_type = #tpu.core_type<tc>, window_params = [{transform_indices = @transform_0, window_bounds = array<i64: 16, 648>}, {pipeline_mode = #tpu.pipeline_mode<synchronous>, transform_indices = @transform_1, window_bounds = array<i64: 648, 128>}, {pipeline_mode = #tpu.pipeline_mode<synchronous>, transform_indices = @transform_2, window_bounds = array<i64: 2, 128>}, {transform_indices = @transform_3, window_bounds = array<i64: 16, 128>}]} {
    %c0 = arith.constant 0 : index
    %c0_0 = arith.constant 0 : index
    %0 = vector.load %arg1[%c0, %c0_0] : memref<16x648xbf16, #tpu.memory_space<vmem>>, vector<16x648xbf16>
    %c0_1 = arith.constant 0 : index
    %c0_2 = arith.constant 0 : index
    %1 = vector.load %arg2[%c0_1, %c0_2] : memref<648x128xbf16, #tpu.memory_space<vmem>>, vector<648x128xbf16>
    %cst = arith.constant dense<0.000000e+00> : vector<16x128xf32>
    %2 = tpu.matmul %0, %1, %cst {dimension_numbers = #tpu.dot_dimension_numbers<[1], [0], [0], [1], [0, 0, 1, 1], [], []>} : vector<16x648xbf16>, vector<648x128xbf16>, vector<16x128xf32> -> vector<16x128xf32>
    %c0_3 = arith.constant 0 : index
    %c0_4 = arith.constant 0 : index
    %3 = vector.load %arg3[%c0_3, %c0_4] : memref<2x128xf32, #tpu.memory_space<vmem>>, vector<1x128xf32>
    %4 = vector.broadcast %3 : vector<1x128xf32> to vector<16x128xf32>
    %5 = arith.addf %2, %4 : vector<16x128xf32>
    %c1 = arith.constant 1 : index
    %c0_5 = arith.constant 0 : index
    %6 = vector.load %arg3[%c1, %c0_5] : memref<2x128xf32, #tpu.memory_space<vmem>>, vector<1x128xf32>
    %cst_6 = arith.constant 0.000000e+00 : f32
    %7 = vector.broadcast %cst_6 : f32 to vector<16x128xf32>
    %8 = arith.cmpf ogt, %5, %7 : vector<16x128xf32>
    %9 = vector.broadcast %6 : vector<1x128xf32> to vector<16x128xf32>
    %10 = arith.mulf %9, %5 : vector<16x128xf32>
    %11 = arith.select %8, %5, %10 : vector<16x128xi1>, vector<16x128xf32>
    %c0_7 = arith.constant 0 : index
    %c0_8 = arith.constant 0 : index
    %12 = vector.load %arg4[%c0_7, %c0_8] : memref<16x128xf32, #tpu.memory_space<vmem>>, vector<16x128xf32>
    tpu.vector_store %arg4[%c0_7, %c0_8], %11 {strides = array<i32>} : memref<16x128xf32, #tpu.memory_space<vmem>>, vector<16x128xf32>,
    return
  }
  func.func @transform_0(%arg0: i32) -> (i32, i32) {
    %c0_i32 = arith.constant 0 : i32
    %c0_i32_0 = arith.constant 0 : i32
    return %arg0, %c0_i32 : i32, i32
  }
  func.func @transform_1(%arg0: i32) -> (i32, i32) {
    %c0_i32 = arith.constant 0 : i32
    %c0_i32_0 = arith.constant 0 : i32
    %c0_i32_1 = arith.constant 0 : i32
    return %c0_i32, %c0_i32_0 : i32, i32
  }
  func.func @transform_2(%arg0: i32) -> (i32, i32) {
    %c0_i32 = arith.constant 0 : i32
    %c0_i32_0 = arith.constant 0 : i32
    %c0_i32_1 = arith.constant 0 : i32
    return %c0_i32, %c0_i32_0 : i32, i32
  }
  func.func @transform_3(%arg0: i32) -> (i32, i32) {
    %c0_i32 = arith.constant 0 : i32
    %c0_i32_0 = arith.constant 0 : i32
    return %arg0, %c0_i32 : i32, i32
  }
}

module attributes {stable_mosaic.version = 11 : i64} {
  func.func @_conv_prelu_kernel(%arg0: i32, %arg1: memref<16x864xbf16, #tpu.memory_space<vmem>>, %arg2: memref<864x128xbf16, #tpu.memory_space<vmem>>, %arg3: memref<2x128xf32, #tpu.memory_space<vmem>>, %arg4: memref<16x128xf32, #tpu.memory_space<vmem>>) attributes {dimension_semantics = [#tpu.dimension_semantics<parallel>], iteration_bounds = array<i64: 1>, scalar_prefetch = 0 : i64, scratch_operands = 0 : i64, tpu.core_type = #tpu.core_type<tc>, window_params = [{transform_indices = @transform_0, window_bounds = array<i64: 16, 864>}, {pipeline_mode = #tpu.pipeline_mode<synchronous>, transform_indices = @transform_1, window_bounds = array<i64: 864, 128>}, {pipeline_mode = #tpu.pipeline_mode<synchronous>, transform_indices = @transform_2, window_bounds = array<i64: 2, 128>}, {transform_indices = @transform_3, window_bounds = array<i64: 16, 128>}]} {
    %c0 = arith.constant 0 : index
    %c0_0 = arith.constant 0 : index
    %0 = vector.load %arg1[%c0, %c0_0] : memref<16x864xbf16, #tpu.memory_space<vmem>>, vector<16x864xbf16>
    %c0_1 = arith.constant 0 : index
    %c0_2 = arith.constant 0 : index
    %1 = vector.load %arg2[%c0_1, %c0_2] : memref<864x128xbf16, #tpu.memory_space<vmem>>, vector<864x128xbf16>
    %cst = arith.constant dense<0.000000e+00> : vector<16x128xf32>
    %2 = tpu.matmul %0, %1, %cst {dimension_numbers = #tpu.dot_dimension_numbers<[1], [0], [0], [1], [0, 0, 1, 1], [], []>} : vector<16x864xbf16>, vector<864x128xbf16>, vector<16x128xf32> -> vector<16x128xf32>
    %c0_3 = arith.constant 0 : index
    %c0_4 = arith.constant 0 : index
    %3 = vector.load %arg3[%c0_3, %c0_4] : memref<2x128xf32, #tpu.memory_space<vmem>>, vector<1x128xf32>
    %4 = vector.broadcast %3 : vector<1x128xf32> to vector<16x128xf32>
    %5 = arith.addf %2, %4 : vector<16x128xf32>
    %c1 = arith.constant 1 : index
    %c0_5 = arith.constant 0 : index
    %6 = vector.load %arg3[%c1, %c0_5] : memref<2x128xf32, #tpu.memory_space<vmem>>, vector<1x128xf32>
    %cst_6 = arith.constant 0.000000e+00 : f32
    %7 = vector.broadcast %cst_6 : f32 to vector<16x128xf32>
    %8 = arith.cmpf ogt, %5, %7 : vector<16x128xf32>
    %9 = vector.broadcast %6 : vector<1x128xf32> to vector<16x128xf32>
    %10 = arith.mulf %9, %5 : vector<16x128xf32>
    %11 = arith.select %8, %5, %10 : vector<16x128xi1>, vector<16x128xf32>
    %c0_7 = arith.constant 0 : index
    %c0_8 = arith.constant 0 : index
    %12 = vector.load %arg4[%c0_7, %c0_8] : memref<16x128xf32, #tpu.memory_space<vmem>>, vector<16x128xf32>
    tpu.vector_store %arg4[%c0_7, %c0_8], %11 {strides = array<i32>} : memref<16x128xf32, #tpu.memory_space<vmem>>, vector<16x128xf32>,
    return
  }
  func.func @transform_0(%arg0: i32) -> (i32, i32) {
    %c0_i32 = arith.constant 0 : i32
    %c0_i32_0 = arith.constant 0 : i32
    return %arg0, %c0_i32 : i32, i32
  }
  func.func @transform_1(%arg0: i32) -> (i32, i32) {
    %c0_i32 = arith.constant 0 : i32
    %c0_i32_0 = arith.constant 0 : i32
    %c0_i32_1 = arith.constant 0 : i32
    return %c0_i32, %c0_i32_0 : i32, i32
  }
  func.func @transform_2(%arg0: i32) -> (i32, i32) {
    %c0_i32 = arith.constant 0 : i32
    %c0_i32_0 = arith.constant 0 : i32
    %c0_i32_1 = arith.constant 0 : i32
    return %c0_i32, %c0_i32_0 : i32, i32
  }
  func.func @transform_3(%arg0: i32) -> (i32, i32) {
    %c0_i32 = arith.constant 0 : i32
    %c0_i32_0 = arith.constant 0 : i32
    return %arg0, %c0_i32 : i32, i32
  }
}

</mosaic_0001>

<llo_original>
// kernel: encoder_forward.8
$region0: #{encoder_forward.8}
  #allocation0 [shape = 'u32[]', space=smem, size = 0x4, offset = 0x4, fixed_abs, tag = 'smem constant byte address 0x4 - core index']
  #allocation1 [shape = 'u32[144,128]{1,0:T(1,128)}', space=vmem, size = 0x12000, scoped, tag = 'internal scratch']
  %s0 = inlined_call_operand.vmem [shape: bf16[128,32], index: 0, kind: input, shape index: {}]
  %s1 = inlined_call_operand.vmem [shape: bf16[32,128], index: 1, kind: input, shape index: {}]
  %s2 = inlined_call_operand.vmem [shape: f32[2,128], index: 2, kind: input, shape index: {}]
  %s3 = inlined_call_operand.vmem [shape: f32[128,128], index: 3, kind: output, shape index: {}]
  %s4 = sld [smem:[#allocation0]]
  $region22: #{encoder_forward.8} parent=0
    _
  %s6 = ssub.s32 1, %s4
  %s7 = scalar_select 0, %s6, %s4
  // Predicated region
  $region2: #{encoder_forward.8} parent=0 // pred_check
    _
  $region3: #{encoder_forward.8} parent=0 // pred_check_branch
    %9 = sbr.rel (0) target = $region5
  $region4: #{encoder_forward.8} parent=0 // pred_region
    _
  $region5: #{encoder_forward.8} parent=0 // pred_fallthru
    _
  // Predicated region
  $region6: #{encoder_forward.8} parent=0 // pred_check
    _
  $region7: #{encoder_forward.8} parent=0 // pred_check_branch
    %11 = sbr.rel (0) target = $region9
  $region8: #{encoder_forward.8} parent=0 // pred_region
    _
  $region9: #{encoder_forward.8} parent=0 // pred_fallthru
    _
  // Predicated region
  $region10: #{encoder_forward.8} parent=0 // pred_check
    _
  $region11: #{encoder_forward.8} parent=0 // pred_check_branch
    %13 = sbr.rel (0) target = $region13
  $region12: #{encoder_forward.8} parent=0 // pred_region
    _
  $region13: #{encoder_forward.8} parent=0 // pred_fallthru
    _
  %v15 = vld [vmem:[%s0] sm:$0xf]
  %v16 = vld [vmem:[%s0 + $0x4] sm:$0xf]
  %v17 = vld [vmem:[%s0 + $0x8] sm:$0xf]
  %v18 = vld [vmem:[%s0 + $0xc] sm:$0xf]
  %v19 = vld [vmem:[%s0 + $0x10] sm:$0xf]
  %v20 = vld [vmem:[%s0 + $0x14] sm:$0xf]
  %v21 = vld [vmem:[%s0 + $0x18] sm:$0xf]
  %v22 = vld [vmem:[%s0 + $0x1c] sm:$0xf]
  %v23 = vld [vmem:[%s0 + $0x20] sm:$0xf]
  %v24 = vld [vmem:[%s0 + $0x24] sm:$0xf]
  %v25 = vld [vmem:[%s0 + $0x28] sm:$0xf]
  %v26 = vld [vmem:[%s0 + $0x2c] sm:$0xf]
  %v27 = vld [vmem:[%s0 + $0x30] sm:$0xf]
  %v28 = vld [vmem:[%s0 + $0x34] sm:$0xf]
  %v29 = vld [vmem:[%s0 + $0x38] sm:$0xf]
  %v30 = vld [vmem:[%s0 + $0x3c] sm:$0xf]
  %v31 = vld [vmem:[%s1] sm:$0xf]
  %v32 = vld [vmem:[%s1 + $0x4] sm:$0xf]
  %v33 = vld [vmem:[%s1 + $0x8] sm:$0xf]
  %v34 = vld [vmem:[%s1 + $0xc] sm:$0xf]
  %v35 = vld [vmem:[%s2] sm:$0x1]
  %v36 = vlaneseq
  %v37 = vshrl.u32 %v36, 7
  %v38 = vsub.s32 0, %v37
  %v39 = vrot.slane %v35, %v38
  %v56 = vunpack.c.l.b16 %v15
  %v57 = vunpack.c.l.b16 %v16
  %v58 = vunpack.c.l.b16 %v17
  %v59 = vunpack.c.l.b16 %v18
  %v60 = vunpack.c.l.b16 %v19
  %v61 = vunpack.c.l.b16 %v20
  %v62 = vunpack.c.l.b16 %v21
  %v63 = vunpack.c.l.b16 %v22
  %v64 = vunpack.c.l.b16 %v23
  %v65 = vunpack.c.l.b16 %v24
  %v66 = vunpack.c.l.b16 %v25
  %v67 = vunpack.c.l.b16 %v26
  %v68 = vunpack.c.l.b16 %v27
  %v69 = vunpack.c.l.b16 %v28
  %v70 = vunpack.c.l.b16 %v29
  %v71 = vunpack.c.l.b16 %v30
  %v72 = vpack.c.b16 %v57, %v56
  %v73 = vpack.c.b16 %v59, %v58
  %v74 = vpack.c.b16 %v61, %v60
  %v75 = vpack.c.b16 %v63, %v62
  %v76 = vpack.c.b16 %v65, %v64
  %v77 = vpack.c.b16 %v67, %v66
  %v78 = vpack.c.b16 %v69, %v68
  %v79 = vpack.c.b16 %v71, %v70
  %v84 = vunpack.c.l.b16 %v31
  %v85 = vunpack.c.l.b16 %v32
  %v86 = vunpack.c.l.b16 %v33
  %v87 = vunpack.c.l.b16 %v34
  %v88 = vpack.c.b16 %v85, %v84
  %v89 = vpack.c.b16 %v87, %v86
  %vm92 = vcmask 261120
  %v94 = vsel %vm92, %v72, 0
  %v97 = vsel %vm92, %v73, 0
  %v100 = vsel %vm92, %v74, 0
  %v103 = vsel %vm92, %v75, 0
  %v106 = vsel %vm92, %v76, 0
  %v109 = vsel %vm92, %v77, 0
  %v112 = vsel %vm92, %v78, 0
  %v115 = vsel %vm92, %v79, 0
  %117 = vmatprep.subr.bf16.mxu0 0
  %118 = vmatpush1.bf16.msra.mxu0 0
  %119 = vmatprep.subr.bf16.mxu0 0
  %120 = vmatpush1.bf16.msra.mxu0 0
  %121 = vmatprep.subr.bf16.mxu0 0
  %122 = vmatpush1.bf16.msra.mxu0 0
  %123 = vmatprep.subr.bf16.mxu0 0
  %124 = vmatpush1.bf16.msra.mxu0 0
  %125 = vmatprep.subr.bf16.mxu0 0
  %126 = vmatpush1.bf16.msra.mxu0 0
  %127 = vmatprep.subr.bf16.mxu0 0
  %128 = vmatpush1.bf16.msra.mxu0 0
  %129 = vmatprep.subr.bf16.mxu0 0
  %130 = vmatpush1.bf16.msra.mxu0 %v89
  %131 = vmatprep.subr.bf16.mxu0 0
  %132 = vmatpush1.bf16.msra.mxu0 %v88
  %133 = vmatprep.subr.bf16.mxu0 0
  %134 = vmatpush2.bf16.msra.mxu0 0
  %135 = vmatprep.subr.bf16.mxu0 0
  %136 = vmatpush2.bf16.msra.mxu0 0
  %137 = vmatprep.subr.bf16.mxu0 0
  %138 = vmatpush2.bf16.msra.mxu0 0
  %139 = vmatprep.subr.bf16.mxu0 0
  %140 = vmatpush2.bf16.msra.mxu0 0
  %141 = vmatprep.subr.bf16.mxu0 0
  %142 = vmatpush2.bf16.msra.mxu0 0
  %143 = vmatprep.subr.bf16.mxu0 0
  %144 = vmatpush2.bf16.msra.mxu0 0
  %145 = vmatprep.subr.bf16.mxu0 0
  %146 = vmatpush2.bf16.msra.mxu0 0
  %147 = vmatprep.subr.bf16.mxu0 0
  %148 = vmatpush2.bf16.msra.mxu0 0
  %149 = vmatprep.mubr.bf16.mxu0 0
  %150 = vmatmul.mubr.bf16.gmra.mxu0 %v94
  %v151 = vpop.f32.mrf.mxu0
  %v152 = vadd.f32 %v39, %v151
  %v153 = vpop.f32.mrf.mxu0
  %v154 = vpop.f32.mrf.mxu0
  %v155 = vadd.f32 %v39, %v154
  %v156 = vpop.f32.mrf.mxu0
  %157 = vmatprep.mubr.bf16.mxu0 0
  %158 = vmatmul.mubr.bf16.gmra.mxu0 %v97
  %v159 = vpop.f32.mrf.mxu0
  %v160 = vadd.f32 %v39, %v159
  %v161 = vpop.f32.mrf.mxu0
  %v162 = vpop.f32.mrf.mxu0
  %v163 = vadd.f32 %v39, %v162
  %v164 = vpop.f32.mrf.mxu0
  %165 = vmatprep.mubr.bf16.mxu0 0
  %166 = vmatmul.mubr.bf16.gmra.mxu0 %v100
  %v167 = vpop.f32.mrf.mxu0
  %v168 = vadd.f32 %v39, %v167
  %v169 = vpop.f32.mrf.mxu0
  %v170 = vpop.f32.mrf.mxu0
  %v171 = vadd.f32 %v39, %v170
  %v172 = vpop.f32.mrf.mxu0
  %173 = vmatprep.mubr.bf16.mxu0 0
  %174 = vmatmul.mubr.bf16.gmra.mxu0 %v103
  %v175 = vpop.f32.mrf.mxu0
  %v176 = vadd.f32 %v39, %v175
  %v177 = vpop.f32.mrf.mxu0
  %v178 = vpop.f32.mrf.mxu0
  %v179 = vadd.f32 %v39, %v178
  %v180 = vpop.f32.mrf.mxu0
  %181 = vmatprep.mubr.bf16.mxu0 0
  %182 = vmatmul.mubr.bf16.gmra.mxu0 %v106
  %v183 = vpop.f32.mrf.mxu0
  %v184 = vadd.f32 %v39, %v183
  %v185 = vpop.f32.mrf.mxu0
  %v186 = vpop.f32.mrf.mxu0
  %v187 = vadd.f32 %v39, %v186
  %v188 = vpop.f32.mrf.mxu0
  %189 = vmatprep.mubr.bf16.mxu0 0
  %190 = vmatmul.mubr.bf16.gmra.mxu0 %v109
  %v191 = vpop.f32.mrf.mxu0
  %v192 = vadd.f32 %v39, %v191
  %v193 = vpop.f32.mrf.mxu0
  %v194 = vpop.f32.mrf.mxu0
  %v195 = vadd.f32 %v39, %v194
  %v196 = vpop.f32.mrf.mxu0
  %197 = vmatprep.mubr.bf16.mxu0 0
  %198 = vmatmul.mubr.bf16.gmra.mxu0 %v112
  %v199 = vpop.f32.mrf.mxu0
  %v200 = vadd.f32 %v39, %v199
  %v201 = vpop.f32.mrf.mxu0
  %v202 = vpop.f32.mrf.mxu0
  %v203 = vadd.f32 %v39, %v202
  %v204 = vpop.f32.mrf.mxu0
  %205 = vmatprep.mubr.bf16.mxu0 0
  %206 = vmatmul.mubr.bf16.gmra.mxu0 %v115
  %v207 = vpop.f32.mrf.mxu0
  %v208 = vadd.f32 %v39, %v207
  %v209 = vpop.f32.mrf.mxu0
  %v210 = vpop.f32.mrf.mxu0
  %v211 = vadd.f32 %v39, %v210
  %v212 = vpop.f32.mrf.mxu0
  %213 = vdwg.mxu0
  %v214 = vld [vmem:[%s2 + $0x1] sm:$0x1]
  %vm215 = vcmp.gt.f32.partialorder %v152, 0.0
  %vm216 = vcmp.gt.f32.partialorder %v155, 0.0
  %vm217 = vcmp.gt.f32.partialorder %v160, 0.0
  %vm218 = vcmp.gt.f32.partialorder %v163, 0.0
  %vm219 = vcmp.gt.f32.partialorder %v168, 0.0
  %vm220 = vcmp.gt.f32.partialorder %v171, 0.0
  %vm221 = vcmp.gt.f32.partialorder %v176, 0.0
  %vm222 = vcmp.gt.f32.partialorder %v179, 0.0
  %vm223 = vcmp.gt.f32.partialorder %v184, 0.0
  %vm224 = vcmp.gt.f32.partialorder %v187, 0.0
  %vm225 = vcmp.gt.f32.partialorder %v192, 0.0
  %vm226 = vcmp.gt.f32.partialorder %v195, 0.0
  %vm227 = vcmp.gt.f32.partialorder %v200, 0.0
  %vm228 = vcmp.gt.f32.partialorder %v203, 0.0
  %vm229 = vcmp.gt.f32.partialorder %v208, 0.0
  %vm230 = vcmp.gt.f32.partialorder %v211, 0.0
  %v231 = vlaneseq
  %v232 = vshrl.u32 %v231, 7
  %v233 = vsub.s32 0, %v232
  %v234 = vrot.slane %v214, %v233
  %v235 = vmul.f32 %v234, %v152
  %v236 = vmul.f32 %v234, %v155
  %v237 = vmul.f32 %v234, %v160
  %v238 = vmul.f32 %v234, %v163
  %v239 = vmul.f32 %v234, %v168
  %v240 = vmul.f32 %v234, %v171
  %v241 = vmul.f32 %v234, %v176
  %v242 = vmul.f32 %v234, %v179
  %v243 = vmul.f32 %v234, %v184
  %v244 = vmul.f32 %v234, %v187
  %v245 = vmul.f32 %v234, %v192
  %v246 = vmul.f32 %v234, %v195
  %v247 = vmul.f32 %v234, %v200
  %v248 = vmul.f32 %v234, %v203
  %v249 = vmul.f32 %v234, %v208
  %v250 = vmul.f32 %v234, %v211
  %v251 = vsel %vm215, %v152, %v235
  %v252 = vsel %vm216, %v155, %v236
  %v253 = vsel %vm217, %v160, %v237
  %v254 = vsel %vm218, %v163, %v238
  %v255 = vsel %vm219, %v168, %v239
  %v256 = vsel %vm220, %v171, %v240
  %v257 = vsel %vm221, %v176, %v241
  %v258 = vsel %vm222, %v179, %v242
  %v259 = vsel %vm223, %v184, %v243
  %v260 = vsel %vm224, %v187, %v244
  %v261 = vsel %vm225, %v192, %v245
  %v262 = vsel %vm226, %v195, %v246
  %v263 = vsel %vm227, %v200, %v247
  %v264 = vsel %vm228, %v203, %v248
  %v265 = vsel %vm229, %v208, %v249
  %v266 = vsel %vm230, %v211, %v250
  %267 = vst [vmem:[%s3] sm:$0xff] %v251
  %268 = vst [vmem:[%s3 + $0x8] sm:$0xff] %v252
  %269 = vst [vmem:[%s3 + $0x10] sm:$0xff] %v253
  %270 = vst [vmem:[%s3 + $0x18] sm:$0xff] %v254
  %271 = vst [vmem:[%s3 + $0x20] sm:$0xff] %v255
  %272 = vst [vmem:[%s3 + $0x28] sm:$0xff] %v256
  %273 = vst [vmem:[%s3 + $0x30] sm:$0xff] %v257
  %274 = vst [vmem:[%s3 + $0x38] sm:$0xff] %v258
  %275 = vst [vmem:[%s3 + $0x40] sm:$0xff] %v259
  %276 = vst [vmem:[%s3 + $0x48] sm:$0xff] %v260
  %277 = vst [vmem:[%s3 + $0x50] sm:$0xff] %v261
  %278 = vst [vmem:[%s3 + $0x58] sm:$0xff] %v262
  %279 = vst [vmem:[%s3 + $0x60] sm:$0xff] %v263
  %280 = vst [vmem:[%s3 + $0x68] sm:$0xff] %v264
  %281 = vst [vmem:[%s3 + $0x70] sm:$0xff] %v265
  %282 = vst [vmem:[%s3 + $0x78] sm:$0xff] %v266
  // Predicated region
  $region14: #{encoder_forward.8} parent=0 // pred_check
    _
  $region15: #{encoder_forward.8} parent=0 // pred_check_branch
    %284 = sbr.rel (0) target = $region17
  $region16: #{encoder_forward.8} parent=0 // pred_region
    _
  $region17: #{encoder_forward.8} parent=0 // pred_fallthru
    _
  // Predicated region
  $region18: #{encoder_forward.8} parent=0 // pred_check
    _
  $region19: #{encoder_forward.8} parent=0 // pred_check_branch
    %286 = sbr.rel (0) target = $region21
  $region20: #{encoder_forward.8} parent=0 // pred_region
    _
  $region21: #{encoder_forward.8} parent=0 // pred_fallthru
    _

// kernel: encoder_forward.9
$region0: #{encoder_forward.9}
  #allocation0 [shape = 'u32[]', space=smem, size = 0x4, offset = 0x4, fixed_abs, tag = 'smem constant byte address 0x4 - core index']
  #allocation1 [shape = 'u32[144,128]{1,0:T(1,128)}', space=vmem, size = 0x12000, scoped, tag = 'internal scratch']
  %s0 = inlined_call_operand.vmem [shape: bf16[128,288], index: 0, kind: input, shape index: {}]
  %s1 = inlined_call_operand.vmem [shape: bf16[288,128], index: 1, kind: input, shape index: {}]
  %s2 = inlined_call_operand.vmem [shape: f32[2,128], index: 2, kind: input, shape index: {}]
  %s3 = inlined_call_operand.vmem [shape: f32[128,128], index: 3, kind: output, shape index: {}]
  %s4 = sld [smem:[#allocation0]]
  $region22: #{encoder_forward.9} parent=0
    _
  %s6 = ssub.s32 1, %s4
  %s7 = scalar_select 0, %s6, %s4
  // Predicated region
  $region2: #{encoder_forward.9} parent=0 // pred_check
    _
  $region3: #{encoder_forward.9} parent=0 // pred_check_branch
    %9 = sbr.rel (0) target = $region5
  $region4: #{encoder_forward.9} parent=0 // pred_region
    _
  $region5: #{encoder_forward.9} parent=0 // pred_fallthru
    _
  // Predicated region
  $region6: #{encoder_forward.9} parent=0 // pred_check
    _
  $region7: #{encoder_forward.9} parent=0 // pred_check_branch
    %11 = sbr.rel (0) target = $region9
  $region8: #{encoder_forward.9} parent=0 // pred_region
    _
  $region9: #{encoder_forward.9} parent=0 // pred_fallthru
    _
  // Predicated region
  $region10: #{encoder_forward.9} parent=0 // pred_check
    _
  $region11: #{encoder_forward.9} parent=0 // pred_check_branch
    %13 = sbr.rel (0) target = $region13
  $region12: #{encoder_forward.9} parent=0 // pred_region
    _
  $region13: #{encoder_forward.9} parent=0 // pred_fallthru
    _
  %v15 = vld [vmem:[%s0] sm:$0xff]
  %v16 = vld [vmem:[%s0 + $0x8] sm:$0xf]
  %v17 = vld [vmem:[%s0 + $0xc] sm:$0xff]
  %v18 = vld [vmem:[%s0 + $0x14] sm:$0xf]
  %v19 = vld [vmem:[%s0 + $0x18] sm:$0xff]
  %v20 = vld [vmem:[%s0 + $0x20] sm:$0xf]
  %v21 = vld [vmem:[%s0 + $0x24] sm:$0xff]
  %v22 = vld [vmem:[%s0 + $0x2c] sm:$0xf]
  %v23 = vld [vmem:[%s0 + $0x30] sm:$0xff]
  %v24 = vld [vmem:[%s0 + $0x38] sm:$0xf]
  %v25 = vld [vmem:[%s0 + $0x3c] sm:$0xff]
  %v26 = vld [vmem:[%s0 + $0x44] sm:$0xf]
  %v27 = vld [vmem:[%s0 + $0x48] sm:$0xff]
  %v28 = vld [vmem:[%s0 + $0x50] sm:$0xf]
  %v29 = vld [vmem:[%s0 + $0x54] sm:$0xff]
  %v30 = vld [vmem:[%s0 + $0x5c] sm:$0xf]
  %v31 = vld [vmem:[%s0 + $0x60] sm:$0xff]
  %v32 = vld [vmem:[%s0 + $0x68] sm:$0xf]
  %v33 = vld [vmem:[%s0 + $0x6c] sm:$0xff]
  %v34 = vld [vmem:[%s0 + $0x74] sm:$0xf]
  %v35 = vld [vmem:[%s0 + $0x78] sm:$0xff]
  %v36 = vld [vmem:[%s0 + $0x80] sm:$0xf]
  %v37 = vld [vmem:[%s0 + $0x84] sm:$0xff]
  %v38 = vld [vmem:[%s0 + $0x8c] sm:$0xf]
  %v39 = vld [vmem:[%s0 + $0x90] sm:$0xff]
  %v40 = vld [vmem:[%s0 + $0x98] sm:$0xf]
  %v41 = vld [vmem:[%s0 + $0x9c] sm:$0xff]
  %v42 = vld [vmem:[%s0 + $0xa4] sm:$0xf]
  %v43 = vld [vmem:[%s0 + $0xa8] sm:$0xff]
  %v44 = vld [vmem:[%s0 + $0xb0] sm:$0xf]
  %v45 = vld [vmem:[%s0 + $0xb4] sm:$0xff]
  %v46 = vld [vmem:[%s0 + $0xbc] sm:$0xf]
  %v47 = vld [vmem:[%s1] sm:$0xf]
  %v48 = vld [vmem:[%s1 + $0x4] sm:$0xf]
  %v49 = vld [vmem:[%s1 + $0x8] sm:$0xf]
  %v50 = vld [vmem:[%s1 + $0xc] sm:$0xf]
  %v51 = vld [vmem:[%s1 + $0x10] sm:$0xf]
  %v52 = vld [vmem:[%s1 + $0x14] sm:$0xf]
  %v53 = vld [vmem:[%s1 + $0x18] sm:$0xf]
  %v54 = vld [vmem:[%s1 + $0x1c] sm:$0xf]
  %v55 = vld [vmem:[%s1 + $0x20] sm:$0xf]
  %v56 = vld [vmem:[%s1 + $0x24] sm:$0xf]
  %v57 = vld [vmem:[%s1 + $0x28] sm:$0xf]
  %v58 = vld [vmem:[%s1 + $0x2c] sm:$0xf]
  %v59 = vld [vmem:[%s1 + $0x30] sm:$0xf]
  %v60 = vld [vmem:[%s1 + $0x34] sm:$0xf]
  %v61 = vld [vmem:[%s1 + $0x38] sm:$0xf]
  %v62 = vld [vmem:[%s1 + $0x3c] sm:$0xf]
  %v63 = vld [vmem:[%s1 + $0x40] sm:$0xf]
  %v64 = vld [vmem:[%s1 + $0x44] sm:$0xf]
  %v65 = vld [vmem:[%s1 + $0x48] sm:$0xf]
  %v66 = vld [vmem:[%s1 + $0x4c] sm:$0xf]
  %v67 = vld [vmem:[%s1 + $0x50] sm:$0xf]
  %v68 = vld [vmem:[%s1 + $0x54] sm:$0xf]
  %v69 = vld [vmem:[%s1 + $0x58] sm:$0xf]
  %v70 = vld [vmem:[%s1 + $0x5c] sm:$0xf]
  %v71 = vld [vmem:[%s1 + $0x60] sm:$0xf]
  %v72 = vld [vmem:[%s1 + $0x64] sm:$0xf]
  %v73 = vld [vmem:[%s1 + $0x68] sm:$0xf]
  %v74 = vld [vmem:[%s1 + $0x6c] sm:$0xf]
  %v75 = vld [vmem:[%s1 + $0x70] sm:$0xf]
  %v76 = vld [vmem:[%s1 + $0x74] sm:$0xf]
  %v77 = vld [vmem:[%s1 + $0x78] sm:$0xf]
  %v78 = vld [vmem:[%s1 + $0x7c] sm:$0xf]
  %v79 = vld [vmem:[%s1 + $0x80] sm:$0xf]
  %v80 = vld [vmem:[%s1 + $0x84] sm:$0xf]
  %v81 = vld [vmem:[%s1 + $0x88] sm:$0xf]
  %v82 = vld [vmem:[%s1 + $0x8c] sm:$0xf]
  %v83 = vld [vmem:[%s2] sm:$0x1]
  %v84 = vlaneseq
  %v85 = vshrl.u32 %v84, 7
  %v86 = vsub.s32 0, %v85
  %v87 = vrot.slane %v83, %v86
  %v120 = vunpack.c.l.b16 %v15
  %v121 = vunpack.c.h.b16 %v15
  %v122 = vunpack.c.l.b16 %v16
  %v123 = vunpack.c.l.b16 %v17
  %v124 = vunpack.c.h.b16 %v17
  %v125 = vunpack.c.l.b16 %v18
  %v126 = vunpack.c.l.b16 %v19
  %v127 = vunpack.c.h.b16 %v19
  %v128 = vunpack.c.l.b16 %v20
  %v129 = vunpack.c.l.b16 %v21
  %v130 = vunpack.c.h.b16 %v21
  %v131 = vunpack.c.l.b16 %v22
  %v132 = vunpack.c.l.b16 %v23
  %v133 = vunpack.c.h.b16 %v23
  %v134 = vunpack.c.l.b16 %v24
  %v135 = vunpack.c.l.b16 %v25
  %v136 = vunpack.c.h.b16 %v25
  %v137 = vunpack.c.l.b16 %v26
  %v138 = vunpack.c.l.b16 %v27
  %v139 = vunpack.c.h.b16 %v27
  %v140 = vunpack.c.l.b16 %v28
  %v141 = vunpack.c.l.b16 %v29
  %v142 = vunpack.c.h.b16 %v29
  %v143 = vunpack.c.l.b16 %v30
  %v144 = vunpack.c.l.b16 %v31
  %v145 = vunpack.c.h.b16 %v31
  %v146 = vunpack.c.l.b16 %v32
  %v147 = vunpack.c.l.b16 %v33
  %v148 = vunpack.c.h.b16 %v33
  %v149 = vunpack.c.l.b16 %v34
  %v150 = vunpack.c.l.b16 %v35
  %v151 = vunpack.c.h.b16 %v35
  %v152 = vunpack.c.l.b16 %v36
  %v153 = vunpack.c.l.b16 %v37
  %v154 = vunpack.c.h.b16 %v37
  %v155 = vunpack.c.l.b16 %v38
  %v156 = vunpack.c.l.b16 %v39
  %v157 = vunpack.c.h.b16 %v39
  %v158 = vunpack.c.l.b16 %v40
  %v159 = vunpack.c.l.b16 %v41
  %v160 = vunpack.c.h.b16 %v41
  %v161 = vunpack.c.l.b16 %v42
  %v162 = vunpack.c.l.b16 %v43
  %v163 = vunpack.c.h.b16 %v43
  %v164 = vunpack.c.l.b16 %v44
  %v165 = vunpack.c.l.b16 %v45
  %v166 = vunpack.c.h.b16 %v45
  %v167 = vunpack.c.l.b16 %v46
  %v168 = vpack.c.b16 %v123, %v120
  %v169 = vpack.c.b16 %v124, %v121
  %v170 = vpack.c.b16 %v125, %v122
  %v171 = vpack.c.b16 %v129, %v126
  %v172 = vpack.c.b16 %v130, %v127
  %v173 = vpack.c.b16 %v131, %v128
  %v174 = vpack.c.b16 %v135, %v132
  %v175 = vpack.c.b16 %v136, %v133
  %v176 = vpack.c.b16 %v137, %v134
  %v177 = vpack.c.b16 %v141, %v138
  %v178 = vpack.c.b16 %v142, %v139
  %v179 = vpack.c.b16 %v143, %v140
  %v180 = vpack.c.b16 %v147, %v144
  %v181 = vpack.c.b16 %v148, %v145
  %v182 = vpack.c.b16 %v149, %v146
  %v183 = vpack.c.b16 %v153, %v150
  %v184 = vpack.c.b16 %v154, %v151
  %v185 = vpack.c.b16 %v155, %v152
  %v186 = vpack.c.b16 %v159, %v156
  %v187 = vpack.c.b16 %v160, %v157
  %v188 = vpack.c.b16 %v161, %v158
  %v189 = vpack.c.b16 %v165, %v162
  %v190 = vpack.c.b16 %v166, %v163
  %v191 = vpack.c.b16 %v167, %v164
  %v244 = vunpack.c.l.b16 %v47
  %v245 = vunpack.c.l.b16 %v48
  %v246 = vunpack.c.l.b16 %v49
  %v247 = vunpack.c.l.b16 %v50
  %v248 = vunpack.c.l.b16 %v51
  %v249 = vunpack.c.l.b16 %v52
  %v250 = vunpack.c.l.b16 %v53
  %v251 = vunpack.c.l.b16 %v54
  %v252 = vunpack.c.l.b16 %v55
  %v253 = vunpack.c.l.b16 %v56
  %v254 = vunpack.c.l.b16 %v57
  %v255 = vunpack.c.l.b16 %v58
  %v256 = vunpack.c.l.b16 %v59
  %v257 = vunpack.c.l.b16 %v60
  %v258 = vunpack.c.l.b16 %v61
  %v259 = vunpack.c.l.b16 %v62
  %v260 = vunpack.c.l.b16 %v63
  %v261 = vunpack.c.l.b16 %v64
  %v262 = vunpack.c.l.b16 %v65
  %v263 = vunpack.c.l.b16 %v66
  %v264 = vunpack.c.l.b16 %v67
  %v265 = vunpack.c.l.b16 %v68
  %v266 = vunpack.c.l.b16 %v69
  %v267 = vunpack.c.l.b16 %v70
  %v268 = vunpack.c.l.b16 %v71
  %v269 = vunpack.c.l.b16 %v72
  %v270 = vunpack.c.l.b16 %v73
  %v271 = vunpack.c.l.b16 %v74
  %v272 = vunpack.c.l.b16 %v75
  %v273 = vunpack.c.l.b16 %v76
  %v274 = vunpack.c.l.b16 %v77
  %v275 = vunpack.c.l.b16 %v78
  %v276 = vunpack.c.l.b16 %v79
  %v277 = vunpack.c.l.b16 %v80
  %v278 = vunpack.c.l.b16 %v81
  %v279 = vunpack.c.l.b16 %v82
  %v280 = vpack.c.b16 %v245, %v244
  %v281 = vpack.c.b16 %v247, %v246
  %v282 = vpack.c.b16 %v249, %v248
  %v283 = vpack.c.b16 %v251, %v250
  %v284 = vpack.c.b16 %v253, %v252
  %v285 = vpack.c.b16 %v255, %v254
  %v286 = vpack.c.b16 %v257, %v256
  %v287 = vpack.c.b16 %v259, %v258
  %v288 = vpack.c.b16 %v261, %v260
  %v289 = vpack.c.b16 %v263, %v262
  %v290 = vpack.c.b16 %v265, %v264
  %v291 = vpack.c.b16 %v267, %v266
  %v292 = vpack.c.b16 %v269, %v268
  %v293 = vpack.c.b16 %v271, %v270
  %v294 = vpack.c.b16 %v273, %v272
  %v295 = vpack.c.b16 %v275, %v274
  %v296 = vpack.c.b16 %v277, %v276
  %v297 = vpack.c.b16 %v279, %v278
  %vm316 = vcmask 261120
  %v318 = vsel %vm316, %v170, 0
  %v321 = vsel %vm316, %v173, 0
  %v324 = vsel %vm316, %v176, 0
  %v327 = vsel %vm316, %v179, 0
  %v330 = vsel %vm316, %v182, 0
  %v333 = vsel %vm316, %v185, 0
  %v336 = vsel %vm316, %v188, 0
  %v339 = vsel %vm316, %v191, 0
  %341 = vmatprep.subr.bf16.mxu0 0
  %342 = vmatpush1.bf16.msra.mxu0 %v287
  %343 = vmatprep.subr.bf16.mxu0 0
  %344 = vmatpush1.bf16.msra.mxu0 %v286
  %345 = vmatprep.subr.bf16.mxu0 0
  %346 = vmatpush1.bf16.msra.mxu0 %v285
  %347 = vmatprep.subr.bf16.mxu0 0
  %348 = vmatpush1.bf16.msra.mxu0 %v284
  %349 = vmatprep.subr.bf16.mxu0 0
  %350 = vmatpush1.bf16.msra.mxu0 %v283
  %351 = vmatprep.subr.bf16.mxu0 0
  %352 = vmatpush1.bf16.msra.mxu0 %v282
  %353 = vmatprep.subr.bf16.mxu0 0
  %354 = vmatpush1.bf16.msra.mxu0 %v281
  %355 = vmatprep.subr.bf16.mxu0 0
  %356 = vmatpush1.bf16.msra.mxu0 %v280
  %357 = vmatprep.subr.bf16.mxu0 0
  %358 = vmatpush2.bf16.msra.mxu0 %v295
  %359 = vmatprep.subr.bf16.mxu0 0
  %360 = vmatpush2.bf16.msra.mxu0 %v294
  %361 = vmatprep.subr.bf16.mxu0 0
  %362 = vmatpush2.bf16.msra.mxu0 %v293
  %363 = vmatprep.subr.bf16.mxu0 0
  %364 = vmatpush2.bf16.msra.mxu0 %v292
  %365 = vmatprep.subr.bf16.mxu0 0
  %366 = vmatpush2.bf16.msra.mxu0 %v291
  %367 = vmatprep.subr.bf16.mxu0 0
  %368 = vmatpush2.bf16.msra.mxu0 %v290
  %369 = vmatprep.subr.bf16.mxu0 0
  %370 = vmatpush2.bf16.msra.mxu0 %v289
  %371 = vmatprep.subr.bf16.mxu0 0
  %372 = vmatpush2.bf16.msra.mxu0 %v288
  %373 = vmatprep.mubr.bf16.mxu0 %v169
  %374 = vmatmul.mubr.bf16.gmra.mxu0 %v168
  %v375 = vpop.f32.mrf.mxu0
  %v376 = vadd.f32 %v87, %v375
  %v377 = vpop.f32.mrf.mxu0
  %v378 = vpop.f32.mrf.mxu0
  %v379 = vadd.f32 %v87, %v378
  %v380 = vpop.f32.mrf.mxu0
  %381 = vmatprep.mubr.bf16.mxu0 %v172
  %382 = vmatmul.mubr.bf16.gmra.mxu0 %v171
  %v383 = vpop.f32.mrf.mxu0
  %v384 = vadd.f32 %v87, %v383
  %v385 = vpop.f32.mrf.mxu0
  %v386 = vpop.f32.mrf.mxu0
  %v387 = vadd.f32 %v87, %v386
  %v388 = vpop.f32.mrf.mxu0
  %389 = vmatprep.mubr.bf16.mxu0 %v175
  %390 = vmatmul.mubr.bf16.gmra.mxu0 %v174
  %v391 = vpop.f32.mrf.mxu0
  %v392 = vadd.f32 %v87, %v391
  %v393 = vpop.f32.mrf.mxu0
  %v394 = vpop.f32.mrf.mxu0
  %v395 = vadd.f32 %v87, %v394
  %v396 = vpop.f32.mrf.mxu0
  %397 = vmatprep.mubr.bf16.mxu0 %v178
  %398 = vmatmul.mubr.bf16.gmra.mxu0 %v177
  %v399 = vpop.f32.mrf.mxu0
  %v400 = vadd.f32 %v87, %v399
  %v401 = vpop.f32.mrf.mxu0
  %v402 = vpop.f32.mrf.mxu0
  %v403 = vadd.f32 %v87, %v402
  %v404 = vpop.f32.mrf.mxu0
  %405 = vmatprep.mubr.bf16.mxu0 %v181
  %406 = vmatmul.mubr.bf16.gmra.mxu0 %v180
  %v407 = vpop.f32.mrf.mxu0
  %v408 = vadd.f32 %v87, %v407
  %v409 = vpop.f32.mrf.mxu0
  %v410 = vpop.f32.mrf.mxu0
  %v411 = vadd.f32 %v87, %v410
  %v412 = vpop.f32.mrf.mxu0
  %413 = vmatprep.mubr.bf16.mxu0 %v184
  %414 = vmatmul.mubr.bf16.gmra.mxu0 %v183
  %v415 = vpop.f32.mrf.mxu0
  %v416 = vadd.f32 %v87, %v415
  %v417 = vpop.f32.mrf.mxu0
  %v418 = vpop.f32.mrf.mxu0
  %v419 = vadd.f32 %v87, %v418
  %v420 = vpop.f32.mrf.mxu0
  %421 = vmatprep.mubr.bf16.mxu0 %v187
  %422 = vmatmul.mubr.bf16.gmra.mxu0 %v186
  %v423 = vpop.f32.mrf.mxu0
  %v424 = vadd.f32 %v87, %v423
  %v425 = vpop.f32.mrf.mxu0
  %v426 = vpop.f32.mrf.mxu0
  %v427 = vadd.f32 %v87, %v426
  %v428 = vpop.f32.mrf.mxu0
  %429 = vmatprep.mubr.bf16.mxu0 %v190
  %430 = vmatmul.mubr.bf16.gmra.mxu0 %v189
  %v431 = vpop.f32.mrf.mxu0
  %v432 = vadd.f32 %v87, %v431
  %v433 = vpop.f32.mrf.mxu0
  %v434 = vpop.f32.mrf.mxu0
  %v435 = vadd.f32 %v87, %v434
  %v436 = vpop.f32.mrf.mxu0
  %437 = vdwg.mxu0
  %438 = vmatprep.subr.bf16.mxu0 0
  %439 = vmatpush1.bf16.msra.mxu0 0
  %440 = vmatprep.subr.bf16.mxu0 0
  %441 = vmatpush1.bf16.msra.mxu0 0
  %442 = vmatprep.subr.bf16.mxu0 0
  %443 = vmatpush1.bf16.msra.mxu0 0
  %444 = vmatprep.subr.bf16.mxu0 0
  %445 = vmatpush1.bf16.msra.mxu0 0
  %446 = vmatprep.subr.bf16.mxu0 0
  %447 = vmatpush1.bf16.msra.mxu0 0
  %448 = vmatprep.subr.bf16.mxu0 0
  %449 = vmatpush1.bf16.msra.mxu0 0
  %450 = vmatprep.subr.bf16.mxu0 0
  %451 = vmatpush1.bf16.msra.mxu0 %v297
  %452 = vmatprep.subr.bf16.mxu0 0
  %453 = vmatpush1.bf16.msra.mxu0 %v296
  %454 = vmatprep.subr.bf16.mxu0 0
  %455 = vmatpush2.bf16.msra.mxu0 0
  %456 = vmatprep.subr.bf16.mxu0 0
  %457 = vmatpush2.bf16.msra.mxu0 0
  %458 = vmatprep.subr.bf16.mxu0 0
  %459 = vmatpush2.bf16.msra.mxu0 0
  %460 = vmatprep.subr.bf16.mxu0 0
  %461 = vmatpush2.bf16.msra.mxu0 0
  %462 = vmatprep.subr.bf16.mxu0 0
  %463 = vmatpush2.bf16.msra.mxu0 0
  %464 = vmatprep.subr.bf16.mxu0 0
  %465 = vmatpush2.bf16.msra.mxu0 0
  %466 = vmatprep.subr.bf16.mxu0 0
  %467 = vmatpush2.bf16.msra.mxu0 0
  %468 = vmatprep.subr.bf16.mxu0 0
  %469 = vmatpush2.bf16.msra.mxu0 0
  %470 = vmatprep.mubr.bf16.mxu0 0
  %471 = vmatmul.mubr.bf16.gmra.mxu0 %v318
  %v472 = vpop.f32.mrf.mxu0
  %v473 = vadd.f32 %v376, %v472
  %v474 = vpop.f32.mrf.mxu0
  %v475 = vpop.f32.mrf.mxu0
  %v476 = vadd.f32 %v379, %v475
  %v477 = vpop.f32.mrf.mxu0
  %478 = vmatprep.mubr.bf16.mxu0 0
  %479 = vmatmul.mubr.bf16.gmra.mxu0 %v321
  %v480 = vpop.f32.mrf.mxu0
  %v481 = vadd.f32 %v384, %v480
  %v482 = vpop.f32.mrf.mxu0
  %v483 = vpop.f32.mrf.mxu0
  %v484 = vadd.f32 %v387, %v483
  %v485 = vpop.f32.mrf.mxu0
  %486 = vmatprep.mubr.bf16.mxu0 0
  %487 = vmatmul.mubr.bf16.gmra.mxu0 %v324
  %v488 = vpop.f32.mrf.mxu0
  %v489 = vadd.f32 %v392, %v488
  %v490 = vpop.f32.mrf.mxu0
  %v491 = vpop.f32.mrf.mxu0
  %v492 = vadd.f32 %v395, %v491
  %v493 = vpop.f32.mrf.mxu0
  %494 = vmatprep.mubr.bf16.mxu0 0
  %495 = vmatmul.mubr.bf16.gmra.mxu0 %v327
  %v496 = vpop.f32.mrf.mxu0
  %v497 = vadd.f32 %v400, %v496
  %v498 = vpop.f32.mrf.mxu0
  %v499 = vpop.f32.mrf.mxu0
  %v500 = vadd.f32 %v403, %v499
  %v501 = vpop.f32.mrf.mxu0
  %502 = vmatprep.mubr.bf16.mxu0 0
  %503 = vmatmul.mubr.bf16.gmra.mxu0 %v330
  %v504 = vpop.f32.mrf.mxu0
  %v505 = vadd.f32 %v408, %v504
  %v506 = vpop.f32.mrf.mxu0
  %v507 = vpop.f32.mrf.mxu0
  %v508 = vadd.f32 %v411, %v507
  %v509 = vpop.f32.mrf.mxu0
  %510 = vmatprep.mubr.bf16.mxu0 0
  %511 = vmatmul.mubr.bf16.gmra.mxu0 %v333
  %v512 = vpop.f32.mrf.mxu0
  %v513 = vadd.f32 %v416, %v512
  %v514 = vpop.f32.mrf.mxu0
  %v515 = vpop.f32.mrf.mxu0
  %v516 = vadd.f32 %v419, %v515
  %v517 = vpop.f32.mrf.mxu0
  %518 = vmatprep.mubr.bf16.mxu0 0
  %519 = vmatmul.mubr.bf16.gmra.mxu0 %v336
  %v520 = vpop.f32.mrf.mxu0
  %v521 = vadd.f32 %v424, %v520
  %v522 = vpop.f32.mrf.mxu0
  %v523 = vpop.f32.mrf.mxu0
  %v524 = vadd.f32 %v427, %v523
  %v525 = vpop.f32.mrf.mxu0
  %526 = vmatprep.mubr.bf16.mxu0 0
  %527 = vmatmul.mubr.bf16.gmra.mxu0 %v339
  %v528 = vpop.f32.mrf.mxu0
  %v529 = vadd.f32 %v432, %v528
  %v530 = vpop.f32.mrf.mxu0
  %v531 = vpop.f32.mrf.mxu0
  %v532 = vadd.f32 %v435, %v531
  %v533 = vpop.f32.mrf.mxu0
  %534 = vdwg.mxu0
  %v535 = vld [vmem:[%s2 + $0x1] sm:$0x1]
  %vm536 = vcmp.gt.f32.partialorder %v473, 0.0
  %vm537 = vcmp.gt.f32.partialorder %v476, 0.0
  %vm538 = vcmp.gt.f32.partialorder %v481, 0.0
  %vm539 = vcmp.gt.f32.partialorder %v484, 0.0
  %vm540 = vcmp.gt.f32.partialorder %v489, 0.0
  %vm541 = vcmp.gt.f32.partialorder %v492, 0.0
  %vm542 = vcmp.gt.f32.partialorder %v497, 0.0
  %vm543 = vcmp.gt.f32.partialorder %v500, 0.0
  %vm544 = vcmp.gt.f32.partialorder %v505, 0.0
  %vm545 = vcmp.gt.f32.partialorder %v508, 0.0
  %vm546 = vcmp.gt.f32.partialorder %v513, 0.0
  %vm547 = vcmp.gt.f32.partialorder %v516, 0.0
  %vm548 = vcmp.gt.f32.partialorder %v521, 0.0
  %vm549 = vcmp.gt.f32.partialorder %v524, 0.0
  %vm550 = vcmp.gt.f32.partialorder %v529, 0.0
  %vm551 = vcmp.gt.f32.partialorder %v532, 0.0
  %v552 = vlaneseq
  %v553 = vshrl.u32 %v552, 7
  %v554 = vsub.s32 0, %v553
  %v555 = vrot.slane %v535, %v554
  %v556 = vmul.f32 %v555, %v473
  %v557 = vmul.f32 %v555, %v476
  %v558 = vmul.f32 %v555, %v481
  %v559 = vmul.f32 %v555, %v484
  %v560 = vmul.f32 %v555, %v489
  %v561 = vmul.f32 %v555, %v492
  %v562 = vmul.f32 %v555, %v497
  %v563 = vmul.f32 %v555, %v500
  %v564 = vmul.f32 %v555, %v505
  %v565 = vmul.f32 %v555, %v508
  %v566 = vmul.f32 %v555, %v513
  %v567 = vmul.f32 %v555, %v516
  %v568 = vmul.f32 %v555, %v521
  %v569 = vmul.f32 %v555, %v524
  %v570 = vmul.f32 %v555, %v529
  %v571 = vmul.f32 %v555, %v532
  %v572 = vsel %vm536, %v473, %v556
  %v573 = vsel %vm537, %v476, %v557
  %v574 = vsel %vm538, %v481, %v558
  %v575 = vsel %vm539, %v484, %v559
  %v576 = vsel %vm540, %v489, %v560
  %v577 = vsel %vm541, %v492, %v561
  %v578 = vsel %vm542, %v497, %v562
  %v579 = vsel %vm543, %v500, %v563
  %v580 = vsel %vm544, %v505, %v564
  %v581 = vsel %vm545, %v508, %v565
  %v582 = vsel %vm546, %v513, %v566
  %v583 = vsel %vm547, %v516, %v567
  %v584 = vsel %vm548, %v521, %v568
  %v585 = vsel %vm549, %v524, %v569
  %v586 = vsel %vm550, %v529, %v570
  %v587 = vsel %vm551, %v532, %v571
  %588 = vst [vmem:[%s3] sm:$0xff] %v572
  %589 = vst [vmem:[%s3 + $0x8] sm:$0xff] %v573
  %590 = vst [vmem:[%s3 + $0x10] sm:$0xff] %v574
  %591 = vst [vmem:[%s3 + $0x18] sm:$0xff] %v575
  %592 = vst [vmem:[%s3 + $0x20] sm:$0xff] %v576
  %593 = vst [vmem:[%s3 + $0x28] sm:$0xff] %v577
  %594 = vst [vmem:[%s3 + $0x30] sm:$0xff] %v578
  %595 = vst [vmem:[%s3 + $0x38] sm:$0xff] %v579
  %596 = vst [vmem:[%s3 + $0x40] sm:$0xff] %v580
  %597 = vst [vmem:[%s3 + $0x48] sm:$0xff] %v581
  %598 = vst [vmem:[%s3 + $0x50] sm:$0xff] %v582
  %599 = vst [vmem:[%s3 + $0x58] sm:$0xff] %v583
  %600 = vst [vmem:[%s3 + $0x60] sm:$0xff] %v584
  %601 = vst [vmem:[%s3 + $0x68] sm:$0xff] %v585
  %602 = vst [vmem:[%s3 + $0x70] sm:$0xff] %v586
  %603 = vst [vmem:[%s3 + $0x78] sm:$0xff] %v587
  // Predicated region
  $region14: #{encoder_forward.9} parent=0 // pred_check
    _
  $region15: #{encoder_forward.9} parent=0 // pred_check_branch
    %605 = sbr.rel (0) target = $region17
  $region16: #{encoder_forward.9} parent=0 // pred_region
    _
  $region17: #{encoder_forward.9} parent=0 // pred_fallthru
    _
  // Predicated region
  $region18: #{encoder_forward.9} parent=0 // pred_check
    _
  $region19: #{encoder_forward.9} parent=0 // pred_check_branch
    %607 = sbr.rel (0) target = $region21
  $region20: #{encoder_forward.9} parent=0 // pred_region
    _
  $region21: #{encoder_forward.9} parent=0 // pred_fallthru
    _

// kernel: encoder_forward.10
$region0: #{encoder_forward.10}
  #allocation0 [shape = 'u32[]', space=smem, size = 0x4, offset = 0x4, fixed_abs, tag = 'smem constant byte address 0x4 - core index']
  #allocation1 [shape = 'u32[144,128]{1,0:T(1,128)}', space=vmem, size = 0x12000, scoped, tag = 'internal scratch']
  %s0 = inlined_call_operand.vmem [shape: bf16[32,288], index: 0, kind: input, shape index: {}]
  %s1 = inlined_call_operand.vmem [shape: bf16[288,128], index: 1, kind: input, shape index: {}]
  %s2 = inlined_call_operand.vmem [shape: f32[2,128], index: 2, kind: input, shape index: {}]
  %s3 = inlined_call_operand.vmem [shape: f32[32,128], index: 3, kind: output, shape index: {}]
  %s4 = sld [smem:[#allocation0]]
  $region22: #{encoder_forward.10} parent=0
    _
  %s6 = ssub.s32 1, %s4
  %s7 = scalar_select 0, %s6, %s4
  // Predicated region
  $region2: #{encoder_forward.10} parent=0 // pred_check
    _
  $region3: #{encoder_forward.10} parent=0 // pred_check_branch
    %9 = sbr.rel (0) target = $region5
  $region4: #{encoder_forward.10} parent=0 // pred_region
    _
  $region5: #{encoder_forward.10} parent=0 // pred_fallthru
    _
  // Predicated region
  $region6: #{encoder_forward.10} parent=0 // pred_check
    _
  $region7: #{encoder_forward.10} parent=0 // pred_check_branch
    %11 = sbr.rel (0) target = $region9
  $region8: #{encoder_forward.10} parent=0 // pred_region
    _
  $region9: #{encoder_forward.10} parent=0 // pred_fallthru
    _
  // Predicated region
  $region10: #{encoder_forward.10} parent=0 // pred_check
    _
  $region11: #{encoder_forward.10} parent=0 // pred_check_branch
    %13 = sbr.rel (0) target = $region13
  $region12: #{encoder_forward.10} parent=0 // pred_region
    _
  $region13: #{encoder_forward.10} parent=0 // pred_fallthru
    _
  %v15 = vld [vmem:[%s0] sm:$0xff]
  %v16 = vld [vmem:[%s0 + $0x8] sm:$0xf]
  %v17 = vld [vmem:[%s0 + $0xc] sm:$0xff]
  %v18 = vld [vmem:[%s0 + $0x14] sm:$0xf]
  %v19 = vld [vmem:[%s0 + $0x18] sm:$0xff]
  %v20 = vld [vmem:[%s0 + $0x20] sm:$0xf]
  %v21 = vld [vmem:[%s0 + $0x24] sm:$0xff]
  %v22 = vld [vmem:[%s0 + $0x2c] sm:$0xf]
  %v23 = vld [vmem:[%s1] sm:$0xf]
  %v24 = vld [vmem:[%s1 + $0x4] sm:$0xf]
  %v25 = vld [vmem:[%s1 + $0x8] sm:$0xf]
  %v26 = vld [vmem:[%s1 + $0xc] sm:$0xf]
  %v27 = vld [vmem:[%s1 + $0x10] sm:$0xf]
  %v28 = vld [vmem:[%s1 + $0x14] sm:$0xf]
  %v29 = vld [vmem:[%s1 + $0x18] sm:$0xf]
  %v30 = vld [vmem:[%s1 + $0x1c] sm:$0xf]
  %v31 = vld [vmem:[%s1 + $0x20] sm:$0xf]
  %v32 = vld [vmem:[%s1 + $0x24] sm:$0xf]
  %v33 = vld [vmem:[%s1 + $0x28] sm:$0xf]
  %v34 = vld [vmem:[%s1 + $0x2c] sm:$0xf]
  %v35 = vld [vmem:[%s1 + $0x30] sm:$0xf]
  %v36 = vld [vmem:[%s1 + $0x34] sm:$0xf]
  %v37 = vld [vmem:[%s1 + $0x38] sm:$0xf]
  %v38 = vld [vmem:[%s1 + $0x3c] sm:$0xf]
  %v39 = vld [vmem:[%s1 + $0x40] sm:$0xf]
  %v40 = vld [vmem:[%s1 + $0x44] sm:$0xf]
  %v41 = vld [vmem:[%s1 + $0x48] sm:$0xf]
  %v42 = vld [vmem:[%s1 + $0x4c] sm:$0xf]
  %v43 = vld [vmem:[%s1 + $0x50] sm:$0xf]
  %v44 = vld [vmem:[%s1 + $0x54] sm:$0xf]
  %v45 = vld [vmem:[%s1 + $0x58] sm:$0xf]
  %v46 = vld [vmem:[%s1 + $0x5c] sm:$0xf]
  %v47 = vld [vmem:[%s1 + $0x60] sm:$0xf]
  %v48 = vld [vmem:[%s1 + $0x64] sm:$0xf]
  %v49 = vld [vmem:[%s1 + $0x68] sm:$0xf]
  %v50 = vld [vmem:[%s1 + $0x6c] sm:$0xf]
  %v51 = vld [vmem:[%s1 + $0x70] sm:$0xf]
  %v52 = vld [vmem:[%s1 + $0x74] sm:$0xf]
  %v53 = vld [vmem:[%s1 + $0x78] sm:$0xf]
  %v54 = vld [vmem:[%s1 + $0x7c] sm:$0xf]
  %v55 = vld [vmem:[%s1 + $0x80] sm:$0xf]
  %v56 = vld [vmem:[%s1 + $0x84] sm:$0xf]
  %v57 = vld [vmem:[%s1 + $0x88] sm:$0xf]
  %v58 = vld [vmem:[%s1 + $0x8c] sm:$0xf]
  %v59 = vld [vmem:[%s2] sm:$0x1]
  %v60 = vlaneseq
  %v61 = vshrl.u32 %v60, 7
  %v62 = vsub.s32 0, %v61
  %v63 = vrot.slane %v59, %v62
  %v72 = vunpack.c.l.b16 %v15
  %v73 = vunpack.c.h.b16 %v15
  %v74 = vunpack.c.l.b16 %v16
  %v75 = vunpack.c.l.b16 %v17
  %v76 = vunpack.c.h.b16 %v17
  %v77 = vunpack.c.l.b16 %v18
  %v78 = vunpack.c.l.b16 %v19
  %v79 = vunpack.c.h.b16 %v19
  %v80 = vunpack.c.l.b16 %v20
  %v81 = vunpack.c.l.b16 %v21
  %v82 = vunpack.c.h.b16 %v21
  %v83 = vunpack.c.l.b16 %v22
  %v84 = vpack.c.b16 %v75, %v72
  %v85 = vpack.c.b16 %v76, %v73
  %v86 = vpack.c.b16 %v77, %v74
  %v87 = vpack.c.b16 %v81, %v78
  %v88 = vpack.c.b16 %v82, %v79
  %v89 = vpack.c.b16 %v83, %v80
  %v130 = vunpack.c.l.b16 %v23
  %v131 = vunpack.c.l.b16 %v24
  %v132 = vunpack.c.l.b16 %v25
  %v133 = vunpack.c.l.b16 %v26
  %v134 = vunpack.c.l.b16 %v27
  %v135 = vunpack.c.l.b16 %v28
  %v136 = vunpack.c.l.b16 %v29
  %v137 = vunpack.c.l.b16 %v30
  %v138 = vunpack.c.l.b16 %v31
  %v139 = vunpack.c.l.b16 %v32
  %v140 = vunpack.c.l.b16 %v33
  %v141 = vunpack.c.l.b16 %v34
  %v142 = vunpack.c.l.b16 %v35
  %v143 = vunpack.c.l.b16 %v36
  %v144 = vunpack.c.l.b16 %v37
  %v145 = vunpack.c.l.b16 %v38
  %v146 = vunpack.c.l.b16 %v39
  %v147 = vunpack.c.l.b16 %v40
  %v148 = vunpack.c.l.b16 %v41
  %v149 = vunpack.c.l.b16 %v42
  %v150 = vunpack.c.l.b16 %v43
  %v151 = vunpack.c.l.b16 %v44
  %v152 = vunpack.c.l.b16 %v45
  %v153 = vunpack.c.l.b16 %v46
  %v154 = vunpack.c.l.b16 %v47
  %v155 = vunpack.c.l.b16 %v48
  %v156 = vunpack.c.l.b16 %v49
  %v157 = vunpack.c.l.b16 %v50
  %v158 = vunpack.c.l.b16 %v51
  %v159 = vunpack.c.l.b16 %v52
  %v160 = vunpack.c.l.b16 %v53
  %v161 = vunpack.c.l.b16 %v54
  %v162 = vunpack.c.l.b16 %v55
  %v163 = vunpack.c.l.b16 %v56
  %v164 = vunpack.c.l.b16 %v57
  %v165 = vunpack.c.l.b16 %v58
  %v166 = vpack.c.b16 %v131, %v130
  %v167 = vpack.c.b16 %v133, %v132
  %v168 = vpack.c.b16 %v135, %v134
  %v169 = vpack.c.b16 %v137, %v136
  %v170 = vpack.c.b16 %v139, %v138
  %v171 = vpack.c.b16 %v141, %v140
  %v172 = vpack.c.b16 %v143, %v142
  %v173 = vpack.c.b16 %v145, %v144
  %v174 = vpack.c.b16 %v147, %v146
  %v175 = vpack.c.b16 %v149, %v148
  %v176 = vpack.c.b16 %v151, %v150
  %v177 = vpack.c.b16 %v153, %v152
  %v178 = vpack.c.b16 %v155, %v154
  %v179 = vpack.c.b16 %v157, %v156
  %v180 = vpack.c.b16 %v159, %v158
  %v181 = vpack.c.b16 %v161, %v160
  %v182 = vpack.c.b16 %v163, %v162
  %v183 = vpack.c.b16 %v165, %v164
  %vm202 = vcmask 261120
  %v204 = vsel %vm202, %v86, 0
  %v207 = vsel %vm202, %v89, 0
  %209 = vmatprep.subr.bf16.mxu0 0
  %210 = vmatpush1.bf16.msra.mxu0 %v173
  %211 = vmatprep.subr.bf16.mxu0 0
  %212 = vmatpush1.bf16.msra.mxu0 %v172
  %213 = vmatprep.subr.bf16.mxu0 0
  %214 = vmatpush1.bf16.msra.mxu0 %v171
  %215 = vmatprep.subr.bf16.mxu0 0
  %216 = vmatpush1.bf16.msra.mxu0 %v170
  %217 = vmatprep.subr.bf16.mxu0 0
  %218 = vmatpush1.bf16.msra.mxu0 %v169
  %219 = vmatprep.subr.bf16.mxu0 0
  %220 = vmatpush1.bf16.msra.mxu0 %v168
  %221 = vmatprep.subr.bf16.mxu0 0
  %222 = vmatpush1.bf16.msra.mxu0 %v167
  %223 = vmatprep.subr.bf16.mxu0 0
  %224 = vmatpush1.bf16.msra.mxu0 %v166
  %225 = vmatprep.subr.bf16.mxu0 0
  %226 = vmatpush2.bf16.msra.mxu0 %v181
  %227 = vmatprep.subr.bf16.mxu0 0
  %228 = vmatpush2.bf16.msra.mxu0 %v180
  %229 = vmatprep.subr.bf16.mxu0 0
  %230 = vmatpush2.bf16.msra.mxu0 %v179
  %231 = vmatprep.subr.bf16.mxu0 0
  %232 = vmatpush2.bf16.msra.mxu0 %v178
  %233 = vmatprep.subr.bf16.mxu0 0
  %234 = vmatpush2.bf16.msra.mxu0 %v177
  %235 = vmatprep.subr.bf16.mxu0 0
  %236 = vmatpush2.bf16.msra.mxu0 %v176
  %237 = vmatprep.subr.bf16.mxu0 0
  %238 = vmatpush2.bf16.msra.mxu0 %v175
  %239 = vmatprep.subr.bf16.mxu0 0
  %240 = vmatpush2.bf16.msra.mxu0 %v174
  %241 = vmatprep.mubr.bf16.mxu0 %v85
  %242 = vmatmul.mubr.bf16.gmra.mxu0 %v84
  %v243 = vpop.f32.mrf.mxu0
  %v244 = vadd.f32 %v63, %v243
  %v245 = vpop.f32.mrf.mxu0
  %v246 = vpop.f32.mrf.mxu0
  %v247 = vadd.f32 %v63, %v246
  %v248 = vpop.f32.mrf.mxu0
  %249 = vmatprep.mubr.bf16.mxu0 %v88
  %250 = vmatmul.mubr.bf16.gmra.mxu0 %v87
  %v251 = vpop.f32.mrf.mxu0
  %v252 = vadd.f32 %v63, %v251
  %v253 = vpop.f32.mrf.mxu0
  %v254 = vpop.f32.mrf.mxu0
  %v255 = vadd.f32 %v63, %v254
  %v256 = vpop.f32.mrf.mxu0
  %257 = vdwg.mxu0
  %258 = vmatprep.subr.bf16.mxu0 0
  %259 = vmatpush1.bf16.msra.mxu0 0
  %260 = vmatprep.subr.bf16.mxu0 0
  %261 = vmatpush1.bf16.msra.mxu0 0
  %262 = vmatprep.subr.bf16.mxu0 0
  %263 = vmatpush1.bf16.msra.mxu0 0
  %264 = vmatprep.subr.bf16.mxu0 0
  %265 = vmatpush1.bf16.msra.mxu0 0
  %266 = vmatprep.subr.bf16.mxu0 0
  %267 = vmatpush1.bf16.msra.mxu0 0
  %268 = vmatprep.subr.bf16.mxu0 0
  %269 = vmatpush1.bf16.msra.mxu0 0
  %270 = vmatprep.subr.bf16.mxu0 0
  %271 = vmatpush1.bf16.msra.mxu0 %v183
  %272 = vmatprep.subr.bf16.mxu0 0
  %273 = vmatpush1.bf16.msra.mxu0 %v182
  %274 = vmatprep.subr.bf16.mxu0 0
  %275 = vmatpush2.bf16.msra.mxu0 0
  %276 = vmatprep.subr.bf16.mxu0 0
  %277 = vmatpush2.bf16.msra.mxu0 0
  %278 = vmatprep.subr.bf16.mxu0 0
  %279 = vmatpush2.bf16.msra.mxu0 0
  %280 = vmatprep.subr.bf16.mxu0 0
  %281 = vmatpush2.bf16.msra.mxu0 0
  %282 = vmatprep.subr.bf16.mxu0 0
  %283 = vmatpush2.bf16.msra.mxu0 0
  %284 = vmatprep.subr.bf16.mxu0 0
  %285 = vmatpush2.bf16.msra.mxu0 0
  %286 = vmatprep.subr.bf16.mxu0 0
  %287 = vmatpush2.bf16.msra.mxu0 0
  %288 = vmatprep.subr.bf16.mxu0 0
  %289 = vmatpush2.bf16.msra.mxu0 0
  %290 = vmatprep.mubr.bf16.mxu0 0
  %291 = vmatmul.mubr.bf16.gmra.mxu0 %v204
  %v292 = vpop.f32.mrf.mxu0
  %v293 = vadd.f32 %v244, %v292
  %v294 = vpop.f32.mrf.mxu0
  %v295 = vpop.f32.mrf.mxu0
  %v296 = vadd.f32 %v247, %v295
  %v297 = vpop.f32.mrf.mxu0
  %298 = vmatprep.mubr.bf16.mxu0 0
  %299 = vmatmul.mubr.bf16.gmra.mxu0 %v207
  %v300 = vpop.f32.mrf.mxu0
  %v301 = vadd.f32 %v252, %v300
  %v302 = vpop.f32.mrf.mxu0
  %v303 = vpop.f32.mrf.mxu0
  %v304 = vadd.f32 %v255, %v303
  %v305 = vpop.f32.mrf.mxu0
  %306 = vdwg.mxu0
  %v307 = vld [vmem:[%s2 + $0x1] sm:$0x1]
  %vm308 = vcmp.gt.f32.partialorder %v293, 0.0
  %vm309 = vcmp.gt.f32.partialorder %v296, 0.0
  %vm310 = vcmp.gt.f32.partialorder %v301, 0.0
  %vm311 = vcmp.gt.f32.partialorder %v304, 0.0
  %v312 = vlaneseq
  %v313 = vshrl.u32 %v312, 7
  %v314 = vsub.s32 0, %v313
  %v315 = vrot.slane %v307, %v314
  %v316 = vmul.f32 %v315, %v293
  %v317 = vmul.f32 %v315, %v296
  %v318 = vmul.f32 %v315, %v301
  %v319 = vmul.f32 %v315, %v304
  %v320 = vsel %vm308, %v293, %v316
  %v321 = vsel %vm309, %v296, %v317
  %v322 = vsel %vm310, %v301, %v318
  %v323 = vsel %vm311, %v304, %v319
  %324 = vst [vmem:[%s3] sm:$0xff] %v320
  %325 = vst [vmem:[%s3 + $0x8] sm:$0xff] %v321
  %326 = vst [vmem:[%s3 + $0x10] sm:$0xff] %v322
  %327 = vst [vmem:[%s3 + $0x18] sm:$0xff] %v323
  // Predicated region
  $region14: #{encoder_forward.10} parent=0 // pred_check
    _
  $region15: #{encoder_forward.10} parent=0 // pred_check_branch
    %329 = sbr.rel (0) target = $region17
  $region16: #{encoder_forward.10} parent=0 // pred_region
    _
  $region17: #{encoder_forward.10} parent=0 // pred_fallthru
    _
  // Predicated region
  $region18: #{encoder_forward.10} parent=0 // pred_check
    _
  $region19: #{encoder_forward.10} parent=0 // pred_check_branch
    %331 = sbr.rel (0) target = $region21
  $region20: #{encoder_forward.10} parent=0 // pred_region
    _
  $region21: #{encoder_forward.10} parent=0 // pred_fallthru
    _

// kernel: encoder_forward.11
$region0: #{encoder_forward.11}
  #allocation0 [shape = 'u32[]', space=smem, size = 0x4, offset = 0x4, fixed_abs, tag = 'smem constant byte address 0x4 - core index']
  #allocation1 [shape = 'u32[144,128]{1,0:T(1,128)}', space=vmem, size = 0x12000, scoped, tag = 'internal scratch']
  %s0 = inlined_call_operand.vmem [shape: bf16[32,432], index: 0, kind: input, shape index: {}]
  %s1 = inlined_call_operand.vmem [shape: bf16[432,128], index: 1, kind: input, shape index: {}]
  %s2 = inlined_call_operand.vmem [shape: f32[2,128], index: 2, kind: input, shape index: {}]
  %s3 = inlined_call_operand.vmem [shape: f32[32,128], index: 3, kind: output, shape index: {}]
  %s4 = sld [smem:[#allocation0]]
  $region22: #{encoder_forward.11} parent=0
    _
  %s6 = ssub.s32 1, %s4
  %s7 = scalar_select 0, %s6, %s4
  // Predicated region
  $region2: #{encoder_forward.11} parent=0 // pred_check
    _
  $region3: #{encoder_forward.11} parent=0 // pred_check_branch
    %9 = sbr.rel (0) target = $region5
  $region4: #{encoder_forward.11} parent=0 // pred_region
    _
  $region5: #{encoder_forward.11} parent=0 // pred_fallthru
    _
  // Predicated region
  $region6: #{encoder_forward.11} parent=0 // pred_check
    _
  $region7: #{encoder_forward.11} parent=0 // pred_check_branch
    %11 = sbr.rel (0) target = $region9
  $region8: #{encoder_forward.11} parent=0 // pred_region
    _
  $region9: #{encoder_forward.11} parent=0 // pred_fallthru
    _
  // Predicated region
  $region10: #{encoder_forward.11} parent=0 // pred_check
    _
  $region11: #{encoder_forward.11} parent=0 // pred_check_branch
    %13 = sbr.rel (0) target = $region13
  $region12: #{encoder_forward.11} parent=0 // pred_region
    _
  $region13: #{encoder_forward.11} parent=0 // pred_fallthru
    _
  %v15 = vld [vmem:[%s0] sm:$0xff]
  %v16 = vld [vmem:[%s0 + $0x8] sm:$0xff]
  %v17 = vld [vmem:[%s0 + $0x10] sm:$0xff]
  %v18 = vld [vmem:[%s0 + $0x18] sm:$0xff]
  %v19 = vld [vmem:[%s0 + $0x20] sm:$0xff]
  %v20 = vld [vmem:[%s0 + $0x28] sm:$0xff]
  %v21 = vld [vmem:[%s0 + $0x30] sm:$0xff]
  %v22 = vld [vmem:[%s0 + $0x38] sm:$0xff]
  %v23 = vld [vmem:[%s1] sm:$0xf]
  %v24 = vld [vmem:[%s1 + $0x4] sm:$0xf]
  %v25 = vld [vmem:[%s1 + $0x8] sm:$0xf]
  %v26 = vld [vmem:[%s1 + $0xc] sm:$0xf]
  %v27 = vld [vmem:[%s1 + $0x10] sm:$0xf]
  %v28 = vld [vmem:[%s1 + $0x14] sm:$0xf]
  %v29 = vld [vmem:[%s1 + $0x18] sm:$0xf]
  %v30 = vld [vmem:[%s1 + $0x1c] sm:$0xf]
  %v31 = vld [vmem:[%s1 + $0x20] sm:$0xf]
  %v32 = vld [vmem:[%s1 + $0x24] sm:$0xf]
  %v33 = vld [vmem:[%s1 + $0x28] sm:$0xf]
  %v34 = vld [vmem:[%s1 + $0x2c] sm:$0xf]
  %v35 = vld [vmem:[%s1 + $0x30] sm:$0xf]
  %v36 = vld [vmem:[%s1 + $0x34] sm:$0xf]
  %v37 = vld [vmem:[%s1 + $0x38] sm:$0xf]
  %v38 = vld [vmem:[%s1 + $0x3c] sm:$0xf]
  %v39 = vld [vmem:[%s1 + $0x40] sm:$0xf]
  %v40 = vld [vmem:[%s1 + $0x44] sm:$0xf]
  %v41 = vld [vmem:[%s1 + $0x48] sm:$0xf]
  %v42 = vld [vmem:[%s1 + $0x4c] sm:$0xf]
  %v43 = vld [vmem:[%s1 + $0x50] sm:$0xf]
  %v44 = vld [vmem:[%s1 + $0x54] sm:$0xf]
  %v45 = vld [vmem:[%s1 + $0x58] sm:$0xf]
  %v46 = vld [vmem:[%s1 + $0x5c] sm:$0xf]
  %v47 = vld [vmem:[%s1 + $0x60] sm:$0xf]
  %v48 = vld [vmem:[%s1 + $0x64] sm:$0xf]
  %v49 = vld [vmem:[%s1 + $0x68] sm:$0xf]
  %v50 = vld [vmem:[%s1 + $0x6c] sm:$0xf]
  %v51 = vld [vmem:[%s1 + $0x70] sm:$0xf]
  %v52 = vld [vmem:[%s1 + $0x74] sm:$0xf]
  %v53 = vld [vmem:[%s1 + $0x78] sm:$0xf]
  %v54 = vld [vmem:[%s1 + $0x7c] sm:$0xf]
  %v55 = vld [vmem:[%s1 + $0x80] sm:$0xf]
  %v56 = vld [vmem:[%s1 + $0x84] sm:$0xf]
  %v57 = vld [vmem:[%s1 + $0x88] sm:$0xf]
  %v58 = vld [vmem:[%s1 + $0x8c] sm:$0xf]
  %v59 = vld [vmem:[%s1 + $0x90] sm:$0xf]
  %v60 = vld [vmem:[%s1 + $0x94] sm:$0xf]
  %v61 = vld [vmem:[%s1 + $0x98] sm:$0xf]
  %v62 = vld [vmem:[%s1 + $0x9c] sm:$0xf]
  %v63 = vld [vmem:[%s1 + $0xa0] sm:$0xf]
  %v64 = vld [vmem:[%s1 + $0xa4] sm:$0xf]
  %v65 = vld [vmem:[%s1 + $0xa8] sm:$0xf]
  %v66 = vld [vmem:[%s1 + $0xac] sm:$0xf]
  %v67 = vld [vmem:[%s1 + $0xb0] sm:$0xf]
  %v68 = vld [vmem:[%s1 + $0xb4] sm:$0xf]
  %v69 = vld [vmem:[%s1 + $0xb8] sm:$0xf]
  %v70 = vld [vmem:[%s1 + $0xbc] sm:$0xf]
  %v71 = vld [vmem:[%s1 + $0xc0] sm:$0xf]
  %v72 = vld [vmem:[%s1 + $0xc4] sm:$0xf]
  %v73 = vld [vmem:[%s1 + $0xc8] sm:$0xf]
  %v74 = vld [vmem:[%s1 + $0xcc] sm:$0xf]
  %v75 = vld [vmem:[%s1 + $0xd0] sm:$0xf]
  %v76 = vld [vmem:[%s1 + $0xd4] sm:$0xf]
  %v77 = vld [vmem:[%s2] sm:$0x1]
  %v78 = vlaneseq
  %v79 = vshrl.u32 %v78, 7
  %v80 = vsub.s32 0, %v79
  %v81 = vrot.slane %v77, %v80
  %v90 = vunpack.c.l.b16 %v15
  %v91 = vunpack.c.h.b16 %v15
  %v92 = vunpack.c.l.b16 %v16
  %v93 = vunpack.c.h.b16 %v16
  %v94 = vunpack.c.l.b16 %v17
  %v95 = vunpack.c.h.b16 %v17
  %v96 = vunpack.c.l.b16 %v18
  %v97 = vunpack.c.h.b16 %v18
  %v98 = vunpack.c.l.b16 %v19
  %v99 = vunpack.c.h.b16 %v19
  %v100 = vunpack.c.l.b16 %v20
  %v101 = vunpack.c.h.b16 %v20
  %v102 = vunpack.c.l.b16 %v21
  %v103 = vunpack.c.h.b16 %v21
  %v104 = vunpack.c.l.b16 %v22
  %v105 = vunpack.c.h.b16 %v22
  %v106 = vpack.c.b16 %v94, %v90
  %v107 = vpack.c.b16 %v95, %v91
  %v108 = vpack.c.b16 %v96, %v92
  %v109 = vpack.c.b16 %v97, %v93
  %v110 = vpack.c.b16 %v102, %v98
  %v111 = vpack.c.b16 %v103, %v99
  %v112 = vpack.c.b16 %v104, %v100
  %v113 = vpack.c.b16 %v105, %v101
  %v174 = vunpack.c.l.b16 %v23
  %v175 = vunpack.c.l.b16 %v24
  %v176 = vunpack.c.l.b16 %v25
  %v177 = vunpack.c.l.b16 %v26
  %v178 = vunpack.c.l.b16 %v27
  %v179 = vunpack.c.l.b16 %v28
  %v180 = vunpack.c.l.b16 %v29
  %v181 = vunpack.c.l.b16 %v30
  %v182 = vunpack.c.l.b16 %v31
  %v183 = vunpack.c.l.b16 %v32
  %v184 = vunpack.c.l.b16 %v33
  %v185 = vunpack.c.l.b16 %v34
  %v186 = vunpack.c.l.b16 %v35
  %v187 = vunpack.c.l.b16 %v36
  %v188 = vunpack.c.l.b16 %v37
  %v189 = vunpack.c.l.b16 %v38
  %v190 = vunpack.c.l.b16 %v39
  %v191 = vunpack.c.l.b16 %v40
  %v192 = vunpack.c.l.b16 %v41
  %v193 = vunpack.c.l.b16 %v42
  %v194 = vunpack.c.l.b16 %v43
  %v195 = vunpack.c.l.b16 %v44
  %v196 = vunpack.c.l.b16 %v45
  %v197 = vunpack.c.l.b16 %v46
  %v198 = vunpack.c.l.b16 %v47
  %v199 = vunpack.c.l.b16 %v48
  %v200 = vunpack.c.l.b16 %v49
  %v201 = vunpack.c.l.b16 %v50
  %v202 = vunpack.c.l.b16 %v51
  %v203 = vunpack.c.l.b16 %v52
  %v204 = vunpack.c.l.b16 %v53
  %v205 = vunpack.c.l.b16 %v54
  %v206 = vunpack.c.l.b16 %v55
  %v207 = vunpack.c.l.b16 %v56
  %v208 = vunpack.c.l.b16 %v57
  %v209 = vunpack.c.l.b16 %v58
  %v210 = vunpack.c.l.b16 %v59
  %v211 = vunpack.c.l.b16 %v60
  %v212 = vunpack.c.l.b16 %v61
  %v213 = vunpack.c.l.b16 %v62
  %v214 = vunpack.c.l.b16 %v63
  %v215 = vunpack.c.l.b16 %v64
  %v216 = vunpack.c.l.b16 %v65
  %v217 = vunpack.c.l.b16 %v66
  %v218 = vunpack.c.l.b16 %v67
  %v219 = vunpack.c.l.b16 %v68
  %v220 = vunpack.c.l.b16 %v69
  %v221 = vunpack.c.l.b16 %v70
  %v222 = vunpack.c.l.b16 %v71
  %v223 = vunpack.c.l.b16 %v72
  %v224 = vunpack.c.l.b16 %v73
  %v225 = vunpack.c.l.b16 %v74
  %v226 = vunpack.c.l.b16 %v75
  %v227 = vunpack.c.l.b16 %v76
  %v228 = vpack.c.b16 %v175, %v174
  %v229 = vpack.c.b16 %v177, %v176
  %v230 = vpack.c.b16 %v179, %v178
  %v231 = vpack.c.b16 %v181, %v180
  %v232 = vpack.c.b16 %v183, %v182
  %v233 = vpack.c.b16 %v185, %v184
  %v234 = vpack.c.b16 %v187, %v186
  %v235 = vpack.c.b16 %v189, %v188
  %v236 = vpack.c.b16 %v191, %v190
  %v237 = vpack.c.b16 %v193, %v192
  %v238 = vpack.c.b16 %v195, %v194
  %v239 = vpack.c.b16 %v197, %v196
  %v240 = vpack.c.b16 %v199, %v198
  %v241 = vpack.c.b16 %v201, %v200
  %v242 = vpack.c.b16 %v203, %v202
  %v243 = vpack.c.b16 %v205, %v204
  %v244 = vpack.c.b16 %v207, %v206
  %v245 = vpack.c.b16 %v209, %v208
  %v246 = vpack.c.b16 %v211, %v210
  %v247 = vpack.c.b16 %v213, %v212
  %v248 = vpack.c.b16 %v215, %v214
  %v249 = vpack.c.b16 %v217, %v216
  %v250 = vpack.c.b16 %v219, %v218
  %v251 = vpack.c.b16 %v221, %v220
  %v252 = vpack.c.b16 %v223, %v222
  %v253 = vpack.c.b16 %v225, %v224
  %v254 = vpack.c.b16 %v227, %v226
  %vm282 = vcmask 392192
  %v284 = vsel %vm282, %v109, 0
  %v287 = vsel %vm282, %v113, 0
  %289 = vmatprep.subr.bf16.mxu0 0
  %290 = vmatpush1.bf16.msra.mxu0 %v235
  %291 = vmatprep.subr.bf16.mxu0 0
  %292 = vmatpush1.bf16.msra.mxu0 %v234
  %293 = vmatprep.subr.bf16.mxu0 0
  %294 = vmatpush1.bf16.msra.mxu0 %v233
  %295 = vmatprep.subr.bf16.mxu0 0
  %296 = vmatpush1.bf16.msra.mxu0 %v232
  %297 = vmatprep.subr.bf16.mxu0 0
  %298 = vmatpush1.bf16.msra.mxu0 %v231
  %299 = vmatprep.subr.bf16.mxu0 0
  %300 = vmatpush1.bf16.msra.mxu0 %v230
  %301 = vmatprep.subr.bf16.mxu0 0
  %302 = vmatpush1.bf16.msra.mxu0 %v229
  %303 = vmatprep.subr.bf16.mxu0 0
  %304 = vmatpush1.bf16.msra.mxu0 %v228
  %305 = vmatprep.subr.bf16.mxu0 0
  %306 = vmatpush2.bf16.msra.mxu0 %v243
  %307 = vmatprep.subr.bf16.mxu0 0
  %308 = vmatpush2.bf16.msra.mxu0 %v242
  %309 = vmatprep.subr.bf16.mxu0 0
  %310 = vmatpush2.bf16.msra.mxu0 %v241
  %311 = vmatprep.subr.bf16.mxu0 0
  %312 = vmatpush2.bf16.msra.mxu0 %v240
  %313 = vmatprep.subr.bf16.mxu0 0
  %314 = vmatpush2.bf16.msra.mxu0 %v239
  %315 = vmatprep.subr.bf16.mxu0 0
  %316 = vmatpush2.bf16.msra.mxu0 %v238
  %317 = vmatprep.subr.bf16.mxu0 0
  %318 = vmatpush2.bf16.msra.mxu0 %v237
  %319 = vmatprep.subr.bf16.mxu0 0
  %320 = vmatpush2.bf16.msra.mxu0 %v236
  %321 = vmatprep.mubr.bf16.mxu0 %v107
  %322 = vmatmul.mubr.bf16.gmra.mxu0 %v106
  %v323 = vpop.f32.mrf.mxu0
  %v324 = vadd.f32 %v81, %v323
  %v325 = vpop.f32.mrf.mxu0
  %v326 = vpop.f32.mrf.mxu0
  %v327 = vadd.f32 %v81, %v326
  %v328 = vpop.f32.mrf.mxu0
  %329 = vmatprep.mubr.bf16.mxu0 %v111
  %330 = vmatmul.mubr.bf16.gmra.mxu0 %v110
  %v331 = vpop.f32.mrf.mxu0
  %v332 = vadd.f32 %v81, %v331
  %v333 = vpop.f32.mrf.mxu0
  %v334 = vpop.f32.mrf.mxu0
  %v335 = vadd.f32 %v81, %v334
  %v336 = vpop.f32.mrf.mxu0
  %337 = vdwg.mxu0
  %338 = vmatprep.subr.bf16.mxu0 0
  %339 = vmatpush1.bf16.msra.mxu0 %v251
  %340 = vmatprep.subr.bf16.mxu0 0
  %341 = vmatpush1.bf16.msra.mxu0 %v250
  %342 = vmatprep.subr.bf16.mxu0 0
  %343 = vmatpush1.bf16.msra.mxu0 %v249
  %344 = vmatprep.subr.bf16.mxu0 0
  %345 = vmatpush1.bf16.msra.mxu0 %v248
  %346 = vmatprep.subr.bf16.mxu0 0
  %347 = vmatpush1.bf16.msra.mxu0 %v247
  %348 = vmatprep.subr.bf16.mxu0 0
  %349 = vmatpush1.bf16.msra.mxu0 %v246
  %350 = vmatprep.subr.bf16.mxu0 0
  %351 = vmatpush1.bf16.msra.mxu0 %v245
  %352 = vmatprep.subr.bf16.mxu0 0
  %353 = vmatpush1.bf16.msra.mxu0 %v244
  %354 = vmatprep.subr.bf16.mxu0 0
  %355 = vmatpush2.bf16.msra.mxu0 0
  %356 = vmatprep.subr.bf16.mxu0 0
  %357 = vmatpush2.bf16.msra.mxu0 0
  %358 = vmatprep.subr.bf16.mxu0 0
  %359 = vmatpush2.bf16.msra.mxu0 0
  %360 = vmatprep.subr.bf16.mxu0 0
  %361 = vmatpush2.bf16.msra.mxu0 0
  %362 = vmatprep.subr.bf16.mxu0 0
  %363 = vmatpush2.bf16.msra.mxu0 0
  %364 = vmatprep.subr.bf16.mxu0 0
  %365 = vmatpush2.bf16.msra.mxu0 %v254
  %366 = vmatprep.subr.bf16.mxu0 0
  %367 = vmatpush2.bf16.msra.mxu0 %v253
  %368 = vmatprep.subr.bf16.mxu0 0
  %369 = vmatpush2.bf16.msra.mxu0 %v252
  %370 = vmatprep.mubr.bf16.mxu0 %v284
  %371 = vmatmul.mubr.bf16.gmra.mxu0 %v108
  %v372 = vpop.f32.mrf.mxu0
  %v373 = vadd.f32 %v324, %v372
  %v374 = vpop.f32.mrf.mxu0
  %v375 = vpop.f32.mrf.mxu0
  %v376 = vadd.f32 %v327, %v375
  %v377 = vpop.f32.mrf.mxu0
  %378 = vmatprep.mubr.bf16.mxu0 %v287
  %379 = vmatmul.mubr.bf16.gmra.mxu0 %v112
  %v380 = vpop.f32.mrf.mxu0
  %v381 = vadd.f32 %v332, %v380
  %v382 = vpop.f32.mrf.mxu0
  %v383 = vpop.f32.mrf.mxu0
  %v384 = vadd.f32 %v335, %v383
  %v385 = vpop.f32.mrf.mxu0
  %386 = vdwg.mxu0
  %v387 = vld [vmem:[%s2 + $0x1] sm:$0x1]
  %vm388 = vcmp.gt.f32.partialorder %v373, 0.0
  %vm389 = vcmp.gt.f32.partialorder %v376, 0.0
  %vm390 = vcmp.gt.f32.partialorder %v381, 0.0
  %vm391 = vcmp.gt.f32.partialorder %v384, 0.0
  %v392 = vlaneseq
  %v393 = vshrl.u32 %v392, 7
  %v394 = vsub.s32 0, %v393
  %v395 = vrot.slane %v387, %v394
  %v396 = vmul.f32 %v395, %v373
  %v397 = vmul.f32 %v395, %v376
  %v398 = vmul.f32 %v395, %v381
  %v399 = vmul.f32 %v395, %v384
  %v400 = vsel %vm388, %v373, %v396
  %v401 = vsel %vm389, %v376, %v397
  %v402 = vsel %vm390, %v381, %v398
  %v403 = vsel %vm391, %v384, %v399
  %404 = vst [vmem:[%s3] sm:$0xff] %v400
  %405 = vst [vmem:[%s3 + $0x8] sm:$0xff] %v401
  %406 = vst [vmem:[%s3 + $0x10] sm:$0xff] %v402
  %407 = vst [vmem:[%s3 + $0x18] sm:$0xff] %v403
  // Predicated region
  $region14: #{encoder_forward.11} parent=0 // pred_check
    _
  $region15: #{encoder_forward.11} parent=0 // pred_check_branch
    %409 = sbr.rel (0) target = $region17
  $region16: #{encoder_forward.11} parent=0 // pred_region
    _
  $region17: #{encoder_forward.11} parent=0 // pred_fallthru
    _
  // Predicated region
  $region18: #{encoder_forward.11} parent=0 // pred_check
    _
  $region19: #{encoder_forward.11} parent=0 // pred_check_branch
    %411 = sbr.rel (0) target = $region21
  $region20: #{encoder_forward.11} parent=0 // pred_region
    _
  $region21: #{encoder_forward.11} parent=0 // pred_fallthru
    _

// kernel: encoder_forward.12
$region0: #{encoder_forward.12}
  #allocation0 [shape = 'u32[]', space=smem, size = 0x4, offset = 0x4, fixed_abs, tag = 'smem constant byte address 0x4 - core index']
  #allocation1 [shape = 'u32[144,128]{1,0:T(1,128)}', space=vmem, size = 0x12000, scoped, tag = 'internal scratch']
  %s0 = inlined_call_operand.vmem [shape: bf16[16,432], index: 0, kind: input, shape index: {}]
  %s1 = inlined_call_operand.vmem [shape: bf16[432,128], index: 1, kind: input, shape index: {}]
  %s2 = inlined_call_operand.vmem [shape: f32[2,128], index: 2, kind: input, shape index: {}]
  %s3 = inlined_call_operand.vmem [shape: f32[16,128], index: 3, kind: output, shape index: {}]
  %s4 = sld [smem:[#allocation0]]
  $region22: #{encoder_forward.12} parent=0
    _
  %s6 = ssub.s32 1, %s4
  %s7 = scalar_select 0, %s6, %s4
  // Predicated region
  $region2: #{encoder_forward.12} parent=0 // pred_check
    _
  $region3: #{encoder_forward.12} parent=0 // pred_check_branch
    %9 = sbr.rel (0) target = $region5
  $region4: #{encoder_forward.12} parent=0 // pred_region
    _
  $region5: #{encoder_forward.12} parent=0 // pred_fallthru
    _
  // Predicated region
  $region6: #{encoder_forward.12} parent=0 // pred_check
    _
  $region7: #{encoder_forward.12} parent=0 // pred_check_branch
    %11 = sbr.rel (0) target = $region9
  $region8: #{encoder_forward.12} parent=0 // pred_region
    _
  $region9: #{encoder_forward.12} parent=0 // pred_fallthru
    _
  // Predicated region
  $region10: #{encoder_forward.12} parent=0 // pred_check
    _
  $region11: #{encoder_forward.12} parent=0 // pred_check_branch
    %13 = sbr.rel (0) target = $region13
  $region12: #{encoder_forward.12} parent=0 // pred_region
    _
  $region13: #{encoder_forward.12} parent=0 // pred_fallthru
    _
  %v15 = vld [vmem:[%s0] sm:$0xff]
  %v16 = vld [vmem:[%s0 + $0x8] sm:$0xff]
  %v17 = vld [vmem:[%s0 + $0x10] sm:$0xff]
  %v18 = vld [vmem:[%s0 + $0x18] sm:$0xff]
  %v19 = vld [vmem:[%s1] sm:$0xf]
  %v20 = vld [vmem:[%s1 + $0x4] sm:$0xf]
  %v21 = vld [vmem:[%s1 + $0x8] sm:$0xf]
  %v22 = vld [vmem:[%s1 + $0xc] sm:$0xf]
  %v23 = vld [vmem:[%s1 + $0x10] sm:$0xf]
  %v24 = vld [vmem:[%s1 + $0x14] sm:$0xf]
  %v25 = vld [vmem:[%s1 + $0x18] sm:$0xf]
  %v26 = vld [vmem:[%s1 + $0x1c] sm:$0xf]
  %v27 = vld [vmem:[%s1 + $0x20] sm:$0xf]
  %v28 = vld [vmem:[%s1 + $0x24] sm:$0xf]
  %v29 = vld [vmem:[%s1 + $0x28] sm:$0xf]
  %v30 = vld [vmem:[%s1 + $0x2c] sm:$0xf]
  %v31 = vld [vmem:[%s1 + $0x30] sm:$0xf]
  %v32 = vld [vmem:[%s1 + $0x34] sm:$0xf]
  %v33 = vld [vmem:[%s1 + $0x38] sm:$0xf]
  %v34 = vld [vmem:[%s1 + $0x3c] sm:$0xf]
  %v35 = vld [vmem:[%s1 + $0x40] sm:$0xf]
  %v36 = vld [vmem:[%s1 + $0x44] sm:$0xf]
  %v37 = vld [vmem:[%s1 + $0x48] sm:$0xf]
  %v38 = vld [vmem:[%s1 + $0x4c] sm:$0xf]
  %v39 = vld [vmem:[%s1 + $0x50] sm:$0xf]
  %v40 = vld [vmem:[%s1 + $0x54] sm:$0xf]
  %v41 = vld [vmem:[%s1 + $0x58] sm:$0xf]
  %v42 = vld [vmem:[%s1 + $0x5c] sm:$0xf]
  %v43 = vld [vmem:[%s1 + $0x60] sm:$0xf]
  %v44 = vld [vmem:[%s1 + $0x64] sm:$0xf]
  %v45 = vld [vmem:[%s1 + $0x68] sm:$0xf]
  %v46 = vld [vmem:[%s1 + $0x6c] sm:$0xf]
  %v47 = vld [vmem:[%s1 + $0x70] sm:$0xf]
  %v48 = vld [vmem:[%s1 + $0x74] sm:$0xf]
  %v49 = vld [vmem:[%s1 + $0x78] sm:$0xf]
  %v50 = vld [vmem:[%s1 + $0x7c] sm:$0xf]
  %v51 = vld [vmem:[%s1 + $0x80] sm:$0xf]
  %v52 = vld [vmem:[%s1 + $0x84] sm:$0xf]
  %v53 = vld [vmem:[%s1 + $0x88] sm:$0xf]
  %v54 = vld [vmem:[%s1 + $0x8c] sm:$0xf]
  %v55 = vld [vmem:[%s1 + $0x90] sm:$0xf]
  %v56 = vld [vmem:[%s1 + $0x94] sm:$0xf]
  %v57 = vld [vmem:[%s1 + $0x98] sm:$0xf]
  %v58 = vld [vmem:[%s1 + $0x9c] sm:$0xf]
  %v59 = vld [vmem:[%s1 + $0xa0] sm:$0xf]
  %v60 = vld [vmem:[%s1 + $0xa4] sm:$0xf]
  %v61 = vld [vmem:[%s1 + $0xa8] sm:$0xf]
  %v62 = vld [vmem:[%s1 + $0xac] sm:$0xf]
  %v63 = vld [vmem:[%s1 + $0xb0] sm:$0xf]
  %v64 = vld [vmem:[%s1 + $0xb4] sm:$0xf]
  %v65 = vld [vmem:[%s1 + $0xb8] sm:$0xf]
  %v66 = vld [vmem:[%s1 + $0xbc] sm:$0xf]
  %v67 = vld [vmem:[%s1 + $0xc0] sm:$0xf]
  %v68 = vld [vmem:[%s1 + $0xc4] sm:$0xf]
  %v69 = vld [vmem:[%s1 + $0xc8] sm:$0xf]
  %v70 = vld [vmem:[%s1 + $0xcc] sm:$0xf]
  %v71 = vld [vmem:[%s1 + $0xd0] sm:$0xf]
  %v72 = vld [vmem:[%s1 + $0xd4] sm:$0xf]
  %v73 = vld [vmem:[%s2] sm:$0x1]
  %v74 = vlaneseq
  %v75 = vshrl.u32 %v74, 7
  %v76 = vsub.s32 0, %v75
  %v77 = vrot.slane %v73, %v76
  %v82 = vunpack.c.l.b16 %v15
  %v83 = vunpack.c.h.b16 %v15
  %v84 = vunpack.c.l.b16 %v16
  %v85 = vunpack.c.h.b16 %v16
  %v86 = vunpack.c.l.b16 %v17
  %v87 = vunpack.c.h.b16 %v17
  %v88 = vunpack.c.l.b16 %v18
  %v89 = vunpack.c.h.b16 %v18
  %v90 = vpack.c.b16 %v86, %v82
  %v91 = vpack.c.b16 %v87, %v83
  %v92 = vpack.c.b16 %v88, %v84
  %v93 = vpack.c.b16 %v89, %v85
  %v151 = vunpack.c.l.b16 %v19
  %v152 = vunpack.c.l.b16 %v20
  %v153 = vunpack.c.l.b16 %v21
  %v154 = vunpack.c.l.b16 %v22
  %v155 = vunpack.c.l.b16 %v23
  %v156 = vunpack.c.l.b16 %v24
  %v157 = vunpack.c.l.b16 %v25
  %v158 = vunpack.c.l.b16 %v26
  %v159 = vunpack.c.l.b16 %v27
  %v160 = vunpack.c.l.b16 %v28
  %v161 = vunpack.c.l.b16 %v29
  %v162 = vunpack.c.l.b16 %v30
  %v163 = vunpack.c.l.b16 %v31
  %v164 = vunpack.c.l.b16 %v32
  %v165 = vunpack.c.l.b16 %v33
  %v166 = vunpack.c.l.b16 %v34
  %v167 = vunpack.c.l.b16 %v35
  %v168 = vunpack.c.l.b16 %v36
  %v169 = vunpack.c.l.b16 %v37
  %v170 = vunpack.c.l.b16 %v38
  %v171 = vunpack.c.l.b16 %v39
  %v172 = vunpack.c.l.b16 %v40
  %v173 = vunpack.c.l.b16 %v41
  %v174 = vunpack.c.l.b16 %v42
  %v175 = vunpack.c.l.b16 %v43
  %v176 = vunpack.c.l.b16 %v44
  %v177 = vunpack.c.l.b16 %v45
  %v178 = vunpack.c.l.b16 %v46
  %v179 = vunpack.c.l.b16 %v47
  %v180 = vunpack.c.l.b16 %v48
  %v181 = vunpack.c.l.b16 %v49
  %v182 = vunpack.c.l.b16 %v50
  %v183 = vunpack.c.l.b16 %v51
  %v184 = vunpack.c.l.b16 %v52
  %v185 = vunpack.c.l.b16 %v53
  %v186 = vunpack.c.l.b16 %v54
  %v187 = vunpack.c.l.b16 %v55
  %v188 = vunpack.c.l.b16 %v56
  %v189 = vunpack.c.l.b16 %v57
  %v190 = vunpack.c.l.b16 %v58
  %v191 = vunpack.c.l.b16 %v59
  %v192 = vunpack.c.l.b16 %v60
  %v193 = vunpack.c.l.b16 %v61
  %v194 = vunpack.c.l.b16 %v62
  %v195 = vunpack.c.l.b16 %v63
  %v196 = vunpack.c.l.b16 %v64
  %v197 = vunpack.c.l.b16 %v65
  %v198 = vunpack.c.l.b16 %v66
  %v199 = vunpack.c.l.b16 %v67
  %v200 = vunpack.c.l.b16 %v68
  %v201 = vunpack.c.l.b16 %v69
  %v202 = vunpack.c.l.b16 %v70
  %v203 = vunpack.c.l.b16 %v71
  %v204 = vunpack.c.l.b16 %v72
  %v205 = vpack.c.b16 %v152, %v151
  %v206 = vpack.c.b16 %v154, %v153
  %v207 = vpack.c.b16 %v156, %v155
  %v208 = vpack.c.b16 %v158, %v157
  %v209 = vpack.c.b16 %v160, %v159
  %v210 = vpack.c.b16 %v162, %v161
  %v211 = vpack.c.b16 %v164, %v163
  %v212 = vpack.c.b16 %v166, %v165
  %v213 = vpack.c.b16 %v168, %v167
  %v214 = vpack.c.b16 %v170, %v169
  %v215 = vpack.c.b16 %v172, %v171
  %v216 = vpack.c.b16 %v174, %v173
  %v217 = vpack.c.b16 %v176, %v175
  %v218 = vpack.c.b16 %v178, %v177
  %v219 = vpack.c.b16 %v180, %v179
  %v220 = vpack.c.b16 %v182, %v181
  %v221 = vpack.c.b16 %v184, %v183
  %v222 = vpack.c.b16 %v186, %v185
  %v223 = vpack.c.b16 %v188, %v187
  %v224 = vpack.c.b16 %v190, %v189
  %v225 = vpack.c.b16 %v192, %v191
  %v226 = vpack.c.b16 %v194, %v193
  %v227 = vpack.c.b16 %v196, %v195
  %v228 = vpack.c.b16 %v198, %v197
  %v229 = vpack.c.b16 %v200, %v199
  %v230 = vpack.c.b16 %v202, %v201
  %v231 = vpack.c.b16 %v204, %v203
  %vm259 = vcmask 392192
  %v261 = vsel %vm259, %v93, 0
  %263 = vmatprep.subr.bf16.mxu0 0
  %264 = vmatpush1.bf16.msra.mxu0 %v212
  %265 = vmatprep.subr.bf16.mxu0 0
  %266 = vmatpush1.bf16.msra.mxu0 %v211
  %267 = vmatprep.subr.bf16.mxu0 0
  %268 = vmatpush1.bf16.msra.mxu0 %v210
  %269 = vmatprep.subr.bf16.mxu0 0
  %270 = vmatpush1.bf16.msra.mxu0 %v209
  %271 = vmatprep.subr.bf16.mxu0 0
  %272 = vmatpush1.bf16.msra.mxu0 %v208
  %273 = vmatprep.subr.bf16.mxu0 0
  %274 = vmatpush1.bf16.msra.mxu0 %v207
  %275 = vmatprep.subr.bf16.mxu0 0
  %276 = vmatpush1.bf16.msra.mxu0 %v206
  %277 = vmatprep.subr.bf16.mxu0 0
  %278 = vmatpush1.bf16.msra.mxu0 %v205
  %279 = vmatprep.subr.bf16.mxu0 0
  %280 = vmatpush2.bf16.msra.mxu0 %v220
  %281 = vmatprep.subr.bf16.mxu0 0
  %282 = vmatpush2.bf16.msra.mxu0 %v219
  %283 = vmatprep.subr.bf16.mxu0 0
  %284 = vmatpush2.bf16.msra.mxu0 %v218
  %285 = vmatprep.subr.bf16.mxu0 0
  %286 = vmatpush2.bf16.msra.mxu0 %v217
  %287 = vmatprep.subr.bf16.mxu0 0
  %288 = vmatpush2.bf16.msra.mxu0 %v216
  %289 = vmatprep.subr.bf16.mxu0 0
  %290 = vmatpush2.bf16.msra.mxu0 %v215
  %291 = vmatprep.subr.bf16.mxu0 0
  %292 = vmatpush2.bf16.msra.mxu0 %v214
  %293 = vmatprep.subr.bf16.mxu0 0
  %294 = vmatpush2.bf16.msra.mxu0 %v213
  %295 = vmatprep.mubr.bf16.mxu0 %v91
  %296 = vmatmul.mubr.bf16.gmra.mxu0 %v90
  %v297 = vpop.f32.mrf.mxu0
  %v298 = vadd.f32 %v77, %v297
  %v299 = vpop.f32.mrf.mxu0
  %v300 = vpop.f32.mrf.mxu0
  %v301 = vadd.f32 %v77, %v300
  %v302 = vpop.f32.mrf.mxu0
  %303 = vdwg.mxu0
  %304 = vmatprep.subr.bf16.mxu0 0
  %305 = vmatpush1.bf16.msra.mxu0 %v228
  %306 = vmatprep.subr.bf16.mxu0 0
  %307 = vmatpush1.bf16.msra.mxu0 %v227
  %308 = vmatprep.subr.bf16.mxu0 0
  %309 = vmatpush1.bf16.msra.mxu0 %v226
  %310 = vmatprep.subr.bf16.mxu0 0
  %311 = vmatpush1.bf16.msra.mxu0 %v225
  %312 = vmatprep.subr.bf16.mxu0 0
  %313 = vmatpush1.bf16.msra.mxu0 %v224
  %314 = vmatprep.subr.bf16.mxu0 0
  %315 = vmatpush1.bf16.msra.mxu0 %v223
  %316 = vmatprep.subr.bf16.mxu0 0
  %317 = vmatpush1.bf16.msra.mxu0 %v222
  %318 = vmatprep.subr.bf16.mxu0 0
  %319 = vmatpush1.bf16.msra.mxu0 %v221
  %320 = vmatprep.subr.bf16.mxu0 0
  %321 = vmatpush2.bf16.msra.mxu0 0
  %322 = vmatprep.subr.bf16.mxu0 0
  %323 = vmatpush2.bf16.msra.mxu0 0
  %324 = vmatprep.subr.bf16.mxu0 0
  %325 = vmatpush2.bf16.msra.mxu0 0
  %326 = vmatprep.subr.bf16.mxu0 0
  %327 = vmatpush2.bf16.msra.mxu0 0
  %328 = vmatprep.subr.bf16.mxu0 0
  %329 = vmatpush2.bf16.msra.mxu0 0
  %330 = vmatprep.subr.bf16.mxu0 0
  %331 = vmatpush2.bf16.msra.mxu0 %v231
  %332 = vmatprep.subr.bf16.mxu0 0
  %333 = vmatpush2.bf16.msra.mxu0 %v230
  %334 = vmatprep.subr.bf16.mxu0 0
  %335 = vmatpush2.bf16.msra.mxu0 %v229
  %336 = vmatprep.mubr.bf16.mxu0 %v261
  %337 = vmatmul.mubr.bf16.gmra.mxu0 %v92
  %v338 = vpop.f32.mrf.mxu0
  %v339 = vadd.f32 %v298, %v338
  %v340 = vpop.f32.mrf.mxu0
  %v341 = vpop.f32.mrf.mxu0
  %v342 = vadd.f32 %v301, %v341
  %v343 = vpop.f32.mrf.mxu0
  %344 = vdwg.mxu0
  %v345 = vld [vmem:[%s2 + $0x1] sm:$0x1]
  %vm346 = vcmp.gt.f32.partialorder %v339, 0.0
  %vm347 = vcmp.gt.f32.partialorder %v342, 0.0
  %v348 = vlaneseq
  %v349 = vshrl.u32 %v348, 7
  %v350 = vsub.s32 0, %v349
  %v351 = vrot.slane %v345, %v350
  %v352 = vmul.f32 %v351, %v339
  %v353 = vmul.f32 %v351, %v342
  %v354 = vsel %vm346, %v339, %v352
  %v355 = vsel %vm347, %v342, %v353
  %356 = vst [vmem:[%s3] sm:$0xff] %v354
  %357 = vst [vmem:[%s3 + $0x8] sm:$0xff] %v355
  // Predicated region
  $region14: #{encoder_forward.12} parent=0 // pred_check
    _
  $region15: #{encoder_forward.12} parent=0 // pred_check_branch
    %359 = sbr.rel (0) target = $region17
  $region16: #{encoder_forward.12} parent=0 // pred_region
    _
  $region17: #{encoder_forward.12} parent=0 // pred_fallthru
    _
  // Predicated region
  $region18: #{encoder_forward.12} parent=0 // pred_check
    _
  $region19: #{encoder_forward.12} parent=0 // pred_check_branch
    %361 = sbr.rel (0) target = $region21
  $region20: #{encoder_forward.12} parent=0 // pred_region
    _
  $region21: #{encoder_forward.12} parent=0 // pred_fallthru
    _

// kernel: encoder_forward.13
$region0: #{encoder_forward.13}
  #allocation0 [shape = 'u32[]', space=smem, size = 0x4, offset = 0x4, fixed_abs, tag = 'smem constant byte address 0x4 - core index']
  #allocation1 [shape = 'u32[144,128]{1,0:T(1,128)}', space=vmem, size = 0x12000, scoped, tag = 'internal scratch']
  %s0 = inlined_call_operand.vmem [shape: bf16[16,648], index: 0, kind: input, shape index: {}]
  %s1 = inlined_call_operand.vmem [shape: bf16[648,128], index: 1, kind: input, shape index: {}]
  %s2 = inlined_call_operand.vmem [shape: f32[2,128], index: 2, kind: input, shape index: {}]
  %s3 = inlined_call_operand.vmem [shape: f32[16,128], index: 3, kind: output, shape index: {}]
  %s4 = sld [smem:[#allocation0]]
  $region22: #{encoder_forward.13} parent=0
    _
  %s6 = ssub.s32 1, %s4
  %s7 = scalar_select 0, %s6, %s4
  // Predicated region
  $region2: #{encoder_forward.13} parent=0 // pred_check
    _
  $region3: #{encoder_forward.13} parent=0 // pred_check_branch
    %9 = sbr.rel (0) target = $region5
  $region4: #{encoder_forward.13} parent=0 // pred_region
    _
  $region5: #{encoder_forward.13} parent=0 // pred_fallthru
    _
  // Predicated region
  $region6: #{encoder_forward.13} parent=0 // pred_check
    _
  $region7: #{encoder_forward.13} parent=0 // pred_check_branch
    %11 = sbr.rel (0) target = $region9
  $region8: #{encoder_forward.13} parent=0 // pred_region
    _
  $region9: #{encoder_forward.13} parent=0 // pred_fallthru
    _
  // Predicated region
  $region10: #{encoder_forward.13} parent=0 // pred_check
    _
  $region11: #{encoder_forward.13} parent=0 // pred_check_branch
    %13 = sbr.rel (0) target = $region13
  $region12: #{encoder_forward.13} parent=0 // pred_region
    _
  $region13: #{encoder_forward.13} parent=0 // pred_fallthru
    _
  %v15 = vld [vmem:[%s0] sm:$0xff]
  %v16 = vld [vmem:[%s0 + $0x8] sm:$0xff]
  %v17 = vld [vmem:[%s0 + $0x10] sm:$0xff]
  %v18 = vld [vmem:[%s0 + $0x18] sm:$0xff]
  %v19 = vld [vmem:[%s0 + $0x20] sm:$0xff]
  %v20 = vld [vmem:[%s0 + $0x28] sm:$0xff]
  %v21 = vld [vmem:[%s1] sm:$0xf]
  %v22 = vld [vmem:[%s1 + $0x4] sm:$0xf]
  %v23 = vld [vmem:[%s1 + $0x8] sm:$0xf]
  %v24 = vld [vmem:[%s1 + $0xc] sm:$0xf]
  %v25 = vld [vmem:[%s1 + $0x10] sm:$0xf]
  %v26 = vld [vmem:[%s1 + $0x14] sm:$0xf]
  %v27 = vld [vmem:[%s1 + $0x18] sm:$0xf]
  %v28 = vld [vmem:[%s1 + $0x1c] sm:$0xf]
  %v29 = vld [vmem:[%s1 + $0x20] sm:$0xf]
  %v30 = vld [vmem:[%s1 + $0x24] sm:$0xf]
  %v31 = vld [vmem:[%s1 + $0x28] sm:$0xf]
  %v32 = vld [vmem:[%s1 + $0x2c] sm:$0xf]
  %v33 = vld [vmem:[%s1 + $0x30] sm:$0xf]
  %v34 = vld [vmem:[%s1 + $0x34] sm:$0xf]
  %v35 = vld [vmem:[%s1 + $0x38] sm:$0xf]
  %v36 = vld [vmem:[%s1 + $0x3c] sm:$0xf]
  %v37 = vld [vmem:[%s1 + $0x40] sm:$0xf]
  %v38 = vld [vmem:[%s1 + $0x44] sm:$0xf]
  %v39 = vld [vmem:[%s1 + $0x48] sm:$0xf]
  %v40 = vld [vmem:[%s1 + $0x4c] sm:$0xf]
  %v41 = vld [vmem:[%s1 + $0x50] sm:$0xf]
  %v42 = vld [vmem:[%s1 + $0x54] sm:$0xf]
  %v43 = vld [vmem:[%s1 + $0x58] sm:$0xf]
  %v44 = vld [vmem:[%s1 + $0x5c] sm:$0xf]
  %v45 = vld [vmem:[%s1 + $0x60] sm:$0xf]
  %v46 = vld [vmem:[%s1 + $0x64] sm:$0xf]
  %v47 = vld [vmem:[%s1 + $0x68] sm:$0xf]
  %v48 = vld [vmem:[%s1 + $0x6c] sm:$0xf]
  %v49 = vld [vmem:[%s1 + $0x70] sm:$0xf]
  %v50 = vld [vmem:[%s1 + $0x74] sm:$0xf]
  %v51 = vld [vmem:[%s1 + $0x78] sm:$0xf]
  %v52 = vld [vmem:[%s1 + $0x7c] sm:$0xf]
  %v53 = vld [vmem:[%s1 + $0x80] sm:$0xf]
  %v54 = vld [vmem:[%s1 + $0x84] sm:$0xf]
  %v55 = vld [vmem:[%s1 + $0x88] sm:$0xf]
  %v56 = vld [vmem:[%s1 + $0x8c] sm:$0xf]
  %v57 = vld [vmem:[%s1 + $0x90] sm:$0xf]
  %v58 = vld [vmem:[%s1 + $0x94] sm:$0xf]
  %v59 = vld [vmem:[%s1 + $0x98] sm:$0xf]
  %v60 = vld [vmem:[%s1 + $0x9c] sm:$0xf]
  %v61 = vld [vmem:[%s1 + $0xa0] sm:$0xf]
  %v62 = vld [vmem:[%s1 + $0xa4] sm:$0xf]
  %v63 = vld [vmem:[%s1 + $0xa8] sm:$0xf]
  %v64 = vld [vmem:[%s1 + $0xac] sm:$0xf]
  %v65 = vld [vmem:[%s1 + $0xb0] sm:$0xf]
  %v66 = vld [vmem:[%s1 + $0xb4] sm:$0xf]
  %v67 = vld [vmem:[%s1 + $0xb8] sm:$0xf]
  %v68 = vld [vmem:[%s1 + $0xbc] sm:$0xf]
  %v69 = vld [vmem:[%s1 + $0xc0] sm:$0xf]
  %v70 = vld [vmem:[%s1 + $0xc4] sm:$0xf]
  %v71 = vld [vmem:[%s1 + $0xc8] sm:$0xf]
  %v72 = vld [vmem:[%s1 + $0xcc] sm:$0xf]
  %v73 = vld [vmem:[%s1 + $0xd0] sm:$0xf]
  %v74 = vld [vmem:[%s1 + $0xd4] sm:$0xf]
  %v75 = vld [vmem:[%s1 + $0xd8] sm:$0xf]
  %v76 = vld [vmem:[%s1 + $0xdc] sm:$0xf]
  %v77 = vld [vmem:[%s1 + $0xe0] sm:$0xf]
  %v78 = vld [vmem:[%s1 + $0xe4] sm:$0xf]
  %v79 = vld [vmem:[%s1 + $0xe8] sm:$0xf]
  %v80 = vld [vmem:[%s1 + $0xec] sm:$0xf]
  %v81 = vld [vmem:[%s1 + $0xf0] sm:$0xf]
  %v82 = vld [vmem:[%s1 + $0xf4] sm:$0xf]
  %v83 = vld [vmem:[%s1 + $0xf8] sm:$0xf]
  %v84 = vld [vmem:[%s1 + $0xfc] sm:$0xf]
  %v85 = vld [vmem:[%s1 + $0x100] sm:$0xf]
  %v86 = vld [vmem:[%s1 + $0x104] sm:$0xf]
  %v87 = vld [vmem:[%s1 + $0x108] sm:$0xf]
  %v88 = vld [vmem:[%s1 + $0x10c] sm:$0xf]
  %v89 = vld [vmem:[%s1 + $0x110] sm:$0xf]
  %v90 = vld [vmem:[%s1 + $0x114] sm:$0xf]
  %v91 = vld [vmem:[%s1 + $0x118] sm:$0xf]
  %v92 = vld [vmem:[%s1 + $0x11c] sm:$0xf]
  %v93 = vld [vmem:[%s1 + $0x120] sm:$0xf]
  %v94 = vld [vmem:[%s1 + $0x124] sm:$0xf]
  %v95 = vld [vmem:[%s1 + $0x128] sm:$0xf]
  %v96 = vld [vmem:[%s1 + $0x12c] sm:$0xf]
  %v97 = vld [vmem:[%s1 + $0x130] sm:$0xf]
  %v98 = vld [vmem:[%s1 + $0x134] sm:$0xf]
  %v99 = vld [vmem:[%s1 + $0x138] sm:$0xf]
  %v100 = vld [vmem:[%s1 + $0x13c] sm:$0xf]
  %v101 = vld [vmem:[%s1 + $0x140] sm:$0xf]
  %v102 = vld [vmem:[%s2] sm:$0x1]
  %v103 = vlaneseq
  %v104 = vshrl.u32 %v103, 7
  %v105 = vsub.s32 0, %v104
  %v106 = vrot.slane %v102, %v105
  %v113 = vunpack.c.l.b16 %v15
  %v114 = vunpack.c.h.b16 %v15
  %v115 = vunpack.c.l.b16 %v16
  %v116 = vunpack.c.h.b16 %v16
  %v117 = vunpack.c.l.b16 %v17
  %v118 = vunpack.c.h.b16 %v17
  %v119 = vunpack.c.l.b16 %v18
  %v120 = vunpack.c.h.b16 %v18
  %v121 = vunpack.c.l.b16 %v19
  %v122 = vunpack.c.h.b16 %v19
  %v123 = vunpack.c.l.b16 %v20
  %v124 = vunpack.c.h.b16 %v20
  %v125 = vpack.c.b16 %v119, %v113
  %v126 = vpack.c.b16 %v120, %v114
  %v127 = vpack.c.b16 %v121, %v115
  %v128 = vpack.c.b16 %v122, %v116
  %v129 = vpack.c.b16 %v123, %v117
  %v130 = vpack.c.b16 %v124, %v118
  %v217 = vunpack.c.l.b16 %v21
  %v218 = vunpack.c.l.b16 %v22
  %v219 = vunpack.c.l.b16 %v23
  %v220 = vunpack.c.l.b16 %v24
  %v221 = vunpack.c.l.b16 %v25
  %v222 = vunpack.c.l.b16 %v26
  %v223 = vunpack.c.l.b16 %v27
  %v224 = vunpack.c.l.b16 %v28
  %v225 = vunpack.c.l.b16 %v29
  %v226 = vunpack.c.l.b16 %v30
  %v227 = vunpack.c.l.b16 %v31
  %v228 = vunpack.c.l.b16 %v32
  %v229 = vunpack.c.l.b16 %v33
  %v230 = vunpack.c.l.b16 %v34
  %v231 = vunpack.c.l.b16 %v35
  %v232 = vunpack.c.l.b16 %v36
  %v233 = vunpack.c.l.b16 %v37
  %v234 = vunpack.c.l.b16 %v38
  %v235 = vunpack.c.l.b16 %v39
  %v236 = vunpack.c.l.b16 %v40
  %v237 = vunpack.c.l.b16 %v41
  %v238 = vunpack.c.l.b16 %v42
  %v239 = vunpack.c.l.b16 %v43
  %v240 = vunpack.c.l.b16 %v44
  %v241 = vunpack.c.l.b16 %v45
  %v242 = vunpack.c.l.b16 %v46
  %v243 = vunpack.c.l.b16 %v47
  %v244 = vunpack.c.l.b16 %v48
  %v245 = vunpack.c.l.b16 %v49
  %v246 = vunpack.c.l.b16 %v50
  %v247 = vunpack.c.l.b16 %v51
  %v248 = vunpack.c.l.b16 %v52
  %v249 = vunpack.c.l.b16 %v53
  %v250 = vunpack.c.l.b16 %v54
  %v251 = vunpack.c.l.b16 %v55
  %v252 = vunpack.c.l.b16 %v56
  %v253 = vunpack.c.l.b16 %v57
  %v254 = vunpack.c.l.b16 %v58
  %v255 = vunpack.c.l.b16 %v59
  %v256 = vunpack.c.l.b16 %v60
  %v257 = vunpack.c.l.b16 %v61
  %v258 = vunpack.c.l.b16 %v62
  %v259 = vunpack.c.l.b16 %v63
  %v260 = vunpack.c.l.b16 %v64
  %v261 = vunpack.c.l.b16 %v65
  %v262 = vunpack.c.l.b16 %v66
  %v263 = vunpack.c.l.b16 %v67
  %v264 = vunpack.c.l.b16 %v68
  %v265 = vunpack.c.l.b16 %v69
  %v266 = vunpack.c.l.b16 %v70
  %v267 = vunpack.c.l.b16 %v71
  %v268 = vunpack.c.l.b16 %v72
  %v269 = vunpack.c.l.b16 %v73
  %v270 = vunpack.c.l.b16 %v74
  %v271 = vunpack.c.l.b16 %v75
  %v272 = vunpack.c.l.b16 %v76
  %v273 = vunpack.c.l.b16 %v77
  %v274 = vunpack.c.l.b16 %v78
  %v275 = vunpack.c.l.b16 %v79
  %v276 = vunpack.c.l.b16 %v80
  %v277 = vunpack.c.l.b16 %v81
  %v278 = vunpack.c.l.b16 %v82
  %v279 = vunpack.c.l.b16 %v83
  %v280 = vunpack.c.l.b16 %v84
  %v281 = vunpack.c.l.b16 %v85
  %v282 = vunpack.c.l.b16 %v86
  %v283 = vunpack.c.l.b16 %v87
  %v284 = vunpack.c.l.b16 %v88
  %v285 = vunpack.c.l.b16 %v89
  %v286 = vunpack.c.l.b16 %v90
  %v287 = vunpack.c.l.b16 %v91
  %v288 = vunpack.c.l.b16 %v92
  %v289 = vunpack.c.l.b16 %v93
  %v290 = vunpack.c.l.b16 %v94
  %v291 = vunpack.c.l.b16 %v95
  %v292 = vunpack.c.l.b16 %v96
  %v293 = vunpack.c.l.b16 %v97
  %v294 = vunpack.c.l.b16 %v98
  %v295 = vunpack.c.l.b16 %v99
  %v296 = vunpack.c.l.b16 %v100
  %v297 = vunpack.c.l.b16 %v101
  %v298 = vpack.c.b16 %v218, %v217
  %v299 = vpack.c.b16 %v220, %v219
  %v300 = vpack.c.b16 %v222, %v221
  %v301 = vpack.c.b16 %v224, %v223
  %v302 = vpack.c.b16 %v226, %v225
  %v303 = vpack.c.b16 %v228, %v227
  %v304 = vpack.c.b16 %v230, %v229
  %v305 = vpack.c.b16 %v232, %v231
  %v306 = vpack.c.b16 %v234, %v233
  %v307 = vpack.c.b16 %v236, %v235
  %v308 = vpack.c.b16 %v238, %v237
  %v309 = vpack.c.b16 %v240, %v239
  %v310 = vpack.c.b16 %v242, %v241
  %v311 = vpack.c.b16 %v244, %v243
  %v312 = vpack.c.b16 %v246, %v245
  %v313 = vpack.c.b16 %v248, %v247
  %v314 = vpack.c.b16 %v250, %v249
  %v315 = vpack.c.b16 %v252, %v251
  %v316 = vpack.c.b16 %v254, %v253
  %v317 = vpack.c.b16 %v256, %v255
  %v318 = vpack.c.b16 %v258, %v257
  %v319 = vpack.c.b16 %v260, %v259
  %v320 = vpack.c.b16 %v262, %v261
  %v321 = vpack.c.b16 %v264, %v263
  %v322 = vpack.c.b16 %v266, %v265
  %v323 = vpack.c.b16 %v268, %v267
  %v324 = vpack.c.b16 %v270, %v269
  %v325 = vpack.c.b16 %v272, %v271
  %v326 = vpack.c.b16 %v274, %v273
  %v327 = vpack.c.b16 %v276, %v275
  %v328 = vpack.c.b16 %v278, %v277
  %v329 = vpack.c.b16 %v280, %v279
  %v330 = vpack.c.b16 %v282, %v281
  %v331 = vpack.c.b16 %v284, %v283
  %v332 = vpack.c.b16 %v286, %v285
  %v333 = vpack.c.b16 %v288, %v287
  %v334 = vpack.c.b16 %v290, %v289
  %v335 = vpack.c.b16 %v292, %v291
  %v336 = vpack.c.b16 %v294, %v293
  %v337 = vpack.c.b16 %v296, %v295
  %v338 = vpack.c.b16 %v297, %v297
  %vm379 = vcmask 64512
  %v381 = vsel %vm379, %v130, 0
  %vm383 = vcmask 1043456
  %v385 = vsel %vm383, %v338, 0
  %387 = vmatprep.subr.bf16.mxu0 0
  %388 = vmatpush1.bf16.msra.mxu0 %v305
  %389 = vmatprep.subr.bf16.mxu0 0
  %390 = vmatpush1.bf16.msra.mxu0 %v304
  %391 = vmatprep.subr.bf16.mxu0 0
  %392 = vmatpush1.bf16.msra.mxu0 %v303
  %393 = vmatprep.subr.bf16.mxu0 0
  %394 = vmatpush1.bf16.msra.mxu0 %v302
  %395 = vmatprep.subr.bf16.mxu0 0
  %396 = vmatpush1.bf16.msra.mxu0 %v301
  %397 = vmatprep.subr.bf16.mxu0 0
  %398 = vmatpush1.bf16.msra.mxu0 %v300
  %399 = vmatprep.subr.bf16.mxu0 0
  %400 = vmatpush1.bf16.msra.mxu0 %v299
  %401 = vmatprep.subr.bf16.mxu0 0
  %402 = vmatpush1.bf16.msra.mxu0 %v298
  %403 = vmatprep.subr.bf16.mxu0 0
  %404 = vmatpush2.bf16.msra.mxu0 %v313
  %405 = vmatprep.subr.bf16.mxu0 0
  %406 = vmatpush2.bf16.msra.mxu0 %v312
  %407 = vmatprep.subr.bf16.mxu0 0
  %408 = vmatpush2.bf16.msra.mxu0 %v311
  %409 = vmatprep.subr.bf16.mxu0 0
  %410 = vmatpush2.bf16.msra.mxu0 %v310
  %411 = vmatprep.subr.bf16.mxu0 0
  %412 = vmatpush2.bf16.msra.mxu0 %v309
  %413 = vmatprep.subr.bf16.mxu0 0
  %414 = vmatpush2.bf16.msra.mxu0 %v308
  %415 = vmatprep.subr.bf16.mxu0 0
  %416 = vmatpush2.bf16.msra.mxu0 %v307
  %417 = vmatprep.subr.bf16.mxu0 0
  %418 = vmatpush2.bf16.msra.mxu0 %v306
  %419 = vmatprep.mubr.bf16.mxu0 %v126
  %420 = vmatmul.mubr.bf16.gmra.mxu0 %v125
  %v421 = vpop.f32.mrf.mxu0
  %v422 = vadd.f32 %v106, %v421
  %v423 = vpop.f32.mrf.mxu0
  %v424 = vpop.f32.mrf.mxu0
  %v425 = vadd.f32 %v106, %v424
  %v426 = vpop.f32.mrf.mxu0
  %427 = vdwg.mxu0
  %428 = vmatprep.subr.bf16.mxu0 0
  %429 = vmatpush1.bf16.msra.mxu0 %v321
  %430 = vmatprep.subr.bf16.mxu0 0
  %431 = vmatpush1.bf16.msra.mxu0 %v320
  %432 = vmatprep.subr.bf16.mxu0 0
  %433 = vmatpush1.bf16.msra.mxu0 %v319
  %434 = vmatprep.subr.bf16.mxu0 0
  %435 = vmatpush1.bf16.msra.mxu0 %v318
  %436 = vmatprep.subr.bf16.mxu0 0
  %437 = vmatpush1.bf16.msra.mxu0 %v317
  %438 = vmatprep.subr.bf16.mxu0 0
  %439 = vmatpush1.bf16.msra.mxu0 %v316
  %440 = vmatprep.subr.bf16.mxu0 0
  %441 = vmatpush1.bf16.msra.mxu0 %v315
  %442 = vmatprep.subr.bf16.mxu0 0
  %443 = vmatpush1.bf16.msra.mxu0 %v314
  %444 = vmatprep.subr.bf16.mxu0 0
  %445 = vmatpush2.bf16.msra.mxu0 %v329
  %446 = vmatprep.subr.bf16.mxu0 0
  %447 = vmatpush2.bf16.msra.mxu0 %v328
  %448 = vmatprep.subr.bf16.mxu0 0
  %449 = vmatpush2.bf16.msra.mxu0 %v327
  %450 = vmatprep.subr.bf16.mxu0 0
  %451 = vmatpush2.bf16.msra.mxu0 %v326
  %452 = vmatprep.subr.bf16.mxu0 0
  %453 = vmatpush2.bf16.msra.mxu0 %v325
  %454 = vmatprep.subr.bf16.mxu0 0
  %455 = vmatpush2.bf16.msra.mxu0 %v324
  %456 = vmatprep.subr.bf16.mxu0 0
  %457 = vmatpush2.bf16.msra.mxu0 %v323
  %458 = vmatprep.subr.bf16.mxu0 0
  %459 = vmatpush2.bf16.msra.mxu0 %v322
  %460 = vmatprep.mubr.bf16.mxu0 %v128
  %461 = vmatmul.mubr.bf16.gmra.mxu0 %v127
  %v462 = vpop.f32.mrf.mxu0
  %v463 = vadd.f32 %v422, %v462
  %v464 = vpop.f32.mrf.mxu0
  %v465 = vpop.f32.mrf.mxu0
  %v466 = vadd.f32 %v425, %v465
  %v467 = vpop.f32.mrf.mxu0
  %468 = vdwg.mxu0
  %469 = vmatprep.subr.bf16.mxu0 0
  %470 = vmatpush1.bf16.msra.mxu0 %v337
  %471 = vmatprep.subr.bf16.mxu0 0
  %472 = vmatpush1.bf16.msra.mxu0 %v336
  %473 = vmatprep.subr.bf16.mxu0 0
  %474 = vmatpush1.bf16.msra.mxu0 %v335
  %475 = vmatprep.subr.bf16.mxu0 0
  %476 = vmatpush1.bf16.msra.mxu0 %v334
  %477 = vmatprep.subr.bf16.mxu0 0
  %478 = vmatpush1.bf16.msra.mxu0 %v333
  %479 = vmatprep.subr.bf16.mxu0 0
  %480 = vmatpush1.bf16.msra.mxu0 %v332
  %481 = vmatprep.subr.bf16.mxu0 0
  %482 = vmatpush1.bf16.msra.mxu0 %v331
  %483 = vmatprep.subr.bf16.mxu0 0
  %484 = vmatpush1.bf16.msra.mxu0 %v330
  %485 = vmatprep.subr.bf16.mxu0 0
  %486 = vmatpush2.bf16.msra.mxu0 0
  %487 = vmatprep.subr.bf16.mxu0 0
  %488 = vmatpush2.bf16.msra.mxu0 0
  %489 = vmatprep.subr.bf16.mxu0 0
  %490 = vmatpush2.bf16.msra.mxu0 0
  %491 = vmatprep.subr.bf16.mxu0 0
  %492 = vmatpush2.bf16.msra.mxu0 0
  %493 = vmatprep.subr.bf16.mxu0 0
  %494 = vmatpush2.bf16.msra.mxu0 0
  %495 = vmatprep.subr.bf16.mxu0 0
  %496 = vmatpush2.bf16.msra.mxu0 0
  %497 = vmatprep.subr.bf16.mxu0 0
  %498 = vmatpush2.bf16.msra.mxu0 0
  %499 = vmatprep.subr.bf16.mxu0 0
  %500 = vmatpush2.bf16.msra.mxu0 %v385
  %501 = vmatprep.mubr.bf16.mxu0 %v381
  %502 = vmatmul.mubr.bf16.gmra.mxu0 %v129
  %v503 = vpop.f32.mrf.mxu0
  %v504 = vadd.f32 %v463, %v503
  %v505 = vpop.f32.mrf.mxu0
  %v506 = vpop.f32.mrf.mxu0
  %v507 = vadd.f32 %v466, %v506
  %v508 = vpop.f32.mrf.mxu0
  %509 = vdwg.mxu0
  %v510 = vld [vmem:[%s2 + $0x1] sm:$0x1]
  %vm511 = vcmp.gt.f32.partialorder %v504, 0.0
  %vm512 = vcmp.gt.f32.partialorder %v507, 0.0
  %v513 = vlaneseq
  %v514 = vshrl.u32 %v513, 7
  %v515 = vsub.s32 0, %v514
  %v516 = vrot.slane %v510, %v515
  %v517 = vmul.f32 %v516, %v504
  %v518 = vmul.f32 %v516, %v507
  %v519 = vsel %vm511, %v504, %v517
  %v520 = vsel %vm512, %v507, %v518
  %521 = vst [vmem:[%s3] sm:$0xff] %v519
  %522 = vst [vmem:[%s3 + $0x8] sm:$0xff] %v520
  // Predicated region
  $region14: #{encoder_forward.13} parent=0 // pred_check
    _
  $region15: #{encoder_forward.13} parent=0 // pred_check_branch
    %524 = sbr.rel (0) target = $region17
  $region16: #{encoder_forward.13} parent=0 // pred_region
    _
  $region17: #{encoder_forward.13} parent=0 // pred_fallthru
    _
  // Predicated region
  $region18: #{encoder_forward.13} parent=0 // pred_check
    _
  $region19: #{encoder_forward.13} parent=0 // pred_check_branch
    %526 = sbr.rel (0) target = $region21
  $region20: #{encoder_forward.13} parent=0 // pred_region
    _
  $region21: #{encoder_forward.13} parent=0 // pred_fallthru
    _

// kernel: encoder_forward.15
$region0: #{encoder_forward.15}
  #allocation0 [shape = 'u32[]', space=smem, size = 0x4, offset = 0x4, fixed_abs, tag = 'smem constant byte address 0x4 - core index']
  #allocation1 [shape = 'u32[144,128]{1,0:T(1,128)}', space=vmem, size = 0x12000, scoped, tag = 'internal scratch']
  %s0 = inlined_call_operand.vmem [shape: bf16[16,864], index: 0, kind: input, shape index: {}]
  %s1 = inlined_call_operand.vmem [shape: bf16[864,128], index: 1, kind: input, shape index: {}]
  %s2 = inlined_call_operand.vmem [shape: f32[2,128], index: 2, kind: input, shape index: {}]
  %s3 = inlined_call_operand.vmem [shape: f32[16,128], index: 3, kind: output, shape index: {}]
  %s4 = sld [smem:[#allocation0]]
  $region22: #{encoder_forward.15} parent=0
    _
  %s6 = ssub.s32 1, %s4
  %s7 = scalar_select 0, %s6, %s4
  // Predicated region
  $region2: #{encoder_forward.15} parent=0 // pred_check
    _
  $region3: #{encoder_forward.15} parent=0 // pred_check_branch
    %9 = sbr.rel (0) target = $region5
  $region4: #{encoder_forward.15} parent=0 // pred_region
    _
  $region5: #{encoder_forward.15} parent=0 // pred_fallthru
    _
  // Predicated region
  $region6: #{encoder_forward.15} parent=0 // pred_check
    _
  $region7: #{encoder_forward.15} parent=0 // pred_check_branch
    %11 = sbr.rel (0) target = $region9
  $region8: #{encoder_forward.15} parent=0 // pred_region
    _
  $region9: #{encoder_forward.15} parent=0 // pred_fallthru
    _
  // Predicated region
  $region10: #{encoder_forward.15} parent=0 // pred_check
    _
  $region11: #{encoder_forward.15} parent=0 // pred_check_branch
    %13 = sbr.rel (0) target = $region13
  $region12: #{encoder_forward.15} parent=0 // pred_region
    _
  $region13: #{encoder_forward.15} parent=0 // pred_fallthru
    _
  %v15 = vld [vmem:[%s0] sm:$0xff]
  %v16 = vld [vmem:[%s0 + $0x8] sm:$0xff]
  %v17 = vld [vmem:[%s0 + $0x10] sm:$0xff]
  %v18 = vld [vmem:[%s0 + $0x18] sm:$0xf]
  %v19 = vld [vmem:[%s0 + $0x1c] sm:$0xff]
  %v20 = vld [vmem:[%s0 + $0x24] sm:$0xff]
  %v21 = vld [vmem:[%s0 + $0x2c] sm:$0xff]
  %v22 = vld [vmem:[%s0 + $0x34] sm:$0xf]
  %v23 = vld [vmem:[%s1] sm:$0xf]
  %v24 = vld [vmem:[%s1 + $0x4] sm:$0xf]
  %v25 = vld [vmem:[%s1 + $0x8] sm:$0xf]
  %v26 = vld [vmem:[%s1 + $0xc] sm:$0xf]
  %v27 = vld [vmem:[%s1 + $0x10] sm:$0xf]
  %v28 = vld [vmem:[%s1 + $0x14] sm:$0xf]
  %v29 = vld [vmem:[%s1 + $0x18] sm:$0xf]
  %v30 = vld [vmem:[%s1 + $0x1c] sm:$0xf]
  %v31 = vld [vmem:[%s1 + $0x20] sm:$0xf]
  %v32 = vld [vmem:[%s1 + $0x24] sm:$0xf]
  %v33 = vld [vmem:[%s1 + $0x28] sm:$0xf]
  %v34 = vld [vmem:[%s1 + $0x2c] sm:$0xf]
  %v35 = vld [vmem:[%s1 + $0x30] sm:$0xf]
  %v36 = vld [vmem:[%s1 + $0x34] sm:$0xf]
  %v37 = vld [vmem:[%s1 + $0x38] sm:$0xf]
  %v38 = vld [vmem:[%s1 + $0x3c] sm:$0xf]
  %v39 = vld [vmem:[%s1 + $0x40] sm:$0xf]
  %v40 = vld [vmem:[%s1 + $0x44] sm:$0xf]
  %v41 = vld [vmem:[%s1 + $0x48] sm:$0xf]
  %v42 = vld [vmem:[%s1 + $0x4c] sm:$0xf]
  %v43 = vld [vmem:[%s1 + $0x50] sm:$0xf]
  %v44 = vld [vmem:[%s1 + $0x54] sm:$0xf]
  %v45 = vld [vmem:[%s1 + $0x58] sm:$0xf]
  %v46 = vld [vmem:[%s1 + $0x5c] sm:$0xf]
  %v47 = vld [vmem:[%s1 + $0x60] sm:$0xf]
  %v48 = vld [vmem:[%s1 + $0x64] sm:$0xf]
  %v49 = vld [vmem:[%s1 + $0x68] sm:$0xf]
  %v50 = vld [vmem:[%s1 + $0x6c] sm:$0xf]
  %v51 = vld [vmem:[%s1 + $0x70] sm:$0xf]
  %v52 = vld [vmem:[%s1 + $0x74] sm:$0xf]
  %v53 = vld [vmem:[%s1 + $0x78] sm:$0xf]
  %v54 = vld [vmem:[%s1 + $0x7c] sm:$0xf]
  %v55 = vld [vmem:[%s1 + $0x80] sm:$0xf]
  %v56 = vld [vmem:[%s1 + $0x84] sm:$0xf]
  %v57 = vld [vmem:[%s1 + $0x88] sm:$0xf]
  %v58 = vld [vmem:[%s1 + $0x8c] sm:$0xf]
  %v59 = vld [vmem:[%s1 + $0x90] sm:$0xf]
  %v60 = vld [vmem:[%s1 + $0x94] sm:$0xf]
  %v61 = vld [vmem:[%s1 + $0x98] sm:$0xf]
  %v62 = vld [vmem:[%s1 + $0x9c] sm:$0xf]
  %v63 = vld [vmem:[%s1 + $0xa0] sm:$0xf]
  %v64 = vld [vmem:[%s1 + $0xa4] sm:$0xf]
  %v65 = vld [vmem:[%s1 + $0xa8] sm:$0xf]
  %v66 = vld [vmem:[%s1 + $0xac] sm:$0xf]
  %v67 = vld [vmem:[%s1 + $0xb0] sm:$0xf]
  %v68 = vld [vmem:[%s1 + $0xb4] sm:$0xf]
  %v69 = vld [vmem:[%s1 + $0xb8] sm:$0xf]
  %v70 = vld [vmem:[%s1 + $0xbc] sm:$0xf]
  %v71 = vld [vmem:[%s1 + $0xc0] sm:$0xf]
  %v72 = vld [vmem:[%s1 + $0xc4] sm:$0xf]
  %v73 = vld [vmem:[%s1 + $0xc8] sm:$0xf]
  %v74 = vld [vmem:[%s1 + $0xcc] sm:$0xf]
  %v75 = vld [vmem:[%s1 + $0xd0] sm:$0xf]
  %v76 = vld [vmem:[%s1 + $0xd4] sm:$0xf]
  %v77 = vld [vmem:[%s1 + $0xd8] sm:$0xf]
  %v78 = vld [vmem:[%s1 + $0xdc] sm:$0xf]
  %v79 = vld [vmem:[%s1 + $0xe0] sm:$0xf]
  %v80 = vld [vmem:[%s1 + $0xe4] sm:$0xf]
  %v81 = vld [vmem:[%s1 + $0xe8] sm:$0xf]
  %v82 = vld [vmem:[%s1 + $0xec] sm:$0xf]
  %v83 = vld [vmem:[%s1 + $0xf0] sm:$0xf]
  %v84 = vld [vmem:[%s1 + $0xf4] sm:$0xf]
  %v85 = vld [vmem:[%s1 + $0xf8] sm:$0xf]
  %v86 = vld [vmem:[%s1 + $0xfc] sm:$0xf]
  %v87 = vld [vmem:[%s1 + $0x100] sm:$0xf]
  %v88 = vld [vmem:[%s1 + $0x104] sm:$0xf]
  %v89 = vld [vmem:[%s1 + $0x108] sm:$0xf]
  %v90 = vld [vmem:[%s1 + $0x10c] sm:$0xf]
  %v91 = vld [vmem:[%s1 + $0x110] sm:$0xf]
  %v92 = vld [vmem:[%s1 + $0x114] sm:$0xf]
  %v93 = vld [vmem:[%s1 + $0x118] sm:$0xf]
  %v94 = vld [vmem:[%s1 + $0x11c] sm:$0xf]
  %v95 = vld [vmem:[%s1 + $0x120] sm:$0xf]
  %v96 = vld [vmem:[%s1 + $0x124] sm:$0xf]
  %v97 = vld [vmem:[%s1 + $0x128] sm:$0xf]
  %v98 = vld [vmem:[%s1 + $0x12c] sm:$0xf]
  %v99 = vld [vmem:[%s1 + $0x130] sm:$0xf]
  %v100 = vld [vmem:[%s1 + $0x134] sm:$0xf]
  %v101 = vld [vmem:[%s1 + $0x138] sm:$0xf]
  %v102 = vld [vmem:[%s1 + $0x13c] sm:$0xf]
  %v103 = vld [vmem:[%s1 + $0x140] sm:$0xf]
  %v104 = vld [vmem:[%s1 + $0x144] sm:$0xf]
  %v105 = vld [vmem:[%s1 + $0x148] sm:$0xf]
  %v106 = vld [vmem:[%s1 + $0x14c] sm:$0xf]
  %v107 = vld [vmem:[%s1 + $0x150] sm:$0xf]
  %v108 = vld [vmem:[%s1 + $0x154] sm:$0xf]
  %v109 = vld [vmem:[%s1 + $0x158] sm:$0xf]
  %v110 = vld [vmem:[%s1 + $0x15c] sm:$0xf]
  %v111 = vld [vmem:[%s1 + $0x160] sm:$0xf]
  %v112 = vld [vmem:[%s1 + $0x164] sm:$0xf]
  %v113 = vld [vmem:[%s1 + $0x168] sm:$0xf]
  %v114 = vld [vmem:[%s1 + $0x16c] sm:$0xf]
  %v115 = vld [vmem:[%s1 + $0x170] sm:$0xf]
  %v116 = vld [vmem:[%s1 + $0x174] sm:$0xf]
  %v117 = vld [vmem:[%s1 + $0x178] sm:$0xf]
  %v118 = vld [vmem:[%s1 + $0x17c] sm:$0xf]
  %v119 = vld [vmem:[%s1 + $0x180] sm:$0xf]
  %v120 = vld [vmem:[%s1 + $0x184] sm:$0xf]
  %v121 = vld [vmem:[%s1 + $0x188] sm:$0xf]
  %v122 = vld [vmem:[%s1 + $0x18c] sm:$0xf]
  %v123 = vld [vmem:[%s1 + $0x190] sm:$0xf]
  %v124 = vld [vmem:[%s1 + $0x194] sm:$0xf]
  %v125 = vld [vmem:[%s1 + $0x198] sm:$0xf]
  %v126 = vld [vmem:[%s1 + $0x19c] sm:$0xf]
  %v127 = vld [vmem:[%s1 + $0x1a0] sm:$0xf]
  %v128 = vld [vmem:[%s1 + $0x1a4] sm:$0xf]
  %v129 = vld [vmem:[%s1 + $0x1a8] sm:$0xf]
  %v130 = vld [vmem:[%s1 + $0x1ac] sm:$0xf]
  %v131 = vld [vmem:[%s2] sm:$0x1]
  %v132 = vlaneseq
  %v133 = vshrl.u32 %v132, 7
  %v134 = vsub.s32 0, %v133
  %v135 = vrot.slane %v131, %v134
  %v144 = vunpack.c.l.b16 %v15
  %v145 = vunpack.c.h.b16 %v15
  %v146 = vunpack.c.l.b16 %v16
  %v147 = vunpack.c.h.b16 %v16
  %v148 = vunpack.c.l.b16 %v17
  %v149 = vunpack.c.h.b16 %v17
  %v150 = vunpack.c.l.b16 %v18
  %v151 = vunpack.c.l.b16 %v19
  %v152 = vunpack.c.h.b16 %v19
  %v153 = vunpack.c.l.b16 %v20
  %v154 = vunpack.c.h.b16 %v20
  %v155 = vunpack.c.l.b16 %v21
  %v156 = vunpack.c.h.b16 %v21
  %v157 = vunpack.c.l.b16 %v22
  %v158 = vpack.c.b16 %v151, %v144
  %v159 = vpack.c.b16 %v152, %v145
  %v160 = vpack.c.b16 %v153, %v146
  %v161 = vpack.c.b16 %v154, %v147
  %v162 = vpack.c.b16 %v155, %v148
  %v163 = vpack.c.b16 %v156, %v149
  %v164 = vpack.c.b16 %v157, %v150
  %v279 = vunpack.c.l.b16 %v23
  %v280 = vunpack.c.l.b16 %v24
  %v281 = vunpack.c.l.b16 %v25
  %v282 = vunpack.c.l.b16 %v26
  %v283 = vunpack.c.l.b16 %v27
  %v284 = vunpack.c.l.b16 %v28
  %v285 = vunpack.c.l.b16 %v29
  %v286 = vunpack.c.l.b16 %v30
  %v287 = vunpack.c.l.b16 %v31
  %v288 = vunpack.c.l.b16 %v32
  %v289 = vunpack.c.l.b16 %v33
  %v290 = vunpack.c.l.b16 %v34
  %v291 = vunpack.c.l.b16 %v35
  %v292 = vunpack.c.l.b16 %v36
  %v293 = vunpack.c.l.b16 %v37
  %v294 = vunpack.c.l.b16 %v38
  %v295 = vunpack.c.l.b16 %v39
  %v296 = vunpack.c.l.b16 %v40
  %v297 = vunpack.c.l.b16 %v41
  %v298 = vunpack.c.l.b16 %v42
  %v299 = vunpack.c.l.b16 %v43
  %v300 = vunpack.c.l.b16 %v44
  %v301 = vunpack.c.l.b16 %v45
  %v302 = vunpack.c.l.b16 %v46
  %v303 = vunpack.c.l.b16 %v47
  %v304 = vunpack.c.l.b16 %v48
  %v305 = vunpack.c.l.b16 %v49
  %v306 = vunpack.c.l.b16 %v50
  %v307 = vunpack.c.l.b16 %v51
  %v308 = vunpack.c.l.b16 %v52
  %v309 = vunpack.c.l.b16 %v53
  %v310 = vunpack.c.l.b16 %v54
  %v311 = vunpack.c.l.b16 %v55
  %v312 = vunpack.c.l.b16 %v56
  %v313 = vunpack.c.l.b16 %v57
  %v314 = vunpack.c.l.b16 %v58
  %v315 = vunpack.c.l.b16 %v59
  %v316 = vunpack.c.l.b16 %v60
  %v317 = vunpack.c.l.b16 %v61
  %v318 = vunpack.c.l.b16 %v62
  %v319 = vunpack.c.l.b16 %v63
  %v320 = vunpack.c.l.b16 %v64
  %v321 = vunpack.c.l.b16 %v65
  %v322 = vunpack.c.l.b16 %v66
  %v323 = vunpack.c.l.b16 %v67
  %v324 = vunpack.c.l.b16 %v68
  %v325 = vunpack.c.l.b16 %v69
  %v326 = vunpack.c.l.b16 %v70
  %v327 = vunpack.c.l.b16 %v71
  %v328 = vunpack.c.l.b16 %v72
  %v329 = vunpack.c.l.b16 %v73
  %v330 = vunpack.c.l.b16 %v74
  %v331 = vunpack.c.l.b16 %v75
  %v332 = vunpack.c.l.b16 %v76
  %v333 = vunpack.c.l.b16 %v77
  %v334 = vunpack.c.l.b16 %v78
  %v335 = vunpack.c.l.b16 %v79
  %v336 = vunpack.c.l.b16 %v80
  %v337 = vunpack.c.l.b16 %v81
  %v338 = vunpack.c.l.b16 %v82
  %v339 = vunpack.c.l.b16 %v83
  %v340 = vunpack.c.l.b16 %v84
  %v341 = vunpack.c.l.b16 %v85
  %v342 = vunpack.c.l.b16 %v86
  %v343 = vunpack.c.l.b16 %v87
  %v344 = vunpack.c.l.b16 %v88
  %v345 = vunpack.c.l.b16 %v89
  %v346 = vunpack.c.l.b16 %v90
  %v347 = vunpack.c.l.b16 %v91
  %v348 = vunpack.c.l.b16 %v92
  %v349 = vunpack.c.l.b16 %v93
  %v350 = vunpack.c.l.b16 %v94
  %v351 = vunpack.c.l.b16 %v95
  %v352 = vunpack.c.l.b16 %v96
  %v353 = vunpack.c.l.b16 %v97
  %v354 = vunpack.c.l.b16 %v98
  %v355 = vunpack.c.l.b16 %v99
  %v356 = vunpack.c.l.b16 %v100
  %v357 = vunpack.c.l.b16 %v101
  %v358 = vunpack.c.l.b16 %v102
  %v359 = vunpack.c.l.b16 %v103
  %v360 = vunpack.c.l.b16 %v104
  %v361 = vunpack.c.l.b16 %v105
  %v362 = vunpack.c.l.b16 %v106
  %v363 = vunpack.c.l.b16 %v107
  %v364 = vunpack.c.l.b16 %v108
  %v365 = vunpack.c.l.b16 %v109
  %v366 = vunpack.c.l.b16 %v110
  %v367 = vunpack.c.l.b16 %v111
  %v368 = vunpack.c.l.b16 %v112
  %v369 = vunpack.c.l.b16 %v113
  %v370 = vunpack.c.l.b16 %v114
  %v371 = vunpack.c.l.b16 %v115
  %v372 = vunpack.c.l.b16 %v116
  %v373 = vunpack.c.l.b16 %v117
  %v374 = vunpack.c.l.b16 %v118
  %v375 = vunpack.c.l.b16 %v119
  %v376 = vunpack.c.l.b16 %v120
  %v377 = vunpack.c.l.b16 %v121
  %v378 = vunpack.c.l.b16 %v122
  %v379 = vunpack.c.l.b16 %v123
  %v380 = vunpack.c.l.b16 %v124
  %v381 = vunpack.c.l.b16 %v125
  %v382 = vunpack.c.l.b16 %v126
  %v383 = vunpack.c.l.b16 %v127
  %v384 = vunpack.c.l.b16 %v128
  %v385 = vunpack.c.l.b16 %v129
  %v386 = vunpack.c.l.b16 %v130
  %v387 = vpack.c.b16 %v280, %v279
  %v388 = vpack.c.b16 %v282, %v281
  %v389 = vpack.c.b16 %v284, %v283
  %v390 = vpack.c.b16 %v286, %v285
  %v391 = vpack.c.b16 %v288, %v287
  %v392 = vpack.c.b16 %v290, %v289
  %v393 = vpack.c.b16 %v292, %v291
  %v394 = vpack.c.b16 %v294, %v293
  %v395 = vpack.c.b16 %v296, %v295
  %v396 = vpack.c.b16 %v298, %v297
  %v397 = vpack.c.b16 %v300, %v299
  %v398 = vpack.c.b16 %v302, %v301
  %v399 = vpack.c.b16 %v304, %v303
  %v400 = vpack.c.b16 %v306, %v305
  %v401 = vpack.c.b16 %v308, %v307
  %v402 = vpack.c.b16 %v310, %v309
  %v403 = vpack.c.b16 %v312, %v311
  %v404 = vpack.c.b16 %v314, %v313
  %v405 = vpack.c.b16 %v316, %v315
  %v406 = vpack.c.b16 %v318, %v317
  %v407 = vpack.c.b16 %v320, %v319
  %v408 = vpack.c.b16 %v322, %v321
  %v409 = vpack.c.b16 %v324, %v323
  %v410 = vpack.c.b16 %v326, %v325
  %v411 = vpack.c.b16 %v328, %v327
  %v412 = vpack.c.b16 %v330, %v329
  %v413 = vpack.c.b16 %v332, %v331
  %v414 = vpack.c.b16 %v334, %v333
  %v415 = vpack.c.b16 %v336, %v335
  %v416 = vpack.c.b16 %v338, %v337
  %v417 = vpack.c.b16 %v340, %v339
  %v418 = vpack.c.b16 %v342, %v341
  %v419 = vpack.c.b16 %v344, %v343
  %v420 = vpack.c.b16 %v346, %v345
  %v421 = vpack.c.b16 %v348, %v347
  %v422 = vpack.c.b16 %v350, %v349
  %v423 = vpack.c.b16 %v352, %v351
  %v424 = vpack.c.b16 %v354, %v353
  %v425 = vpack.c.b16 %v356, %v355
  %v426 = vpack.c.b16 %v358, %v357
  %v427 = vpack.c.b16 %v360, %v359
  %v428 = vpack.c.b16 %v362, %v361
  %v429 = vpack.c.b16 %v364, %v363
  %v430 = vpack.c.b16 %v366, %v365
  %v431 = vpack.c.b16 %v368, %v367
  %v432 = vpack.c.b16 %v370, %v369
  %v433 = vpack.c.b16 %v372, %v371
  %v434 = vpack.c.b16 %v374, %v373
  %v435 = vpack.c.b16 %v376, %v375
  %v436 = vpack.c.b16 %v378, %v377
  %v437 = vpack.c.b16 %v380, %v379
  %v438 = vpack.c.b16 %v382, %v381
  %v439 = vpack.c.b16 %v384, %v383
  %v440 = vpack.c.b16 %v386, %v385
  %vm495 = vcmask 785408
  %v497 = vsel %vm495, %v164, 0
  %499 = vmatprep.subr.bf16.mxu0 0
  %500 = vmatpush1.bf16.msra.mxu0 %v394
  %501 = vmatprep.subr.bf16.mxu0 0
  %502 = vmatpush1.bf16.msra.mxu0 %v393
  %503 = vmatprep.subr.bf16.mxu0 0
  %504 = vmatpush1.bf16.msra.mxu0 %v392
  %505 = vmatprep.subr.bf16.mxu0 0
  %506 = vmatpush1.bf16.msra.mxu0 %v391
  %507 = vmatprep.subr.bf16.mxu0 0
  %508 = vmatpush1.bf16.msra.mxu0 %v390
  %509 = vmatprep.subr.bf16.mxu0 0
  %510 = vmatpush1.bf16.msra.mxu0 %v389
  %511 = vmatprep.subr.bf16.mxu0 0
  %512 = vmatpush1.bf16.msra.mxu0 %v388
  %513 = vmatprep.subr.bf16.mxu0 0
  %514 = vmatpush1.bf16.msra.mxu0 %v387
  %515 = vmatprep.subr.bf16.mxu0 0
  %516 = vmatpush2.bf16.msra.mxu0 %v402
  %517 = vmatprep.subr.bf16.mxu0 0
  %518 = vmatpush2.bf16.msra.mxu0 %v401
  %519 = vmatprep.subr.bf16.mxu0 0
  %520 = vmatpush2.bf16.msra.mxu0 %v400
  %521 = vmatprep.subr.bf16.mxu0 0
  %522 = vmatpush2.bf16.msra.mxu0 %v399
  %523 = vmatprep.subr.bf16.mxu0 0
  %524 = vmatpush2.bf16.msra.mxu0 %v398
  %525 = vmatprep.subr.bf16.mxu0 0
  %526 = vmatpush2.bf16.msra.mxu0 %v397
  %527 = vmatprep.subr.bf16.mxu0 0
  %528 = vmatpush2.bf16.msra.mxu0 %v396
  %529 = vmatprep.subr.bf16.mxu0 0
  %530 = vmatpush2.bf16.msra.mxu0 %v395
  %531 = vmatprep.mubr.bf16.mxu0 %v159
  %532 = vmatmul.mubr.bf16.gmra.mxu0 %v158
  %v533 = vpop.f32.mrf.mxu0
  %v534 = vadd.f32 %v135, %v533
  %v535 = vpop.f32.mrf.mxu0
  %v536 = vpop.f32.mrf.mxu0
  %v537 = vadd.f32 %v135, %v536
  %v538 = vpop.f32.mrf.mxu0
  %539 = vdwg.mxu0
  %540 = vmatprep.subr.bf16.mxu0 0
  %541 = vmatpush1.bf16.msra.mxu0 %v410
  %542 = vmatprep.subr.bf16.mxu0 0
  %543 = vmatpush1.bf16.msra.mxu0 %v409
  %544 = vmatprep.subr.bf16.mxu0 0
  %545 = vmatpush1.bf16.msra.mxu0 %v408
  %546 = vmatprep.subr.bf16.mxu0 0
  %547 = vmatpush1.bf16.msra.mxu0 %v407
  %548 = vmatprep.subr.bf16.mxu0 0
  %549 = vmatpush1.bf16.msra.mxu0 %v406
  %550 = vmatprep.subr.bf16.mxu0 0
  %551 = vmatpush1.bf16.msra.mxu0 %v405
  %552 = vmatprep.subr.bf16.mxu0 0
  %553 = vmatpush1.bf16.msra.mxu0 %v404
  %554 = vmatprep.subr.bf16.mxu0 0
  %555 = vmatpush1.bf16.msra.mxu0 %v403
  %556 = vmatprep.subr.bf16.mxu0 0
  %557 = vmatpush2.bf16.msra.mxu0 %v418
  %558 = vmatprep.subr.bf16.mxu0 0
  %559 = vmatpush2.bf16.msra.mxu0 %v417
  %560 = vmatprep.subr.bf16.mxu0 0
  %561 = vmatpush2.bf16.msra.mxu0 %v416
  %562 = vmatprep.subr.bf16.mxu0 0
  %563 = vmatpush2.bf16.msra.mxu0 %v415
  %564 = vmatprep.subr.bf16.mxu0 0
  %565 = vmatpush2.bf16.msra.mxu0 %v414
  %566 = vmatprep.subr.bf16.mxu0 0
  %567 = vmatpush2.bf16.msra.mxu0 %v413
  %568 = vmatprep.subr.bf16.mxu0 0
  %569 = vmatpush2.bf16.msra.mxu0 %v412
  %570 = vmatprep.subr.bf16.mxu0 0
  %571 = vmatpush2.bf16.msra.mxu0 %v411
  %572 = vmatprep.mubr.bf16.mxu0 %v161
  %573 = vmatmul.mubr.bf16.gmra.mxu0 %v160
  %v574 = vpop.f32.mrf.mxu0
  %v575 = vadd.f32 %v534, %v574
  %v576 = vpop.f32.mrf.mxu0
  %v577 = vpop.f32.mrf.mxu0
  %v578 = vadd.f32 %v537, %v577
  %v579 = vpop.f32.mrf.mxu0
  %580 = vdwg.mxu0
  %581 = vmatprep.subr.bf16.mxu0 0
  %582 = vmatpush1.bf16.msra.mxu0 %v426
  %583 = vmatprep.subr.bf16.mxu0 0
  %584 = vmatpush1.bf16.msra.mxu0 %v425
  %585 = vmatprep.subr.bf16.mxu0 0
  %586 = vmatpush1.bf16.msra.mxu0 %v424
  %587 = vmatprep.subr.bf16.mxu0 0
  %588 = vmatpush1.bf16.msra.mxu0 %v423
  %589 = vmatprep.subr.bf16.mxu0 0
  %590 = vmatpush1.bf16.msra.mxu0 %v422
  %591 = vmatprep.subr.bf16.mxu0 0
  %592 = vmatpush1.bf16.msra.mxu0 %v421
  %593 = vmatprep.subr.bf16.mxu0 0
  %594 = vmatpush1.bf16.msra.mxu0 %v420
  %595 = vmatprep.subr.bf16.mxu0 0
  %596 = vmatpush1.bf16.msra.mxu0 %v419
  %597 = vmatprep.subr.bf16.mxu0 0
  %598 = vmatpush2.bf16.msra.mxu0 %v434
  %599 = vmatprep.subr.bf16.mxu0 0
  %600 = vmatpush2.bf16.msra.mxu0 %v433
  %601 = vmatprep.subr.bf16.mxu0 0
  %602 = vmatpush2.bf16.msra.mxu0 %v432
  %603 = vmatprep.subr.bf16.mxu0 0
  %604 = vmatpush2.bf16.msra.mxu0 %v431
  %605 = vmatprep.subr.bf16.mxu0 0
  %606 = vmatpush2.bf16.msra.mxu0 %v430
  %607 = vmatprep.subr.bf16.mxu0 0
  %608 = vmatpush2.bf16.msra.mxu0 %v429
  %609 = vmatprep.subr.bf16.mxu0 0
  %610 = vmatpush2.bf16.msra.mxu0 %v428
  %611 = vmatprep.subr.bf16.mxu0 0
  %612 = vmatpush2.bf16.msra.mxu0 %v427
  %613 = vmatprep.mubr.bf16.mxu0 %v163
  %614 = vmatmul.mubr.bf16.gmra.mxu0 %v162
  %v615 = vpop.f32.mrf.mxu0
  %v616 = vadd.f32 %v575, %v615
  %v617 = vpop.f32.mrf.mxu0
  %v618 = vpop.f32.mrf.mxu0
  %v619 = vadd.f32 %v578, %v618
  %v620 = vpop.f32.mrf.mxu0
  %621 = vdwg.mxu0
  %622 = vmatprep.subr.bf16.mxu0 0
  %623 = vmatpush1.bf16.msra.mxu0 0
  %624 = vmatprep.subr.bf16.mxu0 0
  %625 = vmatpush1.bf16.msra.mxu0 0
  %626 = vmatprep.subr.bf16.mxu0 0
  %627 = vmatpush1.bf16.msra.mxu0 %v440
  %628 = vmatprep.subr.bf16.mxu0 0
  %629 = vmatpush1.bf16.msra.mxu0 %v439
  %630 = vmatprep.subr.bf16.mxu0 0
  %631 = vmatpush1.bf16.msra.mxu0 %v438
  %632 = vmatprep.subr.bf16.mxu0 0
  %633 = vmatpush1.bf16.msra.mxu0 %v437
  %634 = vmatprep.subr.bf16.mxu0 0
  %635 = vmatpush1.bf16.msra.mxu0 %v436
  %636 = vmatprep.subr.bf16.mxu0 0
  %637 = vmatpush1.bf16.msra.mxu0 %v435
  %638 = vmatprep.subr.bf16.mxu0 0
  %639 = vmatpush2.bf16.msra.mxu0 0
  %640 = vmatprep.subr.bf16.mxu0 0
  %641 = vmatpush2.bf16.msra.mxu0 0
  %642 = vmatprep.subr.bf16.mxu0 0
  %643 = vmatpush2.bf16.msra.mxu0 0
  %644 = vmatprep.subr.bf16.mxu0 0
  %645 = vmatpush2.bf16.msra.mxu0 0
  %646 = vmatprep.subr.bf16.mxu0 0
  %647 = vmatpush2.bf16.msra.mxu0 0
  %648 = vmatprep.subr.bf16.mxu0 0
  %649 = vmatpush2.bf16.msra.mxu0 0
  %650 = vmatprep.subr.bf16.mxu0 0
  %651 = vmatpush2.bf16.msra.mxu0 0
  %652 = vmatprep.subr.bf16.mxu0 0
  %653 = vmatpush2.bf16.msra.mxu0 0
  %654 = vmatprep.mubr.bf16.mxu0 0
  %655 = vmatmul.mubr.bf16.gmra.mxu0 %v497
  %v656 = vpop.f32.mrf.mxu0
  %v657 = vadd.f32 %v616, %v656
  %v658 = vpop.f32.mrf.mxu0
  %v659 = vpop.f32.mrf.mxu0
  %v660 = vadd.f32 %v619, %v659
  %v661 = vpop.f32.mrf.mxu0
  %662 = vdwg.mxu0
  %v663 = vld [vmem:[%s2 + $0x1] sm:$0x1]
  %vm664 = vcmp.gt.f32.partialorder %v657, 0.0
  %vm665 = vcmp.gt.f32.partialorder %v660, 0.0
  %v666 = vlaneseq
  %v667 = vshrl.u32 %v666, 7
  %v668 = vsub.s32 0, %v667
  %v669 = vrot.slane %v663, %v668
  %v670 = vmul.f32 %v669, %v657
  %v671 = vmul.f32 %v669, %v660
  %v672 = vsel %vm664, %v657, %v670
  %v673 = vsel %vm665, %v660, %v671
  %674 = vst [vmem:[%s3] sm:$0xff] %v672
  %675 = vst [vmem:[%s3 + $0x8] sm:$0xff] %v673
  // Predicated region
  $region14: #{encoder_forward.15} parent=0 // pred_check
    _
  $region15: #{encoder_forward.15} parent=0 // pred_check_branch
    %677 = sbr.rel (0) target = $region17
  $region16: #{encoder_forward.15} parent=0 // pred_region
    _
  $region17: #{encoder_forward.15} parent=0 // pred_fallthru
    _
  // Predicated region
  $region18: #{encoder_forward.15} parent=0 // pred_check
    _
  $region19: #{encoder_forward.15} parent=0 // pred_check_branch
    %679 = sbr.rel (0) target = $region21
  $region20: #{encoder_forward.15} parent=0 // pred_region
    _
  $region21: #{encoder_forward.15} parent=0 // pred_fallthru
    _

</llo_original>
